<compile_context>
chip_gen: v7x
topology: tpu7x:2x2x1
jax: 0.10.0
libtpu: 0.0.40
codegen_flags: <defaults>
</compile_context>

<pallas_src>
import jax
import jax.numpy as jnp
from jax.experimental import pallas as pl
from jax.experimental.pallas import tpu as pltpu


def mlp_kernel(xt_ref, w0_ref, w1_ref, w2_ref, wc_ref, o_ref):
    """One batch tile; batch lives on the lane axis end-to-end.

    xt_ref : (D,  TB) f32   batch-transposed input slab
    w0_ref : (H0, D ) bf16  fc_layer_0 weight (PyTorch (out, in) layout)
    w1_ref : (H1, H0) bf16  fc_layer_1 weight
    w2_ref : (H2, H1) bf16  fc_layer_2 weight
    wc_ref : (H2, 1 ) f32   fc_class weight (column)
    o_ref  : (1,  TB) f32   lane-dense output row
    """
    # fc_layer_0 + ReLU  (bf16 MXU inputs, f32 accumulate, f32 ReLU)
    h = jnp.dot(w0_ref[...], xt_ref[...].astype(jnp.bfloat16),
                preferred_element_type=jnp.float32)
    h = jnp.maximum(h, 0.0)
    # fc_layer_1 + ReLU
    h = jnp.dot(w1_ref[...], h.astype(jnp.bfloat16),
                preferred_element_type=jnp.float32)
    h = jnp.maximum(h, 0.0)
    # fc_layer_2 + ReLU
    h = jnp.dot(w2_ref[...], h.astype(jnp.bfloat16),
                preferred_element_type=jnp.float32)
    h = jnp.maximum(h, 0.0)
    # Dropout: eval-mode identity.
    # TODO(synk): training-mode stochastic dropout (pltpu.prng_random_bits) not emitted.
    # fc_class (32 -> 1): VPU broadcast-multiply + sublane reduction; result is
    # already lane-dense, so the store is an unmasked full-lane write.
    o_ref[...] = jnp.sum(h * wc_ref[...], axis=0, keepdims=True)


def _round_up(n, m):
    return ((n + m - 1) // m) * m


def prepare_params(torch_weights):
    """One-time conversion of PyTorch-layout f32 weights to kernel-ready form.
    Hoisted out of mlp_forward so the f32->bf16 casts don't burn an HBM round
    trip on every call.

    torch_weights: [W0, W1, W2, Wc] with shapes (out, in) f32 (nn.Linear.weight).
    """
    w0, w1, w2, wc = torch_weights
    return (
        w0.astype(jnp.bfloat16),                 # (H0, D)
        w1.astype(jnp.bfloat16),                 # (H1, H0)
        w2.astype(jnp.bfloat16),                 # (H2, H1)
        wc.reshape(-1, 1).astype(jnp.float32),   # (H2, 1) — tiny, stays f32 (VPU)
    )


def mlp_forward(x, params, *, block_batch=512):
    """x: (B, D) f32.  params: output of prepare_params.  Returns (B, 1) f32."""
    w0, w1, w2, wc = params
    B, D = x.shape
    H0, H1, H2 = w0.shape[0], w1.shape[0], w2.shape[0]
    assert w0.shape[1] == D and w1.shape[1] == H0 and w2.shape[1] == H1
    assert wc.shape == (H2, 1)

    # Batch tile: large enough to amortize the ~0.35us per-grid-step overhead
    # and fill the 256-wide MXU (v6e/v7x), kept to >=2 grid steps when the
    # batch allows it (v7x megacore sharding of the "parallel" axis), and not
    # absurdly padded for tiny batches.  Default 512 keeps the f32
    # intermediates (~6 MiB) well under every generation's scoped-VMEM limit
    # (incl. v5e's 16 MiB default); only raise block_batch to 1024 on v5e with
    # an explicit vmem_limit_bytes.
    TB = min(block_batch, _round_up(max(B // 2, 1), 256))
    TB = max(min(TB, _round_up(B, 128)), 128)
    n_tiles = pl.cdiv(B, TB)

    # Lane-major layout: batch on the 128-lane axis.  x.T is cheap layout
    # plumbing (B*D*4 bytes) done once by XLA; the big weight arrays are
    # already in kernel-ready layout/dtype.
    xt = x.T  # (D, B)

    def const_spec(a):
        # Constant block index -> fetched once, stays VMEM-resident across the
        # batch grid steps.
        return pl.BlockSpec(a.shape, lambda i: (0, 0))

    out_flat = pl.pallas_call(
        mlp_kernel,
        out_shape=jax.ShapeDtypeStruct((1, n_tiles * TB), jnp.float32),
        grid=(n_tiles,),
        in_specs=[
            pl.BlockSpec((D, TB), lambda i: (0, i)),   # batch-sliced input slab
            const_spec(w0),
            const_spec(w1),
            const_spec(w2),
            const_spec(wc),
        ],
        out_specs=pl.BlockSpec((1, TB), lambda i: (0, i)),   # lane-dense writeback
        compiler_params=pltpu.CompilerParams(
            dimension_semantics=("parallel",),
        ),
    )(xt, w0, w1, w2, wc)

    return out_flat[0, :B].reshape(B, 1)


def init_mlp_params(key, input_size, hidden_size=(1024, 512, 32)):
    """Deterministic init mimicking nn.Linear default U(-1/sqrt(fan_in), 1/sqrt(fan_in)).
    Returns weights in PyTorch (out, in) layout, f32.  bias=False (module default)."""
    dims_in = (input_size,) + tuple(hidden_size)
    dims_out = tuple(hidden_size) + (1,)
    weights = []
    for d_in, d_out in zip(dims_in, dims_out):
        key, sub = jax.random.split(key)
        bound = 1.0 / (d_in ** 0.5)
        w = jax.random.uniform(sub, (d_out, d_in), jnp.float32, -bound, bound)
        weights.append(w)
    return weights


def mlp_reference_bf16(x, torch_weights):
    """Plain-JAX reference with the kernel's numerics (bf16 MXU inputs for the
    hidden layers, f32 accumulation, dropout=eval identity)."""
    h = x
    for w in torch_weights[:-1]:
        h = jnp.maximum(
            jnp.dot(h.astype(jnp.bfloat16), w.T.astype(jnp.bfloat16),
                    preferred_element_type=jnp.float32),
            0.0,
        )
    return jnp.dot(h, torch_weights[-1].T, preferred_element_type=jnp.float32)


def mlp_reference_f32(x, torch_weights):
    """Full-f32 reference (semantics check only; looser tolerance vs bf16 kernel)."""
    h = x
    for w in torch_weights[:-1]:
        h = jnp.maximum(h @ w.T, 0.0)
    return h @ torch_weights[-1].T


def _check(x, torch_weights, params, **kw):
    out = jax.block_until_ready(mlp_forward(x, params, **kw))
    assert out.shape == (x.shape[0], 1)
    ref_bf16 = mlp_reference_bf16(x, torch_weights)
    assert jnp.allclose(out, ref_bf16, atol=2e-3, rtol=2e-3), (
        float(jnp.max(jnp.abs(out - ref_bf16))))
    ref_f32 = mlp_reference_f32(x, torch_weights)
    assert jnp.allclose(out, ref_f32, atol=3e-2, rtol=3e-2), (
        float(jnp.max(jnp.abs(out - ref_f32))))
    return out


if __name__ == "__main__":
    key = jax.random.PRNGKey(0)
    input_size = 64

    kx, kw, kx2 = jax.random.split(key, 3)
    torch_weights = init_mlp_params(kw, input_size)   # PyTorch (out, in) f32
    params = prepare_params(torch_weights)            # one-time bf16/layout prep

    # Small case (single grid step, partial lane tile).
    x_small = jax.random.normal(kx, (16, input_size), jnp.float32)
    _check(x_small, torch_weights, params)

    # Multi-tile case: exercises the batch grid (TB=256, grid=(2,)) and the
    # partial last tile with VMEM-resident weights across steps.
    x_big = jax.random.normal(kx2, (384, input_size), jnp.float32)
    _check(x_big, torch_weights, params)

    print("KERNEL_OK")
</pallas_src>

<mosaic_0001>
module attributes {stable_mosaic.version = 11 : i64} {
  func.func @mlp_kernel(%arg0: i32, %arg1: memref<64x128xf32, #tpu.memory_space<vmem>>, %arg2: memref<1024x64xbf16, #tpu.memory_space<vmem>>, %arg3: memref<512x1024xbf16, #tpu.memory_space<vmem>>, %arg4: memref<32x512xbf16, #tpu.memory_space<vmem>>, %arg5: memref<32x1xf32, #tpu.memory_space<vmem>>, %arg6: memref<1x128xf32, #tpu.memory_space<vmem>>) attributes {dimension_semantics = [#tpu.dimension_semantics<parallel>], iteration_bounds = array<i64: 1>, scalar_prefetch = 0 : i64, scratch_operands = 0 : i64, tpu.core_type = #tpu.core_type<tc>, window_params = [{transform_indices = @transform_0, window_bounds = array<i64: 64, 128>}, {pipeline_mode = #tpu.pipeline_mode<synchronous>, transform_indices = @transform_1, window_bounds = array<i64: 1024, 64>}, {pipeline_mode = #tpu.pipeline_mode<synchronous>, transform_indices = @transform_2, window_bounds = array<i64: 512, 1024>}, {pipeline_mode = #tpu.pipeline_mode<synchronous>, transform_indices = @transform_3, window_bounds = array<i64: 32, 512>}, {pipeline_mode = #tpu.pipeline_mode<synchronous>, transform_indices = @transform_4, window_bounds = array<i64: 32, 1>}, {transform_indices = @transform_5, window_bounds = array<i64: 1, 128>}]} {
    %c0 = arith.constant 0 : index
    %c0_0 = arith.constant 0 : index
    %0 = vector.load %arg2[%c0, %c0_0] : memref<1024x64xbf16, #tpu.memory_space<vmem>>, vector<1024x64xbf16>
    %c0_1 = arith.constant 0 : index
    %c0_2 = arith.constant 0 : index
    %1 = vector.load %arg1[%c0_1, %c0_2] : memref<64x128xf32, #tpu.memory_space<vmem>>, vector<64x128xf32>
    %2 = arith.truncf %1 : vector<64x128xf32> to vector<64x128xbf16>
    %cst = arith.constant dense<0.000000e+00> : vector<1024x128xf32>
    %3 = tpu.matmul %0, %2, %cst {dimension_numbers = #tpu.dot_dimension_numbers<[1], [0], [0], [1], [0, 0, 1, 1], [], []>} : vector<1024x64xbf16>, vector<64x128xbf16>, vector<1024x128xf32> -> vector<1024x128xf32>
    %cst_3 = arith.constant 0.000000e+00 : f32
    %4 = vector.broadcast %cst_3 : f32 to vector<1024x128xf32>
    %5 = arith.maximumf %3, %4 : vector<1024x128xf32>
    %c0_4 = arith.constant 0 : index
    %c0_5 = arith.constant 0 : index
    %6 = vector.load %arg3[%c0_4, %c0_5] : memref<512x1024xbf16, #tpu.memory_space<vmem>>, vector<512x1024xbf16>
    %7 = arith.truncf %5 : vector<1024x128xf32> to vector<1024x128xbf16>
    %cst_6 = arith.constant dense<0.000000e+00> : vector<512x128xf32>
    %8 = tpu.matmul %6, %7, %cst_6 {dimension_numbers = #tpu.dot_dimension_numbers<[1], [0], [0], [1], [0, 0, 1, 1], [], []>} : vector<512x1024xbf16>, vector<1024x128xbf16>, vector<512x128xf32> -> vector<512x128xf32>
    %cst_7 = arith.constant 0.000000e+00 : f32
    %9 = vector.broadcast %cst_7 : f32 to vector<512x128xf32>
    %10 = arith.maximumf %8, %9 : vector<512x128xf32>
    %c0_8 = arith.constant 0 : index
    %c0_9 = arith.constant 0 : index
    %11 = vector.load %arg4[%c0_8, %c0_9] : memref<32x512xbf16, #tpu.memory_space<vmem>>, vector<32x512xbf16>
    %12 = arith.truncf %10 : vector<512x128xf32> to vector<512x128xbf16>
    %cst_10 = arith.constant dense<0.000000e+00> : vector<32x128xf32>
    %13 = tpu.matmul %11, %12, %cst_10 {dimension_numbers = #tpu.dot_dimension_numbers<[1], [0], [0], [1], [0, 0, 1, 1], [], []>} : vector<32x512xbf16>, vector<512x128xbf16>, vector<32x128xf32> -> vector<32x128xf32>
    %cst_11 = arith.constant 0.000000e+00 : f32
    %14 = vector.broadcast %cst_11 : f32 to vector<32x128xf32>
    %15 = arith.maximumf %13, %14 : vector<32x128xf32>
    %c0_12 = arith.constant 0 : index
    %c0_13 = arith.constant 0 : index
    %16 = vector.load %arg5[%c0_12, %c0_13] : memref<32x1xf32, #tpu.memory_space<vmem>>, vector<32x1xf32>
    %17 = vector.broadcast %16 : vector<32x1xf32> to vector<32x128xf32>
    %18 = arith.mulf %15, %17 : vector<32x128xf32>
    %cst_14 = arith.constant dense<0.000000e+00> : vector<128xf32>
    %19 = vector.multi_reduction <add>, %18, %cst_14 [0] : vector<32x128xf32> to vector<128xf32>
    %20 = vector.shape_cast %19 : vector<128xf32> to vector<1x128xf32>
    %c0_15 = arith.constant 0 : index
    %c0_16 = arith.constant 0 : index
    %21 = vector.load %arg6[%c0_15, %c0_16] : memref<1x128xf32, #tpu.memory_space<vmem>>, vector<1x128xf32>
    tpu.vector_store %arg6[%c0_15, %c0_16], %20 {strides = array<i32>} : memref<1x128xf32, #tpu.memory_space<vmem>>, vector<1x128xf32>,
    return
  }
  func.func @transform_0(%arg0: i32) -> (i32, i32) {
    %c0_i32 = arith.constant 0 : i32
    %c0_i32_0 = arith.constant 0 : i32
    return %c0_i32, %arg0 : i32, i32
  }
  func.func @transform_1(%arg0: i32) -> (i32, i32) {
    %c0_i32 = arith.constant 0 : i32
    %c0_i32_0 = arith.constant 0 : i32
    %c0_i32_1 = arith.constant 0 : i32
    return %c0_i32, %c0_i32_0 : i32, i32
  }
  func.func @transform_2(%arg0: i32) -> (i32, i32) {
    %c0_i32 = arith.constant 0 : i32
    %c0_i32_0 = arith.constant 0 : i32
    %c0_i32_1 = arith.constant 0 : i32
    return %c0_i32, %c0_i32_0 : i32, i32
  }
  func.func @transform_3(%arg0: i32) -> (i32, i32) {
    %c0_i32 = arith.constant 0 : i32
    %c0_i32_0 = arith.constant 0 : i32
    %c0_i32_1 = arith.constant 0 : i32
    return %c0_i32, %c0_i32_0 : i32, i32
  }
  func.func @transform_4(%arg0: i32) -> (i32, i32) {
    %c0_i32 = arith.constant 0 : i32
    %c0_i32_0 = arith.constant 0 : i32
    %c0_i32_1 = arith.constant 0 : i32
    return %c0_i32, %c0_i32_0 : i32, i32
  }
  func.func @transform_5(%arg0: i32) -> (i32, i32) {
    %c0_i32 = arith.constant 0 : i32
    %c0_i32_0 = arith.constant 0 : i32
    return %c0_i32, %arg0 : i32, i32
  }
}

</mosaic_0001>

<llo_original>
// kernel: tpu_custom_call.1
$region0: #{tpu_custom_call.1}
  #allocation0 [shape = 'u32[]', space=smem, size = 0x4, offset = 0x4, fixed_abs, tag = 'smem constant byte address 0x4 - core index']
  #allocation1 [shape = 'u32[144,128]{1,0:T(1,128)}', space=vmem, size = 0x12000, scoped, tag = 'internal scratch']
  %s0 = inlined_call_operand.vmem [shape: f32[64,16], index: 0, kind: input, shape index: {}]
  %s1 = inlined_call_operand.vmem [shape: bf16[1024,64], index: 1, kind: input, shape index: {}]
  %s2 = inlined_call_operand.hbm [shape: bf16[512,1024], index: 2, kind: input, shape index: {}]
  %s3 = inlined_call_operand.vmem [shape: bf16[32,512], index: 3, kind: input, shape index: {}]
  %s4 = inlined_call_operand.vmem [shape: f32[32,1], index: 4, kind: input, shape index: {}]
  %s5 = inlined_call_operand.hbm [shape: f32[1,128], index: 5, kind: output, shape index: {}]
  %s6 = sld [smem:[#allocation0]]
  $region34: #{tpu_custom_call.1} parent=0
    _
  %s8 = ssub.s32 1, %s6
  %s9 = scalar_select 0, %s8, %s6
  $region1: #{tpu_custom_call.1} parent=0
    #allocation2 [shape = 'u8[1048576]{0}', space=vmem, size = 0x100000, scoped, tag = 'input window, operand 2, single buffered']
    #allocation3 [shape = 's32[1]{0}', space=sflag, size = 0x4, scoped, tag = 'scoped memory for tpu_custom_call.1']
    #allocation4 [shape = 's32[1]{0}', space=sflag, size = 0x4, scoped, tag = 'scoped memory for tpu_custom_call.1']
    #allocation5 [shape = 'u8[512]{0}', space=vmem, size = 0x400, scoped, tag = 'output window, operand 0, single buffered']
    %10 = vsyncpa [#allocation3], 0
    %11 = vsyncpa [#allocation4], 0
    // Predicated region
    $region2: #{tpu_custom_call.1} parent=1 // pred_check
      _
    $region3: #{tpu_custom_call.1} parent=1 // pred_check_branch
      %13 = sbr.rel (0) target = $region5
    $region4: #{tpu_custom_call.1} parent=1 // pred_region
      _
    $region5: #{tpu_custom_call.1} parent=1 // pred_fallthru
      _
    // Predicated region
    $region6: #{tpu_custom_call.1} parent=1 // pred_check
      _
    $region7: #{tpu_custom_call.1} parent=1 // pred_check_branch
      %15 = sbr.rel (0) target = $region9
    $region8: #{tpu_custom_call.1} parent=1 // pred_region
      _
    $region9: #{tpu_custom_call.1} parent=1 // pred_fallthru
      _
    // Predicated region
    $region10: #{tpu_custom_call.1} parent=1 // pred_check
      _
    $region11: #{tpu_custom_call.1} parent=1 // pred_check_branch
      %17 = sbr.rel (0) target = $region13
    $region12: #{tpu_custom_call.1} parent=1 // pred_region
      %s19 = ssub.s32 32768, 32768
      %20 = vsyncadd [#allocation3], %s19
      %s21 = sshll.u32 [#allocation2], 4
      %s22 = int_to_ptr.vmem [resolvable:$true] %s21
      %27 = dma.hbm_to_vmem [thread:$0]  %s2, 32768, %s22, [#allocation3], 512, 512, 32
    $region13: #{tpu_custom_call.1} parent=1 // pred_fallthru
      _
    // Predicated region
    $region14: #{tpu_custom_call.1} parent=1 // pred_check
      _
    $region15: #{tpu_custom_call.1} parent=1 // pred_check_branch
      %29 = sbr.rel (0) target = $region17
    $region16: #{tpu_custom_call.1} parent=1 // pred_region
      _
    $region17: #{tpu_custom_call.1} parent=1 // pred_fallthru
      _
    // Predicated region
    $region18: #{tpu_custom_call.1} parent=1 // pred_check
      _
    $region19: #{tpu_custom_call.1} parent=1 // pred_check_branch
      %31 = sbr.rel (0) target = $region21
    $region20: #{tpu_custom_call.1} parent=1 // pred_region
      _
    $region21: #{tpu_custom_call.1} parent=1 // pred_fallthru
      _
    // Predicated region
    $region22: #{tpu_custom_call.1} parent=1 // pred_check
      _
    $region23: #{tpu_custom_call.1} parent=1 // pred_check_branch
      %33 = sbr.rel (0) target = $region25
    $region24: #{tpu_custom_call.1} parent=1 // pred_region
      %34 = dma.done [#allocation3], 32768
    $region25: #{tpu_custom_call.1} parent=1 // pred_fallthru
      _
    %v36 = vld [vmem:[%s1] sm:$0xf]
    %v37 = vld [vmem:[%s1 + $0x4] sm:$0xf]
    %v38 = vld [vmem:[%s1 + $0x8] sm:$0xf]
    %v39 = vld [vmem:[%s1 + $0xc] sm:$0xf]
    %v40 = vld [vmem:[%s1 + $0x10] sm:$0xf]
    %v41 = vld [vmem:[%s1 + $0x14] sm:$0xf]
    %v42 = vld [vmem:[%s1 + $0x18] sm:$0xf]
    %v43 = vld [vmem:[%s1 + $0x1c] sm:$0xf]
    %v44 = vld [vmem:[%s1 + $0x20] sm:$0xf]
    %v45 = vld [vmem:[%s1 + $0x24] sm:$0xf]
    %v46 = vld [vmem:[%s1 + $0x28] sm:$0xf]
    %v47 = vld [vmem:[%s1 + $0x2c] sm:$0xf]
    %v48 = vld [vmem:[%s1 + $0x30] sm:$0xf]
    %v49 = vld [vmem:[%s1 + $0x34] sm:$0xf]
    %v50 = vld [vmem:[%s1 + $0x38] sm:$0xf]
    %v51 = vld [vmem:[%s1 + $0x3c] sm:$0xf]
    %v52 = vld [vmem:[%s1 + $0x40] sm:$0xf]
    %v53 = vld [vmem:[%s1 + $0x44] sm:$0xf]
    %v54 = vld [vmem:[%s1 + $0x48] sm:$0xf]
    %v55 = vld [vmem:[%s1 + $0x4c] sm:$0xf]
    %v56 = vld [vmem:[%s1 + $0x50] sm:$0xf]
    %v57 = vld [vmem:[%s1 + $0x54] sm:$0xf]
    %v58 = vld [vmem:[%s1 + $0x58] sm:$0xf]
    %v59 = vld [vmem:[%s1 + $0x5c] sm:$0xf]
    %v60 = vld [vmem:[%s1 + $0x60] sm:$0xf]
    %v61 = vld [vmem:[%s1 + $0x64] sm:$0xf]
    %v62 = vld [vmem:[%s1 + $0x68] sm:$0xf]
    %v63 = vld [vmem:[%s1 + $0x6c] sm:$0xf]
    %v64 = vld [vmem:[%s1 + $0x70] sm:$0xf]
    %v65 = vld [vmem:[%s1 + $0x74] sm:$0xf]
    %v66 = vld [vmem:[%s1 + $0x78] sm:$0xf]
    %v67 = vld [vmem:[%s1 + $0x7c] sm:$0xf]
    %v68 = vld [vmem:[%s1 + $0x80] sm:$0xf]
    %v69 = vld [vmem:[%s1 + $0x84] sm:$0xf]
    %v70 = vld [vmem:[%s1 + $0x88] sm:$0xf]
    %v71 = vld [vmem:[%s1 + $0x8c] sm:$0xf]
    %v72 = vld [vmem:[%s1 + $0x90] sm:$0xf]
    %v73 = vld [vmem:[%s1 + $0x94] sm:$0xf]
    %v74 = vld [vmem:[%s1 + $0x98] sm:$0xf]
    %v75 = vld [vmem:[%s1 + $0x9c] sm:$0xf]
    %v76 = vld [vmem:[%s1 + $0xa0] sm:$0xf]
    %v77 = vld [vmem:[%s1 + $0xa4] sm:$0xf]
    %v78 = vld [vmem:[%s1 + $0xa8] sm:$0xf]
    %v79 = vld [vmem:[%s1 + $0xac] sm:$0xf]
    %v80 = vld [vmem:[%s1 + $0xb0] sm:$0xf]
    %v81 = vld [vmem:[%s1 + $0xb4] sm:$0xf]
    %v82 = vld [vmem:[%s1 + $0xb8] sm:$0xf]
    %v83 = vld [vmem:[%s1 + $0xbc] sm:$0xf]
    %v84 = vld [vmem:[%s1 + $0xc0] sm:$0xf]
    %v85 = vld [vmem:[%s1 + $0xc4] sm:$0xf]
    %v86 = vld [vmem:[%s1 + $0xc8] sm:$0xf]
    %v87 = vld [vmem:[%s1 + $0xcc] sm:$0xf]
    %v88 = vld [vmem:[%s1 + $0xd0] sm:$0xf]
    %v89 = vld [vmem:[%s1 + $0xd4] sm:$0xf]
    %v90 = vld [vmem:[%s1 + $0xd8] sm:$0xf]
    %v91 = vld [vmem:[%s1 + $0xdc] sm:$0xf]
    %v92 = vld [vmem:[%s1 + $0xe0] sm:$0xf]
    %v93 = vld [vmem:[%s1 + $0xe4] sm:$0xf]
    %v94 = vld [vmem:[%s1 + $0xe8] sm:$0xf]
    %v95 = vld [vmem:[%s1 + $0xec] sm:$0xf]
    %v96 = vld [vmem:[%s1 + $0xf0] sm:$0xf]
    %v97 = vld [vmem:[%s1 + $0xf4] sm:$0xf]
    %v98 = vld [vmem:[%s1 + $0xf8] sm:$0xf]
    %v99 = vld [vmem:[%s1 + $0xfc] sm:$0xf]
    %v100 = vld [vmem:[%s1 + $0x100] sm:$0xf]
    %v101 = vld [vmem:[%s1 + $0x104] sm:$0xf]
    %v102 = vld [vmem:[%s1 + $0x108] sm:$0xf]
    %v103 = vld [vmem:[%s1 + $0x10c] sm:$0xf]
    %v104 = vld [vmem:[%s1 + $0x110] sm:$0xf]
    %v105 = vld [vmem:[%s1 + $0x114] sm:$0xf]
    %v106 = vld [vmem:[%s1 + $0x118] sm:$0xf]
    %v107 = vld [vmem:[%s1 + $0x11c] sm:$0xf]
    %v108 = vld [vmem:[%s1 + $0x120] sm:$0xf]
    %v109 = vld [vmem:[%s1 + $0x124] sm:$0xf]
    %v110 = vld [vmem:[%s1 + $0x128] sm:$0xf]
    %v111 = vld [vmem:[%s1 + $0x12c] sm:$0xf]
    %v112 = vld [vmem:[%s1 + $0x130] sm:$0xf]
    %v113 = vld [vmem:[%s1 + $0x134] sm:$0xf]
    %v114 = vld [vmem:[%s1 + $0x138] sm:$0xf]
    %v115 = vld [vmem:[%s1 + $0x13c] sm:$0xf]
    %v116 = vld [vmem:[%s1 + $0x140] sm:$0xf]
    %v117 = vld [vmem:[%s1 + $0x144] sm:$0xf]
    %v118 = vld [vmem:[%s1 + $0x148] sm:$0xf]
    %v119 = vld [vmem:[%s1 + $0x14c] sm:$0xf]
    %v120 = vld [vmem:[%s1 + $0x150] sm:$0xf]
    %v121 = vld [vmem:[%s1 + $0x154] sm:$0xf]
    %v122 = vld [vmem:[%s1 + $0x158] sm:$0xf]
    %v123 = vld [vmem:[%s1 + $0x15c] sm:$0xf]
    %v124 = vld [vmem:[%s1 + $0x160] sm:$0xf]
    %v125 = vld [vmem:[%s1 + $0x164] sm:$0xf]
    %v126 = vld [vmem:[%s1 + $0x168] sm:$0xf]
    %v127 = vld [vmem:[%s1 + $0x16c] sm:$0xf]
    %v128 = vld [vmem:[%s1 + $0x170] sm:$0xf]
    %v129 = vld [vmem:[%s1 + $0x174] sm:$0xf]
    %v130 = vld [vmem:[%s1 + $0x178] sm:$0xf]
    %v131 = vld [vmem:[%s1 + $0x17c] sm:$0xf]
    %v132 = vld [vmem:[%s1 + $0x180] sm:$0xf]
    %v133 = vld [vmem:[%s1 + $0x184] sm:$0xf]
    %v134 = vld [vmem:[%s1 + $0x188] sm:$0xf]
    %v135 = vld [vmem:[%s1 + $0x18c] sm:$0xf]
    %v136 = vld [vmem:[%s1 + $0x190] sm:$0xf]
    %v137 = vld [vmem:[%s1 + $0x194] sm:$0xf]
    %v138 = vld [vmem:[%s1 + $0x198] sm:$0xf]
    %v139 = vld [vmem:[%s1 + $0x19c] sm:$0xf]
    %v140 = vld [vmem:[%s1 + $0x1a0] sm:$0xf]
    %v141 = vld [vmem:[%s1 + $0x1a4] sm:$0xf]
    %v142 = vld [vmem:[%s1 + $0x1a8] sm:$0xf]
    %v143 = vld [vmem:[%s1 + $0x1ac] sm:$0xf]
    %v144 = vld [vmem:[%s1 + $0x1b0] sm:$0xf]
    %v145 = vld [vmem:[%s1 + $0x1b4] sm:$0xf]
    %v146 = vld [vmem:[%s1 + $0x1b8] sm:$0xf]
    %v147 = vld [vmem:[%s1 + $0x1bc] sm:$0xf]
    %v148 = vld [vmem:[%s1 + $0x1c0] sm:$0xf]
    %v149 = vld [vmem:[%s1 + $0x1c4] sm:$0xf]
    %v150 = vld [vmem:[%s1 + $0x1c8] sm:$0xf]
    %v151 = vld [vmem:[%s1 + $0x1cc] sm:$0xf]
    %v152 = vld [vmem:[%s1 + $0x1d0] sm:$0xf]
    %v153 = vld [vmem:[%s1 + $0x1d4] sm:$0xf]
    %v154 = vld [vmem:[%s1 + $0x1d8] sm:$0xf]
    %v155 = vld [vmem:[%s1 + $0x1dc] sm:$0xf]
    %v156 = vld [vmem:[%s1 + $0x1e0] sm:$0xf]
    %v157 = vld [vmem:[%s1 + $0x1e4] sm:$0xf]
    %v158 = vld [vmem:[%s1 + $0x1e8] sm:$0xf]
    %v159 = vld [vmem:[%s1 + $0x1ec] sm:$0xf]
    %v160 = vld [vmem:[%s1 + $0x1f0] sm:$0xf]
    %v161 = vld [vmem:[%s1 + $0x1f4] sm:$0xf]
    %v162 = vld [vmem:[%s1 + $0x1f8] sm:$0xf]
    %v163 = vld [vmem:[%s1 + $0x1fc] sm:$0xf]
    %v164 = vld [vmem:[%s0] sm:$0xff]
    %v165 = vld [vmem:[%s0 + $0x8] sm:$0xff]
    %v166 = vld [vmem:[%s0 + $0x10] sm:$0xff]
    %v167 = vld [vmem:[%s0 + $0x18] sm:$0xff]
    %v168 = vld [vmem:[%s0 + $0x20] sm:$0xff]
    %v169 = vld [vmem:[%s0 + $0x28] sm:$0xff]
    %v170 = vld [vmem:[%s0 + $0x30] sm:$0xff]
    %v171 = vld [vmem:[%s0 + $0x38] sm:$0xff]
    %v172 = vpack.c.bf16 %v165, %v164
    %v173 = vpack.c.bf16 %v167, %v166
    %v174 = vpack.c.bf16 %v169, %v168
    %v175 = vpack.c.bf16 %v171, %v170
    %v304 = vunpack.c.l.b16 %v36
    %v305 = vunpack.c.l.b16 %v37
    %v306 = vunpack.c.l.b16 %v38
    %v307 = vunpack.c.l.b16 %v39
    %v308 = vunpack.c.l.b16 %v40
    %v309 = vunpack.c.l.b16 %v41
    %v310 = vunpack.c.l.b16 %v42
    %v311 = vunpack.c.l.b16 %v43
    %v312 = vunpack.c.l.b16 %v44
    %v313 = vunpack.c.l.b16 %v45
    %v314 = vunpack.c.l.b16 %v46
    %v315 = vunpack.c.l.b16 %v47
    %v316 = vunpack.c.l.b16 %v48
    %v317 = vunpack.c.l.b16 %v49
    %v318 = vunpack.c.l.b16 %v50
    %v319 = vunpack.c.l.b16 %v51
    %v320 = vunpack.c.l.b16 %v52
    %v321 = vunpack.c.l.b16 %v53
    %v322 = vunpack.c.l.b16 %v54
    %v323 = vunpack.c.l.b16 %v55
    %v324 = vunpack.c.l.b16 %v56
    %v325 = vunpack.c.l.b16 %v57
    %v326 = vunpack.c.l.b16 %v58
    %v327 = vunpack.c.l.b16 %v59
    %v328 = vunpack.c.l.b16 %v60
    %v329 = vunpack.c.l.b16 %v61
    %v330 = vunpack.c.l.b16 %v62
    %v331 = vunpack.c.l.b16 %v63
    %v332 = vunpack.c.l.b16 %v64
    %v333 = vunpack.c.l.b16 %v65
    %v334 = vunpack.c.l.b16 %v66
    %v335 = vunpack.c.l.b16 %v67
    %v336 = vunpack.c.l.b16 %v68
    %v337 = vunpack.c.l.b16 %v69
    %v338 = vunpack.c.l.b16 %v70
    %v339 = vunpack.c.l.b16 %v71
    %v340 = vunpack.c.l.b16 %v72
    %v341 = vunpack.c.l.b16 %v73
    %v342 = vunpack.c.l.b16 %v74
    %v343 = vunpack.c.l.b16 %v75
    %v344 = vunpack.c.l.b16 %v76
    %v345 = vunpack.c.l.b16 %v77
    %v346 = vunpack.c.l.b16 %v78
    %v347 = vunpack.c.l.b16 %v79
    %v348 = vunpack.c.l.b16 %v80
    %v349 = vunpack.c.l.b16 %v81
    %v350 = vunpack.c.l.b16 %v82
    %v351 = vunpack.c.l.b16 %v83
    %v352 = vunpack.c.l.b16 %v84
    %v353 = vunpack.c.l.b16 %v85
    %v354 = vunpack.c.l.b16 %v86
    %v355 = vunpack.c.l.b16 %v87
    %v356 = vunpack.c.l.b16 %v88
    %v357 = vunpack.c.l.b16 %v89
    %v358 = vunpack.c.l.b16 %v90
    %v359 = vunpack.c.l.b16 %v91
    %v360 = vunpack.c.l.b16 %v92
    %v361 = vunpack.c.l.b16 %v93
    %v362 = vunpack.c.l.b16 %v94
    %v363 = vunpack.c.l.b16 %v95
    %v364 = vunpack.c.l.b16 %v96
    %v365 = vunpack.c.l.b16 %v97
    %v366 = vunpack.c.l.b16 %v98
    %v367 = vunpack.c.l.b16 %v99
    %v368 = vunpack.c.l.b16 %v100
    %v369 = vunpack.c.l.b16 %v101
    %v370 = vunpack.c.l.b16 %v102
    %v371 = vunpack.c.l.b16 %v103
    %v372 = vunpack.c.l.b16 %v104
    %v373 = vunpack.c.l.b16 %v105
    %v374 = vunpack.c.l.b16 %v106
    %v375 = vunpack.c.l.b16 %v107
    %v376 = vunpack.c.l.b16 %v108
    %v377 = vunpack.c.l.b16 %v109
    %v378 = vunpack.c.l.b16 %v110
    %v379 = vunpack.c.l.b16 %v111
    %v380 = vunpack.c.l.b16 %v112
    %v381 = vunpack.c.l.b16 %v113
    %v382 = vunpack.c.l.b16 %v114
    %v383 = vunpack.c.l.b16 %v115
    %v384 = vunpack.c.l.b16 %v116
    %v385 = vunpack.c.l.b16 %v117
    %v386 = vunpack.c.l.b16 %v118
    %v387 = vunpack.c.l.b16 %v119
    %v388 = vunpack.c.l.b16 %v120
    %v389 = vunpack.c.l.b16 %v121
    %v390 = vunpack.c.l.b16 %v122
    %v391 = vunpack.c.l.b16 %v123
    %v392 = vunpack.c.l.b16 %v124
    %v393 = vunpack.c.l.b16 %v125
    %v394 = vunpack.c.l.b16 %v126
    %v395 = vunpack.c.l.b16 %v127
    %v396 = vunpack.c.l.b16 %v128
    %v397 = vunpack.c.l.b16 %v129
    %v398 = vunpack.c.l.b16 %v130
    %v399 = vunpack.c.l.b16 %v131
    %v400 = vunpack.c.l.b16 %v132
    %v401 = vunpack.c.l.b16 %v133
    %v402 = vunpack.c.l.b16 %v134
    %v403 = vunpack.c.l.b16 %v135
    %v404 = vunpack.c.l.b16 %v136
    %v405 = vunpack.c.l.b16 %v137
    %v406 = vunpack.c.l.b16 %v138
    %v407 = vunpack.c.l.b16 %v139
    %v408 = vunpack.c.l.b16 %v140
    %v409 = vunpack.c.l.b16 %v141
    %v410 = vunpack.c.l.b16 %v142
    %v411 = vunpack.c.l.b16 %v143
    %v412 = vunpack.c.l.b16 %v144
    %v413 = vunpack.c.l.b16 %v145
    %v414 = vunpack.c.l.b16 %v146
    %v415 = vunpack.c.l.b16 %v147
    %v416 = vunpack.c.l.b16 %v148
    %v417 = vunpack.c.l.b16 %v149
    %v418 = vunpack.c.l.b16 %v150
    %v419 = vunpack.c.l.b16 %v151
    %v420 = vunpack.c.l.b16 %v152
    %v421 = vunpack.c.l.b16 %v153
    %v422 = vunpack.c.l.b16 %v154
    %v423 = vunpack.c.l.b16 %v155
    %v424 = vunpack.c.l.b16 %v156
    %v425 = vunpack.c.l.b16 %v157
    %v426 = vunpack.c.l.b16 %v158
    %v427 = vunpack.c.l.b16 %v159
    %v428 = vunpack.c.l.b16 %v160
    %v429 = vunpack.c.l.b16 %v161
    %v430 = vunpack.c.l.b16 %v162
    %v431 = vunpack.c.l.b16 %v163
    %v432 = vpack.c.b16 %v305, %v304
    %v433 = vpack.c.b16 %v307, %v306
    %v434 = vpack.c.b16 %v309, %v308
    %v435 = vpack.c.b16 %v311, %v310
    %v436 = vpack.c.b16 %v313, %v312
    %v437 = vpack.c.b16 %v315, %v314
    %v438 = vpack.c.b16 %v317, %v316
    %v439 = vpack.c.b16 %v319, %v318
    %v440 = vpack.c.b16 %v321, %v320
    %v441 = vpack.c.b16 %v323, %v322
    %v442 = vpack.c.b16 %v325, %v324
    %v443 = vpack.c.b16 %v327, %v326
    %v444 = vpack.c.b16 %v329, %v328
    %v445 = vpack.c.b16 %v331, %v330
    %v446 = vpack.c.b16 %v333, %v332
    %v447 = vpack.c.b16 %v335, %v334
    %v448 = vpack.c.b16 %v337, %v336
    %v449 = vpack.c.b16 %v339, %v338
    %v450 = vpack.c.b16 %v341, %v340
    %v451 = vpack.c.b16 %v343, %v342
    %v452 = vpack.c.b16 %v345, %v344
    %v453 = vpack.c.b16 %v347, %v346
    %v454 = vpack.c.b16 %v349, %v348
    %v455 = vpack.c.b16 %v351, %v350
    %v456 = vpack.c.b16 %v353, %v352
    %v457 = vpack.c.b16 %v355, %v354
    %v458 = vpack.c.b16 %v357, %v356
    %v459 = vpack.c.b16 %v359, %v358
    %v460 = vpack.c.b16 %v361, %v360
    %v461 = vpack.c.b16 %v363, %v362
    %v462 = vpack.c.b16 %v365, %v364
    %v463 = vpack.c.b16 %v367, %v366
    %v464 = vpack.c.b16 %v369, %v368
    %v465 = vpack.c.b16 %v371, %v370
    %v466 = vpack.c.b16 %v373, %v372
    %v467 = vpack.c.b16 %v375, %v374
    %v468 = vpack.c.b16 %v377, %v376
    %v469 = vpack.c.b16 %v379, %v378
    %v470 = vpack.c.b16 %v381, %v380
    %v471 = vpack.c.b16 %v383, %v382
    %v472 = vpack.c.b16 %v385, %v384
    %v473 = vpack.c.b16 %v387, %v386
    %v474 = vpack.c.b16 %v389, %v388
    %v475 = vpack.c.b16 %v391, %v390
    %v476 = vpack.c.b16 %v393, %v392
    %v477 = vpack.c.b16 %v395, %v394
    %v478 = vpack.c.b16 %v397, %v396
    %v479 = vpack.c.b16 %v399, %v398
    %v480 = vpack.c.b16 %v401, %v400
    %v481 = vpack.c.b16 %v403, %v402
    %v482 = vpack.c.b16 %v405, %v404
    %v483 = vpack.c.b16 %v407, %v406
    %v484 = vpack.c.b16 %v409, %v408
    %v485 = vpack.c.b16 %v411, %v410
    %v486 = vpack.c.b16 %v413, %v412
    %v487 = vpack.c.b16 %v415, %v414
    %v488 = vpack.c.b16 %v417, %v416
    %v489 = vpack.c.b16 %v419, %v418
    %v490 = vpack.c.b16 %v421, %v420
    %v491 = vpack.c.b16 %v423, %v422
    %v492 = vpack.c.b16 %v425, %v424
    %v493 = vpack.c.b16 %v427, %v426
    %v494 = vpack.c.b16 %v429, %v428
    %v495 = vpack.c.b16 %v431, %v430
    %vm496 = vcmask 523264
    %v498 = vsel %vm496, %v432, 0
    %v501 = vsel %vm496, %v433, 0
    %v504 = vsel %vm496, %v434, 0
    %v507 = vsel %vm496, %v435, 0
    %v510 = vsel %vm496, %v436, 0
    %v513 = vsel %vm496, %v437, 0
    %v516 = vsel %vm496, %v438, 0
    %v519 = vsel %vm496, %v439, 0
    %v522 = vsel %vm496, %v440, 0
    %v525 = vsel %vm496, %v441, 0
    %v528 = vsel %vm496, %v442, 0
    %v531 = vsel %vm496, %v443, 0
    %v534 = vsel %vm496, %v444, 0
    %v537 = vsel %vm496, %v445, 0
    %v540 = vsel %vm496, %v446, 0
    %v543 = vsel %vm496, %v447, 0
    %v546 = vsel %vm496, %v448, 0
    %v549 = vsel %vm496, %v449, 0
    %v552 = vsel %vm496, %v450, 0
    %v555 = vsel %vm496, %v451, 0
    %v558 = vsel %vm496, %v452, 0
    %v561 = vsel %vm496, %v453, 0
    %v564 = vsel %vm496, %v454, 0
    %v567 = vsel %vm496, %v455, 0
    %v570 = vsel %vm496, %v456, 0
    %v573 = vsel %vm496, %v457, 0
    %v576 = vsel %vm496, %v458, 0
    %v579 = vsel %vm496, %v459, 0
    %v582 = vsel %vm496, %v460, 0
    %v585 = vsel %vm496, %v461, 0
    %v588 = vsel %vm496, %v462, 0
    %v591 = vsel %vm496, %v463, 0
    %v594 = vsel %vm496, %v464, 0
    %v597 = vsel %vm496, %v465, 0
    %v600 = vsel %vm496, %v466, 0
    %v603 = vsel %vm496, %v467, 0
    %v606 = vsel %vm496, %v468, 0
    %v609 = vsel %vm496, %v469, 0
    %v612 = vsel %vm496, %v470, 0
    %v615 = vsel %vm496, %v471, 0
    %v618 = vsel %vm496, %v472, 0
    %v621 = vsel %vm496, %v473, 0
    %v624 = vsel %vm496, %v474, 0
    %v627 = vsel %vm496, %v475, 0
    %v630 = vsel %vm496, %v476, 0
    %v633 = vsel %vm496, %v477, 0
    %v636 = vsel %vm496, %v478, 0
    %v639 = vsel %vm496, %v479, 0
    %v642 = vsel %vm496, %v480, 0
    %v645 = vsel %vm496, %v481, 0
    %v648 = vsel %vm496, %v482, 0
    %v651 = vsel %vm496, %v483, 0
    %v654 = vsel %vm496, %v484, 0
    %v657 = vsel %vm496, %v485, 0
    %v660 = vsel %vm496, %v486, 0
    %v663 = vsel %vm496, %v487, 0
    %v666 = vsel %vm496, %v488, 0
    %v669 = vsel %vm496, %v489, 0
    %v672 = vsel %vm496, %v490, 0
    %v675 = vsel %vm496, %v491, 0
    %v678 = vsel %vm496, %v492, 0
    %v681 = vsel %vm496, %v493, 0
    %v684 = vsel %vm496, %v494, 0
    %v687 = vsel %vm496, %v495, 0
    %689 = vmatprep.subr.bf16.mxu0 0
    %690 = vmatpush1.bf16.msra.mxu0 %v172
    %691 = vmatprep.subr.bf16.mxu0 0
    %692 = vmatpush1.bf16.msra.mxu0 %v173
    %693 = vmatprep.subr.bf16.mxu0 0
    %694 = vmatpush1.bf16.msra.mxu0 %v174
    %695 = vmatprep.subr.bf16.mxu0 0
    %696 = vmatpush1.bf16.msra.mxu0 %v175
    %697 = vmatprep.subr.bf16.mxu0 0
    %698 = vmatpush1.bf16.msra.mxu0 0
    %699 = vmatprep.subr.bf16.mxu0 0
    %700 = vmatpush1.bf16.msra.mxu0 0
    %701 = vmatprep.subr.bf16.mxu0 0
    %702 = vmatpush1.bf16.msra.mxu0 0
    %703 = vmatprep.subr.bf16.mxu0 0
    %704 = vmatpush1.bf16.msra.mxu0 0
    %705 = vmatprep.subr.bf16.mxu0 0
    %706 = vmatpush1.bf16.msra.mxu0 0
    %707 = vmatprep.subr.bf16.mxu0 0
    %708 = vmatpush1.bf16.msra.mxu0 0
    %709 = vmatprep.subr.bf16.mxu0 0
    %710 = vmatpush1.bf16.msra.mxu0 0
    %711 = vmatprep.subr.bf16.mxu0 0
    %712 = vmatpush1.bf16.msra.mxu0 0
    %713 = vmatprep.subr.bf16.mxu0 0
    %714 = vmatpush1.bf16.msra.mxu0 0
    %715 = vmatprep.subr.bf16.mxu0 0
    %716 = vmatpush1.bf16.msra.mxu0 0
    %717 = vmatprep.subr.bf16.mxu0 0
    %718 = vmatpush1.bf16.msra.mxu0 0
    %719 = vmatprep.subr.bf16.mxu0 0
    %720 = vmatpush1.bf16.msra.mxu0 0
    %721 = vmatprep.mubr.bf16.mxu0 0
    %722 = vmatmul.mubr.bf16.gmra.mrb[0].mxu0 %v498
    %v723 = vpop.f32.mrb[0].mxu0
    %v724 = vadd.f32 0.0, %v723
    %v725 = vpop.f32.mrb[0].mxu0
    %v726 = vpop.f32.mrb[0].mxu0
    %v727 = vadd.f32 0.0, %v726
    %v728 = vpop.f32.mrb[0].mxu0
    %729 = vmatprep.mubr.bf16.mxu0 0
    %730 = vmatmul.mubr.bf16.gmra.mrb[0].mxu0 %v501
    %v731 = vpop.f32.mrb[0].mxu0
    %v732 = vadd.f32 0.0, %v731
    %v733 = vpop.f32.mrb[0].mxu0
    %v734 = vpop.f32.mrb[0].mxu0
    %v735 = vadd.f32 0.0, %v734
    %v736 = vpop.f32.mrb[0].mxu0
    %737 = vmatprep.mubr.bf16.mxu0 0
    %738 = vmatmul.mubr.bf16.gmra.mrb[0].mxu0 %v504
    %v739 = vpop.f32.mrb[0].mxu0
    %v740 = vadd.f32 0.0, %v739
    %v741 = vpop.f32.mrb[0].mxu0
    %v742 = vpop.f32.mrb[0].mxu0
    %v743 = vadd.f32 0.0, %v742
    %v744 = vpop.f32.mrb[0].mxu0
    %745 = vmatprep.mubr.bf16.mxu0 0
    %746 = vmatmul.mubr.bf16.gmra.mrb[0].mxu0 %v507
    %v747 = vpop.f32.mrb[0].mxu0
    %v748 = vadd.f32 0.0, %v747
    %v749 = vpop.f32.mrb[0].mxu0
    %v750 = vpop.f32.mrb[0].mxu0
    %v751 = vadd.f32 0.0, %v750
    %v752 = vpop.f32.mrb[0].mxu0
    %753 = vmatprep.mubr.bf16.mxu0 0
    %754 = vmatmul.mubr.bf16.gmra.mrb[0].mxu0 %v510
    %v755 = vpop.f32.mrb[0].mxu0
    %v756 = vadd.f32 0.0, %v755
    %v757 = vpop.f32.mrb[0].mxu0
    %v758 = vpop.f32.mrb[0].mxu0
    %v759 = vadd.f32 0.0, %v758
    %v760 = vpop.f32.mrb[0].mxu0
    %761 = vmatprep.mubr.bf16.mxu0 0
    %762 = vmatmul.mubr.bf16.gmra.mrb[0].mxu0 %v513
    %v763 = vpop.f32.mrb[0].mxu0
    %v764 = vadd.f32 0.0, %v763
    %v765 = vpop.f32.mrb[0].mxu0
    %v766 = vpop.f32.mrb[0].mxu0
    %v767 = vadd.f32 0.0, %v766
    %v768 = vpop.f32.mrb[0].mxu0
    %769 = vmatprep.mubr.bf16.mxu0 0
    %770 = vmatmul.mubr.bf16.gmra.mrb[0].mxu0 %v516
    %v771 = vpop.f32.mrb[0].mxu0
    %v772 = vadd.f32 0.0, %v771
    %v773 = vpop.f32.mrb[0].mxu0
    %v774 = vpop.f32.mrb[0].mxu0
    %v775 = vadd.f32 0.0, %v774
    %v776 = vpop.f32.mrb[0].mxu0
    %777 = vmatprep.mubr.bf16.mxu0 0
    %778 = vmatmul.mubr.bf16.gmra.mrb[0].mxu0 %v519
    %v779 = vpop.f32.mrb[0].mxu0
    %v780 = vadd.f32 0.0, %v779
    %v781 = vpop.f32.mrb[0].mxu0
    %v782 = vpop.f32.mrb[0].mxu0
    %v783 = vadd.f32 0.0, %v782
    %v784 = vpop.f32.mrb[0].mxu0
    %785 = vmatprep.mubr.bf16.mxu0 0
    %786 = vmatmul.mubr.bf16.gmra.mrb[0].mxu0 %v522
    %v787 = vpop.f32.mrb[0].mxu0
    %v788 = vadd.f32 0.0, %v787
    %v789 = vpop.f32.mrb[0].mxu0
    %v790 = vpop.f32.mrb[0].mxu0
    %v791 = vadd.f32 0.0, %v790
    %v792 = vpop.f32.mrb[0].mxu0
    %793 = vmatprep.mubr.bf16.mxu0 0
    %794 = vmatmul.mubr.bf16.gmra.mrb[0].mxu0 %v525
    %v795 = vpop.f32.mrb[0].mxu0
    %v796 = vadd.f32 0.0, %v795
    %v797 = vpop.f32.mrb[0].mxu0
    %v798 = vpop.f32.mrb[0].mxu0
    %v799 = vadd.f32 0.0, %v798
    %v800 = vpop.f32.mrb[0].mxu0
    %801 = vmatprep.mubr.bf16.mxu0 0
    %802 = vmatmul.mubr.bf16.gmra.mrb[0].mxu0 %v528
    %v803 = vpop.f32.mrb[0].mxu0
    %v804 = vadd.f32 0.0, %v803
    %v805 = vpop.f32.mrb[0].mxu0
    %v806 = vpop.f32.mrb[0].mxu0
    %v807 = vadd.f32 0.0, %v806
    %v808 = vpop.f32.mrb[0].mxu0
    %809 = vmatprep.mubr.bf16.mxu0 0
    %810 = vmatmul.mubr.bf16.gmra.mrb[0].mxu0 %v531
    %v811 = vpop.f32.mrb[0].mxu0
    %v812 = vadd.f32 0.0, %v811
    %v813 = vpop.f32.mrb[0].mxu0
    %v814 = vpop.f32.mrb[0].mxu0
    %v815 = vadd.f32 0.0, %v814
    %v816 = vpop.f32.mrb[0].mxu0
    %817 = vmatprep.mubr.bf16.mxu0 0
    %818 = vmatmul.mubr.bf16.gmra.mrb[0].mxu0 %v534
    %v819 = vpop.f32.mrb[0].mxu0
    %v820 = vadd.f32 0.0, %v819
    %v821 = vpop.f32.mrb[0].mxu0
    %v822 = vpop.f32.mrb[0].mxu0
    %v823 = vadd.f32 0.0, %v822
    %v824 = vpop.f32.mrb[0].mxu0
    %825 = vmatprep.mubr.bf16.mxu0 0
    %826 = vmatmul.mubr.bf16.gmra.mrb[0].mxu0 %v537
    %v827 = vpop.f32.mrb[0].mxu0
    %v828 = vadd.f32 0.0, %v827
    %v829 = vpop.f32.mrb[0].mxu0
    %v830 = vpop.f32.mrb[0].mxu0
    %v831 = vadd.f32 0.0, %v830
    %v832 = vpop.f32.mrb[0].mxu0
    %833 = vmatprep.mubr.bf16.mxu0 0
    %834 = vmatmul.mubr.bf16.gmra.mrb[0].mxu0 %v540
    %v835 = vpop.f32.mrb[0].mxu0
    %v836 = vadd.f32 0.0, %v835
    %v837 = vpop.f32.mrb[0].mxu0
    %v838 = vpop.f32.mrb[0].mxu0
    %v839 = vadd.f32 0.0, %v838
    %v840 = vpop.f32.mrb[0].mxu0
    %841 = vmatprep.mubr.bf16.mxu0 0
    %842 = vmatmul.mubr.bf16.gmra.mrb[0].mxu0 %v543
    %v843 = vpop.f32.mrb[0].mxu0
    %v844 = vadd.f32 0.0, %v843
    %v845 = vpop.f32.mrb[0].mxu0
    %v846 = vpop.f32.mrb[0].mxu0
    %v847 = vadd.f32 0.0, %v846
    %v848 = vpop.f32.mrb[0].mxu0
    %849 = vmatprep.mubr.bf16.mxu0 0
    %850 = vmatmul.mubr.bf16.gmra.mrb[0].mxu0 %v546
    %v851 = vpop.f32.mrb[0].mxu0
    %v852 = vadd.f32 0.0, %v851
    %v853 = vpop.f32.mrb[0].mxu0
    %v854 = vpop.f32.mrb[0].mxu0
    %v855 = vadd.f32 0.0, %v854
    %v856 = vpop.f32.mrb[0].mxu0
    %857 = vmatprep.mubr.bf16.mxu0 0
    %858 = vmatmul.mubr.bf16.gmra.mrb[0].mxu0 %v549
    %v859 = vpop.f32.mrb[0].mxu0
    %v860 = vadd.f32 0.0, %v859
    %v861 = vpop.f32.mrb[0].mxu0
    %v862 = vpop.f32.mrb[0].mxu0
    %v863 = vadd.f32 0.0, %v862
    %v864 = vpop.f32.mrb[0].mxu0
    %865 = vmatprep.mubr.bf16.mxu0 0
    %866 = vmatmul.mubr.bf16.gmra.mrb[0].mxu0 %v552
    %v867 = vpop.f32.mrb[0].mxu0
    %v868 = vadd.f32 0.0, %v867
    %v869 = vpop.f32.mrb[0].mxu0
    %v870 = vpop.f32.mrb[0].mxu0
    %v871 = vadd.f32 0.0, %v870
    %v872 = vpop.f32.mrb[0].mxu0
    %873 = vmatprep.mubr.bf16.mxu0 0
    %874 = vmatmul.mubr.bf16.gmra.mrb[0].mxu0 %v555
    %v875 = vpop.f32.mrb[0].mxu0
    %v876 = vadd.f32 0.0, %v875
    %v877 = vpop.f32.mrb[0].mxu0
    %v878 = vpop.f32.mrb[0].mxu0
    %v879 = vadd.f32 0.0, %v878
    %v880 = vpop.f32.mrb[0].mxu0
    %881 = vmatprep.mubr.bf16.mxu0 0
    %882 = vmatmul.mubr.bf16.gmra.mrb[0].mxu0 %v558
    %v883 = vpop.f32.mrb[0].mxu0
    %v884 = vadd.f32 0.0, %v883
    %v885 = vpop.f32.mrb[0].mxu0
    %v886 = vpop.f32.mrb[0].mxu0
    %v887 = vadd.f32 0.0, %v886
    %v888 = vpop.f32.mrb[0].mxu0
    %889 = vmatprep.mubr.bf16.mxu0 0
    %890 = vmatmul.mubr.bf16.gmra.mrb[0].mxu0 %v561
    %v891 = vpop.f32.mrb[0].mxu0
    %v892 = vadd.f32 0.0, %v891
    %v893 = vpop.f32.mrb[0].mxu0
    %v894 = vpop.f32.mrb[0].mxu0
    %v895 = vadd.f32 0.0, %v894
    %v896 = vpop.f32.mrb[0].mxu0
    %897 = vmatprep.mubr.bf16.mxu0 0
    %898 = vmatmul.mubr.bf16.gmra.mrb[0].mxu0 %v564
    %v899 = vpop.f32.mrb[0].mxu0
    %v900 = vadd.f32 0.0, %v899
    %v901 = vpop.f32.mrb[0].mxu0
    %v902 = vpop.f32.mrb[0].mxu0
    %v903 = vadd.f32 0.0, %v902
    %v904 = vpop.f32.mrb[0].mxu0
    %905 = vmatprep.mubr.bf16.mxu0 0
    %906 = vmatmul.mubr.bf16.gmra.mrb[0].mxu0 %v567
    %v907 = vpop.f32.mrb[0].mxu0
    %v908 = vadd.f32 0.0, %v907
    %v909 = vpop.f32.mrb[0].mxu0
    %v910 = vpop.f32.mrb[0].mxu0
    %v911 = vadd.f32 0.0, %v910
    %v912 = vpop.f32.mrb[0].mxu0
    %913 = vmatprep.mubr.bf16.mxu0 0
    %914 = vmatmul.mubr.bf16.gmra.mrb[0].mxu0 %v570
    %v915 = vpop.f32.mrb[0].mxu0
    %v916 = vadd.f32 0.0, %v915
    %v917 = vpop.f32.mrb[0].mxu0
    %v918 = vpop.f32.mrb[0].mxu0
    %v919 = vadd.f32 0.0, %v918
    %v920 = vpop.f32.mrb[0].mxu0
    %921 = vmatprep.mubr.bf16.mxu0 0
    %922 = vmatmul.mubr.bf16.gmra.mrb[0].mxu0 %v573
    %v923 = vpop.f32.mrb[0].mxu0
    %v924 = vadd.f32 0.0, %v923
    %v925 = vpop.f32.mrb[0].mxu0
    %v926 = vpop.f32.mrb[0].mxu0
    %v927 = vadd.f32 0.0, %v926
    %v928 = vpop.f32.mrb[0].mxu0
    %929 = vmatprep.mubr.bf16.mxu0 0
    %930 = vmatmul.mubr.bf16.gmra.mrb[0].mxu0 %v576
    %v931 = vpop.f32.mrb[0].mxu0
    %v932 = vadd.f32 0.0, %v931
    %v933 = vpop.f32.mrb[0].mxu0
    %v934 = vpop.f32.mrb[0].mxu0
    %v935 = vadd.f32 0.0, %v934
    %v936 = vpop.f32.mrb[0].mxu0
    %937 = vmatprep.mubr.bf16.mxu0 0
    %938 = vmatmul.mubr.bf16.gmra.mrb[0].mxu0 %v579
    %v939 = vpop.f32.mrb[0].mxu0
    %v940 = vadd.f32 0.0, %v939
    %v941 = vpop.f32.mrb[0].mxu0
    %v942 = vpop.f32.mrb[0].mxu0
    %v943 = vadd.f32 0.0, %v942
    %v944 = vpop.f32.mrb[0].mxu0
    %945 = vmatprep.mubr.bf16.mxu0 0
    %946 = vmatmul.mubr.bf16.gmra.mrb[0].mxu0 %v582
    %v947 = vpop.f32.mrb[0].mxu0
    %v948 = vadd.f32 0.0, %v947
    %v949 = vpop.f32.mrb[0].mxu0
    %v950 = vpop.f32.mrb[0].mxu0
    %v951 = vadd.f32 0.0, %v950
    %v952 = vpop.f32.mrb[0].mxu0
    %953 = vmatprep.mubr.bf16.mxu0 0
    %954 = vmatmul.mubr.bf16.gmra.mrb[0].mxu0 %v585
    %v955 = vpop.f32.mrb[0].mxu0
    %v956 = vadd.f32 0.0, %v955
    %v957 = vpop.f32.mrb[0].mxu0
    %v958 = vpop.f32.mrb[0].mxu0
    %v959 = vadd.f32 0.0, %v958
    %v960 = vpop.f32.mrb[0].mxu0
    %961 = vmatprep.mubr.bf16.mxu0 0
    %962 = vmatmul.mubr.bf16.gmra.mrb[0].mxu0 %v588
    %v963 = vpop.f32.mrb[0].mxu0
    %v964 = vadd.f32 0.0, %v963
    %v965 = vpop.f32.mrb[0].mxu0
    %v966 = vpop.f32.mrb[0].mxu0
    %v967 = vadd.f32 0.0, %v966
    %v968 = vpop.f32.mrb[0].mxu0
    %969 = vmatprep.mubr.bf16.mxu0 0
    %970 = vmatmul.mubr.bf16.gmra.mrb[0].mxu0 %v591
    %v971 = vpop.f32.mrb[0].mxu0
    %v972 = vadd.f32 0.0, %v971
    %v973 = vpop.f32.mrb[0].mxu0
    %v974 = vpop.f32.mrb[0].mxu0
    %v975 = vadd.f32 0.0, %v974
    %v976 = vpop.f32.mrb[0].mxu0
    %977 = vmatprep.mubr.bf16.mxu0 0
    %978 = vmatmul.mubr.bf16.gmra.mrb[0].mxu0 %v594
    %v979 = vpop.f32.mrb[0].mxu0
    %v980 = vadd.f32 0.0, %v979
    %v981 = vpop.f32.mrb[0].mxu0
    %v982 = vpop.f32.mrb[0].mxu0
    %v983 = vadd.f32 0.0, %v982
    %v984 = vpop.f32.mrb[0].mxu0
    %985 = vmatprep.mubr.bf16.mxu0 0
    %986 = vmatmul.mubr.bf16.gmra.mrb[0].mxu0 %v597
    %v987 = vpop.f32.mrb[0].mxu0
    %v988 = vadd.f32 0.0, %v987
    %v989 = vpop.f32.mrb[0].mxu0
    %v990 = vpop.f32.mrb[0].mxu0
    %v991 = vadd.f32 0.0, %v990
    %v992 = vpop.f32.mrb[0].mxu0
    %993 = vmatprep.mubr.bf16.mxu0 0
    %994 = vmatmul.mubr.bf16.gmra.mrb[0].mxu0 %v600
    %v995 = vpop.f32.mrb[0].mxu0
    %v996 = vadd.f32 0.0, %v995
    %v997 = vpop.f32.mrb[0].mxu0
    %v998 = vpop.f32.mrb[0].mxu0
    %v999 = vadd.f32 0.0, %v998
    %v1000 = vpop.f32.mrb[0].mxu0
    %1001 = vmatprep.mubr.bf16.mxu0 0
    %1002 = vmatmul.mubr.bf16.gmra.mrb[0].mxu0 %v603
    %v1003 = vpop.f32.mrb[0].mxu0
    %v1004 = vadd.f32 0.0, %v1003
    %v1005 = vpop.f32.mrb[0].mxu0
    %v1006 = vpop.f32.mrb[0].mxu0
    %v1007 = vadd.f32 0.0, %v1006
    %v1008 = vpop.f32.mrb[0].mxu0
    %1009 = vmatprep.mubr.bf16.mxu0 0
    %1010 = vmatmul.mubr.bf16.gmra.mrb[0].mxu0 %v606
    %v1011 = vpop.f32.mrb[0].mxu0
    %v1012 = vadd.f32 0.0, %v1011
    %v1013 = vpop.f32.mrb[0].mxu0
    %v1014 = vpop.f32.mrb[0].mxu0
    %v1015 = vadd.f32 0.0, %v1014
    %v1016 = vpop.f32.mrb[0].mxu0
    %1017 = vmatprep.mubr.bf16.mxu0 0
    %1018 = vmatmul.mubr.bf16.gmra.mrb[0].mxu0 %v609
    %v1019 = vpop.f32.mrb[0].mxu0
    %v1020 = vadd.f32 0.0, %v1019
    %v1021 = vpop.f32.mrb[0].mxu0
    %v1022 = vpop.f32.mrb[0].mxu0
    %v1023 = vadd.f32 0.0, %v1022
    %v1024 = vpop.f32.mrb[0].mxu0
    %1025 = vmatprep.mubr.bf16.mxu0 0
    %1026 = vmatmul.mubr.bf16.gmra.mrb[0].mxu0 %v612
    %v1027 = vpop.f32.mrb[0].mxu0
    %v1028 = vadd.f32 0.0, %v1027
    %v1029 = vpop.f32.mrb[0].mxu0
    %v1030 = vpop.f32.mrb[0].mxu0
    %v1031 = vadd.f32 0.0, %v1030
    %v1032 = vpop.f32.mrb[0].mxu0
    %1033 = vmatprep.mubr.bf16.mxu0 0
    %1034 = vmatmul.mubr.bf16.gmra.mrb[0].mxu0 %v615
    %v1035 = vpop.f32.mrb[0].mxu0
    %v1036 = vadd.f32 0.0, %v1035
    %v1037 = vpop.f32.mrb[0].mxu0
    %v1038 = vpop.f32.mrb[0].mxu0
    %v1039 = vadd.f32 0.0, %v1038
    %v1040 = vpop.f32.mrb[0].mxu0
    %1041 = vmatprep.mubr.bf16.mxu0 0
    %1042 = vmatmul.mubr.bf16.gmra.mrb[0].mxu0 %v618
    %v1043 = vpop.f32.mrb[0].mxu0
    %v1044 = vadd.f32 0.0, %v1043
    %v1045 = vpop.f32.mrb[0].mxu0
    %v1046 = vpop.f32.mrb[0].mxu0
    %v1047 = vadd.f32 0.0, %v1046
    %v1048 = vpop.f32.mrb[0].mxu0
    %1049 = vmatprep.mubr.bf16.mxu0 0
    %1050 = vmatmul.mubr.bf16.gmra.mrb[0].mxu0 %v621
    %v1051 = vpop.f32.mrb[0].mxu0
    %v1052 = vadd.f32 0.0, %v1051
    %v1053 = vpop.f32.mrb[0].mxu0
    %v1054 = vpop.f32.mrb[0].mxu0
    %v1055 = vadd.f32 0.0, %v1054
    %v1056 = vpop.f32.mrb[0].mxu0
    %1057 = vmatprep.mubr.bf16.mxu0 0
    %1058 = vmatmul.mubr.bf16.gmra.mrb[0].mxu0 %v624
    %v1059 = vpop.f32.mrb[0].mxu0
    %v1060 = vadd.f32 0.0, %v1059
    %v1061 = vpop.f32.mrb[0].mxu0
    %v1062 = vpop.f32.mrb[0].mxu0
    %v1063 = vadd.f32 0.0, %v1062
    %v1064 = vpop.f32.mrb[0].mxu0
    %1065 = vmatprep.mubr.bf16.mxu0 0
    %1066 = vmatmul.mubr.bf16.gmra.mrb[0].mxu0 %v627
    %v1067 = vpop.f32.mrb[0].mxu0
    %v1068 = vadd.f32 0.0, %v1067
    %v1069 = vpop.f32.mrb[0].mxu0
    %v1070 = vpop.f32.mrb[0].mxu0
    %v1071 = vadd.f32 0.0, %v1070
    %v1072 = vpop.f32.mrb[0].mxu0
    %1073 = vmatprep.mubr.bf16.mxu0 0
    %1074 = vmatmul.mubr.bf16.gmra.mrb[0].mxu0 %v630
    %v1075 = vpop.f32.mrb[0].mxu0
    %v1076 = vadd.f32 0.0, %v1075
    %v1077 = vpop.f32.mrb[0].mxu0
    %v1078 = vpop.f32.mrb[0].mxu0
    %v1079 = vadd.f32 0.0, %v1078
    %v1080 = vpop.f32.mrb[0].mxu0
    %1081 = vmatprep.mubr.bf16.mxu0 0
    %1082 = vmatmul.mubr.bf16.gmra.mrb[0].mxu0 %v633
    %v1083 = vpop.f32.mrb[0].mxu0
    %v1084 = vadd.f32 0.0, %v1083
    %v1085 = vpop.f32.mrb[0].mxu0
    %v1086 = vpop.f32.mrb[0].mxu0
    %v1087 = vadd.f32 0.0, %v1086
    %v1088 = vpop.f32.mrb[0].mxu0
    %1089 = vmatprep.mubr.bf16.mxu0 0
    %1090 = vmatmul.mubr.bf16.gmra.mrb[0].mxu0 %v636
    %v1091 = vpop.f32.mrb[0].mxu0
    %v1092 = vadd.f32 0.0, %v1091
    %v1093 = vpop.f32.mrb[0].mxu0
    %v1094 = vpop.f32.mrb[0].mxu0
    %v1095 = vadd.f32 0.0, %v1094
    %v1096 = vpop.f32.mrb[0].mxu0
    %1097 = vmatprep.mubr.bf16.mxu0 0
    %1098 = vmatmul.mubr.bf16.gmra.mrb[0].mxu0 %v639
    %v1099 = vpop.f32.mrb[0].mxu0
    %v1100 = vadd.f32 0.0, %v1099
    %v1101 = vpop.f32.mrb[0].mxu0
    %v1102 = vpop.f32.mrb[0].mxu0
    %v1103 = vadd.f32 0.0, %v1102
    %v1104 = vpop.f32.mrb[0].mxu0
    %1105 = vmatprep.mubr.bf16.mxu0 0
    %1106 = vmatmul.mubr.bf16.gmra.mrb[0].mxu0 %v642
    %v1107 = vpop.f32.mrb[0].mxu0
    %v1108 = vadd.f32 0.0, %v1107
    %v1109 = vpop.f32.mrb[0].mxu0
    %v1110 = vpop.f32.mrb[0].mxu0
    %v1111 = vadd.f32 0.0, %v1110
    %v1112 = vpop.f32.mrb[0].mxu0
    %1113 = vmatprep.mubr.bf16.mxu0 0
    %1114 = vmatmul.mubr.bf16.gmra.mrb[0].mxu0 %v645
    %v1115 = vpop.f32.mrb[0].mxu0
    %v1116 = vadd.f32 0.0, %v1115
    %v1117 = vpop.f32.mrb[0].mxu0
    %v1118 = vpop.f32.mrb[0].mxu0
    %v1119 = vadd.f32 0.0, %v1118
    %v1120 = vpop.f32.mrb[0].mxu0
    %1121 = vmatprep.mubr.bf16.mxu0 0
    %1122 = vmatmul.mubr.bf16.gmra.mrb[0].mxu0 %v648
    %v1123 = vpop.f32.mrb[0].mxu0
    %v1124 = vadd.f32 0.0, %v1123
    %v1125 = vpop.f32.mrb[0].mxu0
    %v1126 = vpop.f32.mrb[0].mxu0
    %v1127 = vadd.f32 0.0, %v1126
    %v1128 = vpop.f32.mrb[0].mxu0
    %1129 = vmatprep.mubr.bf16.mxu0 0
    %1130 = vmatmul.mubr.bf16.gmra.mrb[0].mxu0 %v651
    %v1131 = vpop.f32.mrb[0].mxu0
    %v1132 = vadd.f32 0.0, %v1131
    %v1133 = vpop.f32.mrb[0].mxu0
    %v1134 = vpop.f32.mrb[0].mxu0
    %v1135 = vadd.f32 0.0, %v1134
    %v1136 = vpop.f32.mrb[0].mxu0
    %1137 = vmatprep.mubr.bf16.mxu0 0
    %1138 = vmatmul.mubr.bf16.gmra.mrb[0].mxu0 %v654
    %v1139 = vpop.f32.mrb[0].mxu0
    %v1140 = vadd.f32 0.0, %v1139
    %v1141 = vpop.f32.mrb[0].mxu0
    %v1142 = vpop.f32.mrb[0].mxu0
    %v1143 = vadd.f32 0.0, %v1142
    %v1144 = vpop.f32.mrb[0].mxu0
    %1145 = vmatprep.mubr.bf16.mxu0 0
    %1146 = vmatmul.mubr.bf16.gmra.mrb[0].mxu0 %v657
    %v1147 = vpop.f32.mrb[0].mxu0
    %v1148 = vadd.f32 0.0, %v1147
    %v1149 = vpop.f32.mrb[0].mxu0
    %v1150 = vpop.f32.mrb[0].mxu0
    %v1151 = vadd.f32 0.0, %v1150
    %v1152 = vpop.f32.mrb[0].mxu0
    %1153 = vmatprep.mubr.bf16.mxu0 0
    %1154 = vmatmul.mubr.bf16.gmra.mrb[0].mxu0 %v660
    %v1155 = vpop.f32.mrb[0].mxu0
    %v1156 = vadd.f32 0.0, %v1155
    %v1157 = vpop.f32.mrb[0].mxu0
    %v1158 = vpop.f32.mrb[0].mxu0
    %v1159 = vadd.f32 0.0, %v1158
    %v1160 = vpop.f32.mrb[0].mxu0
    %1161 = vmatprep.mubr.bf16.mxu0 0
    %1162 = vmatmul.mubr.bf16.gmra.mrb[0].mxu0 %v663
    %v1163 = vpop.f32.mrb[0].mxu0
    %v1164 = vadd.f32 0.0, %v1163
    %v1165 = vpop.f32.mrb[0].mxu0
    %v1166 = vpop.f32.mrb[0].mxu0
    %v1167 = vadd.f32 0.0, %v1166
    %v1168 = vpop.f32.mrb[0].mxu0
    %1169 = vmatprep.mubr.bf16.mxu0 0
    %1170 = vmatmul.mubr.bf16.gmra.mrb[0].mxu0 %v666
    %v1171 = vpop.f32.mrb[0].mxu0
    %v1172 = vadd.f32 0.0, %v1171
    %v1173 = vpop.f32.mrb[0].mxu0
    %v1174 = vpop.f32.mrb[0].mxu0
    %v1175 = vadd.f32 0.0, %v1174
    %v1176 = vpop.f32.mrb[0].mxu0
    %1177 = vmatprep.mubr.bf16.mxu0 0
    %1178 = vmatmul.mubr.bf16.gmra.mrb[0].mxu0 %v669
    %v1179 = vpop.f32.mrb[0].mxu0
    %v1180 = vadd.f32 0.0, %v1179
    %v1181 = vpop.f32.mrb[0].mxu0
    %v1182 = vpop.f32.mrb[0].mxu0
    %v1183 = vadd.f32 0.0, %v1182
    %v1184 = vpop.f32.mrb[0].mxu0
    %1185 = vmatprep.mubr.bf16.mxu0 0
    %1186 = vmatmul.mubr.bf16.gmra.mrb[0].mxu0 %v672
    %v1187 = vpop.f32.mrb[0].mxu0
    %v1188 = vadd.f32 0.0, %v1187
    %v1189 = vpop.f32.mrb[0].mxu0
    %v1190 = vpop.f32.mrb[0].mxu0
    %v1191 = vadd.f32 0.0, %v1190
    %v1192 = vpop.f32.mrb[0].mxu0
    %1193 = vmatprep.mubr.bf16.mxu0 0
    %1194 = vmatmul.mubr.bf16.gmra.mrb[0].mxu0 %v675
    %v1195 = vpop.f32.mrb[0].mxu0
    %v1196 = vadd.f32 0.0, %v1195
    %v1197 = vpop.f32.mrb[0].mxu0
    %v1198 = vpop.f32.mrb[0].mxu0
    %v1199 = vadd.f32 0.0, %v1198
    %v1200 = vpop.f32.mrb[0].mxu0
    %1201 = vmatprep.mubr.bf16.mxu0 0
    %1202 = vmatmul.mubr.bf16.gmra.mrb[0].mxu0 %v678
    %v1203 = vpop.f32.mrb[0].mxu0
    %v1204 = vadd.f32 0.0, %v1203
    %v1205 = vpop.f32.mrb[0].mxu0
    %v1206 = vpop.f32.mrb[0].mxu0
    %v1207 = vadd.f32 0.0, %v1206
    %v1208 = vpop.f32.mrb[0].mxu0
    %1209 = vmatprep.mubr.bf16.mxu0 0
    %1210 = vmatmul.mubr.bf16.gmra.mrb[0].mxu0 %v681
    %v1211 = vpop.f32.mrb[0].mxu0
    %v1212 = vadd.f32 0.0, %v1211
    %v1213 = vpop.f32.mrb[0].mxu0
    %v1214 = vpop.f32.mrb[0].mxu0
    %v1215 = vadd.f32 0.0, %v1214
    %v1216 = vpop.f32.mrb[0].mxu0
    %1217 = vmatprep.mubr.bf16.mxu0 0
    %1218 = vmatmul.mubr.bf16.gmra.mrb[0].mxu0 %v684
    %v1219 = vpop.f32.mrb[0].mxu0
    %v1220 = vadd.f32 0.0, %v1219
    %v1221 = vpop.f32.mrb[0].mxu0
    %v1222 = vpop.f32.mrb[0].mxu0
    %v1223 = vadd.f32 0.0, %v1222
    %v1224 = vpop.f32.mrb[0].mxu0
    %1225 = vmatprep.mubr.bf16.mxu0 0
    %1226 = vmatmul.mubr.bf16.gmra.mrb[0].mxu0 %v687
    %v1227 = vpop.f32.mrb[0].mxu0
    %v1228 = vadd.f32 0.0, %v1227
    %v1229 = vpop.f32.mrb[0].mxu0
    %v1230 = vpop.f32.mrb[0].mxu0
    %v1231 = vadd.f32 0.0, %v1230
    %v1232 = vpop.f32.mrb[0].mxu0
    %1233 = vdwg.mxu0
    %v1234 = vmax.f32 %v724, 0.0
    %v1235 = vmax.f32 %v727, 0.0
    %v1236 = vmax.f32 %v732, 0.0
    %v1237 = vmax.f32 %v735, 0.0
    %v1238 = vmax.f32 %v740, 0.0
    %v1239 = vmax.f32 %v743, 0.0
    %v1240 = vmax.f32 %v748, 0.0
    %v1241 = vmax.f32 %v751, 0.0
    %v1242 = vmax.f32 %v756, 0.0
    %v1243 = vmax.f32 %v759, 0.0
    %v1244 = vmax.f32 %v764, 0.0
    %v1245 = vmax.f32 %v767, 0.0
    %v1246 = vmax.f32 %v772, 0.0
    %v1247 = vmax.f32 %v775, 0.0
    %v1248 = vmax.f32 %v780, 0.0
    %v1249 = vmax.f32 %v783, 0.0
    %v1250 = vmax.f32 %v788, 0.0
    %v1251 = vmax.f32 %v791, 0.0
    %v1252 = vmax.f32 %v796, 0.0
    %v1253 = vmax.f32 %v799, 0.0
    %v1254 = vmax.f32 %v804, 0.0
    %v1255 = vmax.f32 %v807, 0.0
    %v1256 = vmax.f32 %v812, 0.0
    %v1257 = vmax.f32 %v815, 0.0
    %v1258 = vmax.f32 %v820, 0.0
    %v1259 = vmax.f32 %v823, 0.0
    %v1260 = vmax.f32 %v828, 0.0
    %v1261 = vmax.f32 %v831, 0.0
    %v1262 = vmax.f32 %v836, 0.0
    %v1263 = vmax.f32 %v839, 0.0
    %v1264 = vmax.f32 %v844, 0.0
    %v1265 = vmax.f32 %v847, 0.0
    %v1266 = vmax.f32 %v852, 0.0
    %v1267 = vmax.f32 %v855, 0.0
    %v1268 = vmax.f32 %v860, 0.0
    %v1269 = vmax.f32 %v863, 0.0
    %v1270 = vmax.f32 %v868, 0.0
    %v1271 = vmax.f32 %v871, 0.0
    %v1272 = vmax.f32 %v876, 0.0
    %v1273 = vmax.f32 %v879, 0.0
    %v1274 = vmax.f32 %v884, 0.0
    %v1275 = vmax.f32 %v887, 0.0
    %v1276 = vmax.f32 %v892, 0.0
    %v1277 = vmax.f32 %v895, 0.0
    %v1278 = vmax.f32 %v900, 0.0
    %v1279 = vmax.f32 %v903, 0.0
    %v1280 = vmax.f32 %v908, 0.0
    %v1281 = vmax.f32 %v911, 0.0
    %v1282 = vmax.f32 %v916, 0.0
    %v1283 = vmax.f32 %v919, 0.0
    %v1284 = vmax.f32 %v924, 0.0
    %v1285 = vmax.f32 %v927, 0.0
    %v1286 = vmax.f32 %v932, 0.0
    %v1287 = vmax.f32 %v935, 0.0
    %v1288 = vmax.f32 %v940, 0.0
    %v1289 = vmax.f32 %v943, 0.0
    %v1290 = vmax.f32 %v948, 0.0
    %v1291 = vmax.f32 %v951, 0.0
    %v1292 = vmax.f32 %v956, 0.0
    %v1293 = vmax.f32 %v959, 0.0
    %v1294 = vmax.f32 %v964, 0.0
    %v1295 = vmax.f32 %v967, 0.0
    %v1296 = vmax.f32 %v972, 0.0
    %v1297 = vmax.f32 %v975, 0.0
    %v1298 = vmax.f32 %v980, 0.0
    %v1299 = vmax.f32 %v983, 0.0
    %v1300 = vmax.f32 %v988, 0.0
    %v1301 = vmax.f32 %v991, 0.0
    %v1302 = vmax.f32 %v996, 0.0
    %v1303 = vmax.f32 %v999, 0.0
    %v1304 = vmax.f32 %v1004, 0.0
    %v1305 = vmax.f32 %v1007, 0.0
    %v1306 = vmax.f32 %v1012, 0.0
    %v1307 = vmax.f32 %v1015, 0.0
    %v1308 = vmax.f32 %v1020, 0.0
    %v1309 = vmax.f32 %v1023, 0.0
    %v1310 = vmax.f32 %v1028, 0.0
    %v1311 = vmax.f32 %v1031, 0.0
    %v1312 = vmax.f32 %v1036, 0.0
    %v1313 = vmax.f32 %v1039, 0.0
    %v1314 = vmax.f32 %v1044, 0.0
    %v1315 = vmax.f32 %v1047, 0.0
    %v1316 = vmax.f32 %v1052, 0.0
    %v1317 = vmax.f32 %v1055, 0.0
    %v1318 = vmax.f32 %v1060, 0.0
    %v1319 = vmax.f32 %v1063, 0.0
    %v1320 = vmax.f32 %v1068, 0.0
    %v1321 = vmax.f32 %v1071, 0.0
    %v1322 = vmax.f32 %v1076, 0.0
    %v1323 = vmax.f32 %v1079, 0.0
    %v1324 = vmax.f32 %v1084, 0.0
    %v1325 = vmax.f32 %v1087, 0.0
    %v1326 = vmax.f32 %v1092, 0.0
    %v1327 = vmax.f32 %v1095, 0.0
    %v1328 = vmax.f32 %v1100, 0.0
    %v1329 = vmax.f32 %v1103, 0.0
    %v1330 = vmax.f32 %v1108, 0.0
    %v1331 = vmax.f32 %v1111, 0.0
    %v1332 = vmax.f32 %v1116, 0.0
    %v1333 = vmax.f32 %v1119, 0.0
    %v1334 = vmax.f32 %v1124, 0.0
    %v1335 = vmax.f32 %v1127, 0.0
    %v1336 = vmax.f32 %v1132, 0.0
    %v1337 = vmax.f32 %v1135, 0.0
    %v1338 = vmax.f32 %v1140, 0.0
    %v1339 = vmax.f32 %v1143, 0.0
    %v1340 = vmax.f32 %v1148, 0.0
    %v1341 = vmax.f32 %v1151, 0.0
    %v1342 = vmax.f32 %v1156, 0.0
    %v1343 = vmax.f32 %v1159, 0.0
    %v1344 = vmax.f32 %v1164, 0.0
    %v1345 = vmax.f32 %v1167, 0.0
    %v1346 = vmax.f32 %v1172, 0.0
    %v1347 = vmax.f32 %v1175, 0.0
    %v1348 = vmax.f32 %v1180, 0.0
    %v1349 = vmax.f32 %v1183, 0.0
    %v1350 = vmax.f32 %v1188, 0.0
    %v1351 = vmax.f32 %v1191, 0.0
    %v1352 = vmax.f32 %v1196, 0.0
    %v1353 = vmax.f32 %v1199, 0.0
    %v1354 = vmax.f32 %v1204, 0.0
    %v1355 = vmax.f32 %v1207, 0.0
    %v1356 = vmax.f32 %v1212, 0.0
    %v1357 = vmax.f32 %v1215, 0.0
    %v1358 = vmax.f32 %v1220, 0.0
    %v1359 = vmax.f32 %v1223, 0.0
    %v1360 = vmax.f32 %v1228, 0.0
    %v1361 = vmax.f32 %v1231, 0.0
    %v1362 = vld [vmem:[#allocation2] sm:$0xff]
    %v1363 = vld [vmem:[#allocation2 + $0x8] sm:$0xff]
    %v1364 = vld [vmem:[#allocation2 + $0x10] sm:$0xff]
    %v1365 = vld [vmem:[#allocation2 + $0x18] sm:$0xff]
    %v1366 = vld [vmem:[#allocation2 + $0x20] sm:$0xff]
    %v1367 = vld [vmem:[#allocation2 + $0x28] sm:$0xff]
    %v1368 = vld [vmem:[#allocation2 + $0x30] sm:$0xff]
    %v1369 = vld [vmem:[#allocation2 + $0x38] sm:$0xff]
    %v1370 = vld [vmem:[#allocation2 + $0x40] sm:$0xff]
    %v1371 = vld [vmem:[#allocation2 + $0x48] sm:$0xff]
    %v1372 = vld [vmem:[#allocation2 + $0x50] sm:$0xff]
    %v1373 = vld [vmem:[#allocation2 + $0x58] sm:$0xff]
    %v1374 = vld [vmem:[#allocation2 + $0x60] sm:$0xff]
    %v1375 = vld [vmem:[#allocation2 + $0x68] sm:$0xff]
    %v1376 = vld [vmem:[#allocation2 + $0x70] sm:$0xff]
    %v1377 = vld [vmem:[#allocation2 + $0x78] sm:$0xff]
    %v1378 = vld [vmem:[#allocation2 + $0x80] sm:$0xff]
    %v1379 = vld [vmem:[#allocation2 + $0x88] sm:$0xff]
    %v1380 = vld [vmem:[#allocation2 + $0x90] sm:$0xff]
    %v1381 = vld [vmem:[#allocation2 + $0x98] sm:$0xff]
    %v1382 = vld [vmem:[#allocation2 + $0xa0] sm:$0xff]
    %v1383 = vld [vmem:[#allocation2 + $0xa8] sm:$0xff]
    %v1384 = vld [vmem:[#allocation2 + $0xb0] sm:$0xff]
    %v1385 = vld [vmem:[#allocation2 + $0xb8] sm:$0xff]
    %v1386 = vld [vmem:[#allocation2 + $0xc0] sm:$0xff]
    %v1387 = vld [vmem:[#allocation2 + $0xc8] sm:$0xff]
    %v1388 = vld [vmem:[#allocation2 + $0xd0] sm:$0xff]
    %v1389 = vld [vmem:[#allocation2 + $0xd8] sm:$0xff]
    %v1390 = vld [vmem:[#allocation2 + $0xe0] sm:$0xff]
    %v1391 = vld [vmem:[#allocation2 + $0xe8] sm:$0xff]
    %v1392 = vld [vmem:[#allocation2 + $0xf0] sm:$0xff]
    %v1393 = vld [vmem:[#allocation2 + $0xf8] sm:$0xff]
    %v1394 = vld [vmem:[#allocation2 + $0x100] sm:$0xff]
    %v1395 = vld [vmem:[#allocation2 + $0x108] sm:$0xff]
    %v1396 = vld [vmem:[#allocation2 + $0x110] sm:$0xff]
    %v1397 = vld [vmem:[#allocation2 + $0x118] sm:$0xff]
    %v1398 = vld [vmem:[#allocation2 + $0x120] sm:$0xff]
    %v1399 = vld [vmem:[#allocation2 + $0x128] sm:$0xff]
    %v1400 = vld [vmem:[#allocation2 + $0x130] sm:$0xff]
    %v1401 = vld [vmem:[#allocation2 + $0x138] sm:$0xff]
    %v1402 = vld [vmem:[#allocation2 + $0x140] sm:$0xff]
    %v1403 = vld [vmem:[#allocation2 + $0x148] sm:$0xff]
    %v1404 = vld [vmem:[#allocation2 + $0x150] sm:$0xff]
    %v1405 = vld [vmem:[#allocation2 + $0x158] sm:$0xff]
    %v1406 = vld [vmem:[#allocation2 + $0x160] sm:$0xff]
    %v1407 = vld [vmem:[#allocation2 + $0x168] sm:$0xff]
    %v1408 = vld [vmem:[#allocation2 + $0x170] sm:$0xff]
    %v1409 = vld [vmem:[#allocation2 + $0x178] sm:$0xff]
    %v1410 = vld [vmem:[#allocation2 + $0x180] sm:$0xff]
    %v1411 = vld [vmem:[#allocation2 + $0x188] sm:$0xff]
    %v1412 = vld [vmem:[#allocation2 + $0x190] sm:$0xff]
    %v1413 = vld [vmem:[#allocation2 + $0x198] sm:$0xff]
    %v1414 = vld [vmem:[#allocation2 + $0x1a0] sm:$0xff]
    %v1415 = vld [vmem:[#allocation2 + $0x1a8] sm:$0xff]
    %v1416 = vld [vmem:[#allocation2 + $0x1b0] sm:$0xff]
    %v1417 = vld [vmem:[#allocation2 + $0x1b8] sm:$0xff]
    %v1418 = vld [vmem:[#allocation2 + $0x1c0] sm:$0xff]
    %v1419 = vld [vmem:[#allocation2 + $0x1c8] sm:$0xff]
    %v1420 = vld [vmem:[#allocation2 + $0x1d0] sm:$0xff]
    %v1421 = vld [vmem:[#allocation2 + $0x1d8] sm:$0xff]
    %v1422 = vld [vmem:[#allocation2 + $0x1e0] sm:$0xff]
    %v1423 = vld [vmem:[#allocation2 + $0x1e8] sm:$0xff]
    %v1424 = vld [vmem:[#allocation2 + $0x1f0] sm:$0xff]
    %v1425 = vld [vmem:[#allocation2 + $0x1f8] sm:$0xff]
    %v1426 = vld [vmem:[#allocation2 + $0x200] sm:$0xff]
    %v1427 = vld [vmem:[#allocation2 + $0x208] sm:$0xff]
    %v1428 = vld [vmem:[#allocation2 + $0x210] sm:$0xff]
    %v1429 = vld [vmem:[#allocation2 + $0x218] sm:$0xff]
    %v1430 = vld [vmem:[#allocation2 + $0x220] sm:$0xff]
    %v1431 = vld [vmem:[#allocation2 + $0x228] sm:$0xff]
    %v1432 = vld [vmem:[#allocation2 + $0x230] sm:$0xff]
    %v1433 = vld [vmem:[#allocation2 + $0x238] sm:$0xff]
    %v1434 = vld [vmem:[#allocation2 + $0x240] sm:$0xff]
    %v1435 = vld [vmem:[#allocation2 + $0x248] sm:$0xff]
    %v1436 = vld [vmem:[#allocation2 + $0x250] sm:$0xff]
    %v1437 = vld [vmem:[#allocation2 + $0x258] sm:$0xff]
    %v1438 = vld [vmem:[#allocation2 + $0x260] sm:$0xff]
    %v1439 = vld [vmem:[#allocation2 + $0x268] sm:$0xff]
    %v1440 = vld [vmem:[#allocation2 + $0x270] sm:$0xff]
    %v1441 = vld [vmem:[#allocation2 + $0x278] sm:$0xff]
    %v1442 = vld [vmem:[#allocation2 + $0x280] sm:$0xff]
    %v1443 = vld [vmem:[#allocation2 + $0x288] sm:$0xff]
    %v1444 = vld [vmem:[#allocation2 + $0x290] sm:$0xff]
    %v1445 = vld [vmem:[#allocation2 + $0x298] sm:$0xff]
    %v1446 = vld [vmem:[#allocation2 + $0x2a0] sm:$0xff]
    %v1447 = vld [vmem:[#allocation2 + $0x2a8] sm:$0xff]
    %v1448 = vld [vmem:[#allocation2 + $0x2b0] sm:$0xff]
    %v1449 = vld [vmem:[#allocation2 + $0x2b8] sm:$0xff]
    %v1450 = vld [vmem:[#allocation2 + $0x2c0] sm:$0xff]
    %v1451 = vld [vmem:[#allocation2 + $0x2c8] sm:$0xff]
    %v1452 = vld [vmem:[#allocation2 + $0x2d0] sm:$0xff]
    %v1453 = vld [vmem:[#allocation2 + $0x2d8] sm:$0xff]
    %v1454 = vld [vmem:[#allocation2 + $0x2e0] sm:$0xff]
    %v1455 = vld [vmem:[#allocation2 + $0x2e8] sm:$0xff]
    %v1456 = vld [vmem:[#allocation2 + $0x2f0] sm:$0xff]
    %v1457 = vld [vmem:[#allocation2 + $0x2f8] sm:$0xff]
    %v1458 = vld [vmem:[#allocation2 + $0x300] sm:$0xff]
    %v1459 = vld [vmem:[#allocation2 + $0x308] sm:$0xff]
    %v1460 = vld [vmem:[#allocation2 + $0x310] sm:$0xff]
    %v1461 = vld [vmem:[#allocation2 + $0x318] sm:$0xff]
    %v1462 = vld [vmem:[#allocation2 + $0x320] sm:$0xff]
    %v1463 = vld [vmem:[#allocation2 + $0x328] sm:$0xff]
    %v1464 = vld [vmem:[#allocation2 + $0x330] sm:$0xff]
    %v1465 = vld [vmem:[#allocation2 + $0x338] sm:$0xff]
    %v1466 = vld [vmem:[#allocation2 + $0x340] sm:$0xff]
    %v1467 = vld [vmem:[#allocation2 + $0x348] sm:$0xff]
    %v1468 = vld [vmem:[#allocation2 + $0x350] sm:$0xff]
    %v1469 = vld [vmem:[#allocation2 + $0x358] sm:$0xff]
    %v1470 = vld [vmem:[#allocation2 + $0x360] sm:$0xff]
    %v1471 = vld [vmem:[#allocation2 + $0x368] sm:$0xff]
    %v1472 = vld [vmem:[#allocation2 + $0x370] sm:$0xff]
    %v1473 = vld [vmem:[#allocation2 + $0x378] sm:$0xff]
    %v1474 = vld [vmem:[#allocation2 + $0x380] sm:$0xff]
    %v1475 = vld [vmem:[#allocation2 + $0x388] sm:$0xff]
    %v1476 = vld [vmem:[#allocation2 + $0x390] sm:$0xff]
    %v1477 = vld [vmem:[#allocation2 + $0x398] sm:$0xff]
    %v1478 = vld [vmem:[#allocation2 + $0x3a0] sm:$0xff]
    %v1479 = vld [vmem:[#allocation2 + $0x3a8] sm:$0xff]
    %v1480 = vld [vmem:[#allocation2 + $0x3b0] sm:$0xff]
    %v1481 = vld [vmem:[#allocation2 + $0x3b8] sm:$0xff]
    %v1482 = vld [vmem:[#allocation2 + $0x3c0] sm:$0xff]
    %v1483 = vld [vmem:[#allocation2 + $0x3c8] sm:$0xff]
    %v1484 = vld [vmem:[#allocation2 + $0x3d0] sm:$0xff]
    %v1485 = vld [vmem:[#allocation2 + $0x3d8] sm:$0xff]
    %v1486 = vld [vmem:[#allocation2 + $0x3e0] sm:$0xff]
    %v1487 = vld [vmem:[#allocation2 + $0x3e8] sm:$0xff]
    %v1488 = vld [vmem:[#allocation2 + $0x3f0] sm:$0xff]
    %v1489 = vld [vmem:[#allocation2 + $0x3f8] sm:$0xff]
    %v1490 = vld [vmem:[#allocation2 + $0x400] sm:$0xff]
    %v1491 = vld [vmem:[#allocation2 + $0x408] sm:$0xff]
    %v1492 = vld [vmem:[#allocation2 + $0x410] sm:$0xff]
    %v1493 = vld [vmem:[#allocation2 + $0x418] sm:$0xff]
    %v1494 = vld [vmem:[#allocation2 + $0x420] sm:$0xff]
    %v1495 = vld [vmem:[#allocation2 + $0x428] sm:$0xff]
    %v1496 = vld [vmem:[#allocation2 + $0x430] sm:$0xff]
    %v1497 = vld [vmem:[#allocation2 + $0x438] sm:$0xff]
    %v1498 = vld [vmem:[#allocation2 + $0x440] sm:$0xff]
    %v1499 = vld [vmem:[#allocation2 + $0x448] sm:$0xff]
    %v1500 = vld [vmem:[#allocation2 + $0x450] sm:$0xff]
    %v1501 = vld [vmem:[#allocation2 + $0x458] sm:$0xff]
    %v1502 = vld [vmem:[#allocation2 + $0x460] sm:$0xff]
    %v1503 = vld [vmem:[#allocation2 + $0x468] sm:$0xff]
    %v1504 = vld [vmem:[#allocation2 + $0x470] sm:$0xff]
    %v1505 = vld [vmem:[#allocation2 + $0x478] sm:$0xff]
    %v1506 = vld [vmem:[#allocation2 + $0x480] sm:$0xff]
    %v1507 = vld [vmem:[#allocation2 + $0x488] sm:$0xff]
    %v1508 = vld [vmem:[#allocation2 + $0x490] sm:$0xff]
    %v1509 = vld [vmem:[#allocation2 + $0x498] sm:$0xff]
    %v1510 = vld [vmem:[#allocation2 + $0x4a0] sm:$0xff]
    %v1511 = vld [vmem:[#allocation2 + $0x4a8] sm:$0xff]
    %v1512 = vld [vmem:[#allocation2 + $0x4b0] sm:$0xff]
    %v1513 = vld [vmem:[#allocation2 + $0x4b8] sm:$0xff]
    %v1514 = vld [vmem:[#allocation2 + $0x4c0] sm:$0xff]
    %v1515 = vld [vmem:[#allocation2 + $0x4c8] sm:$0xff]
    %v1516 = vld [vmem:[#allocation2 + $0x4d0] sm:$0xff]
    %v1517 = vld [vmem:[#allocation2 + $0x4d8] sm:$0xff]
    %v1518 = vld [vmem:[#allocation2 + $0x4e0] sm:$0xff]
    %v1519 = vld [vmem:[#allocation2 + $0x4e8] sm:$0xff]
    %v1520 = vld [vmem:[#allocation2 + $0x4f0] sm:$0xff]
    %v1521 = vld [vmem:[#allocation2 + $0x4f8] sm:$0xff]
    %v1522 = vld [vmem:[#allocation2 + $0x500] sm:$0xff]
    %v1523 = vld [vmem:[#allocation2 + $0x508] sm:$0xff]
    %v1524 = vld [vmem:[#allocation2 + $0x510] sm:$0xff]
    %v1525 = vld [vmem:[#allocation2 + $0x518] sm:$0xff]
    %v1526 = vld [vmem:[#allocation2 + $0x520] sm:$0xff]
    %v1527 = vld [vmem:[#allocation2 + $0x528] sm:$0xff]
    %v1528 = vld [vmem:[#allocation2 + $0x530] sm:$0xff]
    %v1529 = vld [vmem:[#allocation2 + $0x538] sm:$0xff]
    %v1530 = vld [vmem:[#allocation2 + $0x540] sm:$0xff]
    %v1531 = vld [vmem:[#allocation2 + $0x548] sm:$0xff]
    %v1532 = vld [vmem:[#allocation2 + $0x550] sm:$0xff]
    %v1533 = vld [vmem:[#allocation2 + $0x558] sm:$0xff]
    %v1534 = vld [vmem:[#allocation2 + $0x560] sm:$0xff]
    %v1535 = vld [vmem:[#allocation2 + $0x568] sm:$0xff]
    %v1536 = vld [vmem:[#allocation2 + $0x570] sm:$0xff]
    %v1537 = vld [vmem:[#allocation2 + $0x578] sm:$0xff]
    %v1538 = vld [vmem:[#allocation2 + $0x580] sm:$0xff]
    %v1539 = vld [vmem:[#allocation2 + $0x588] sm:$0xff]
    %v1540 = vld [vmem:[#allocation2 + $0x590] sm:$0xff]
    %v1541 = vld [vmem:[#allocation2 + $0x598] sm:$0xff]
    %v1542 = vld [vmem:[#allocation2 + $0x5a0] sm:$0xff]
    %v1543 = vld [vmem:[#allocation2 + $0x5a8] sm:$0xff]
    %v1544 = vld [vmem:[#allocation2 + $0x5b0] sm:$0xff]
    %v1545 = vld [vmem:[#allocation2 + $0x5b8] sm:$0xff]
    %v1546 = vld [vmem:[#allocation2 + $0x5c0] sm:$0xff]
    %v1547 = vld [vmem:[#allocation2 + $0x5c8] sm:$0xff]
    %v1548 = vld [vmem:[#allocation2 + $0x5d0] sm:$0xff]
    %v1549 = vld [vmem:[#allocation2 + $0x5d8] sm:$0xff]
    %v1550 = vld [vmem:[#allocation2 + $0x5e0] sm:$0xff]
    %v1551 = vld [vmem:[#allocation2 + $0x5e8] sm:$0xff]
    %v1552 = vld [vmem:[#allocation2 + $0x5f0] sm:$0xff]
    %v1553 = vld [vmem:[#allocation2 + $0x5f8] sm:$0xff]
    %v1554 = vld [vmem:[#allocation2 + $0x600] sm:$0xff]
    %v1555 = vld [vmem:[#allocation2 + $0x608] sm:$0xff]
    %v1556 = vld [vmem:[#allocation2 + $0x610] sm:$0xff]
    %v1557 = vld [vmem:[#allocation2 + $0x618] sm:$0xff]
    %v1558 = vld [vmem:[#allocation2 + $0x620] sm:$0xff]
    %v1559 = vld [vmem:[#allocation2 + $0x628] sm:$0xff]
    %v1560 = vld [vmem:[#allocation2 + $0x630] sm:$0xff]
    %v1561 = vld [vmem:[#allocation2 + $0x638] sm:$0xff]
    %v1562 = vld [vmem:[#allocation2 + $0x640] sm:$0xff]
    %v1563 = vld [vmem:[#allocation2 + $0x648] sm:$0xff]
    %v1564 = vld [vmem:[#allocation2 + $0x650] sm:$0xff]
    %v1565 = vld [vmem:[#allocation2 + $0x658] sm:$0xff]
    %v1566 = vld [vmem:[#allocation2 + $0x660] sm:$0xff]
    %v1567 = vld [vmem:[#allocation2 + $0x668] sm:$0xff]
    %v1568 = vld [vmem:[#allocation2 + $0x670] sm:$0xff]
    %v1569 = vld [vmem:[#allocation2 + $0x678] sm:$0xff]
    %v1570 = vld [vmem:[#allocation2 + $0x680] sm:$0xff]
    %v1571 = vld [vmem:[#allocation2 + $0x688] sm:$0xff]
    %v1572 = vld [vmem:[#allocation2 + $0x690] sm:$0xff]
    %v1573 = vld [vmem:[#allocation2 + $0x698] sm:$0xff]
    %v1574 = vld [vmem:[#allocation2 + $0x6a0] sm:$0xff]
    %v1575 = vld [vmem:[#allocation2 + $0x6a8] sm:$0xff]
    %v1576 = vld [vmem:[#allocation2 + $0x6b0] sm:$0xff]
    %v1577 = vld [vmem:[#allocation2 + $0x6b8] sm:$0xff]
    %v1578 = vld [vmem:[#allocation2 + $0x6c0] sm:$0xff]
    %v1579 = vld [vmem:[#allocation2 + $0x6c8] sm:$0xff]
    %v1580 = vld [vmem:[#allocation2 + $0x6d0] sm:$0xff]
    %v1581 = vld [vmem:[#allocation2 + $0x6d8] sm:$0xff]
    %v1582 = vld [vmem:[#allocation2 + $0x6e0] sm:$0xff]
    %v1583 = vld [vmem:[#allocation2 + $0x6e8] sm:$0xff]
    %v1584 = vld [vmem:[#allocation2 + $0x6f0] sm:$0xff]
    %v1585 = vld [vmem:[#allocation2 + $0x6f8] sm:$0xff]
    %v1586 = vld [vmem:[#allocation2 + $0x700] sm:$0xff]
    %v1587 = vld [vmem:[#allocation2 + $0x708] sm:$0xff]
    %v1588 = vld [vmem:[#allocation2 + $0x710] sm:$0xff]
    %v1589 = vld [vmem:[#allocation2 + $0x718] sm:$0xff]
    %v1590 = vld [vmem:[#allocation2 + $0x720] sm:$0xff]
    %v1591 = vld [vmem:[#allocation2 + $0x728] sm:$0xff]
    %v1592 = vld [vmem:[#allocation2 + $0x730] sm:$0xff]
    %v1593 = vld [vmem:[#allocation2 + $0x738] sm:$0xff]
    %v1594 = vld [vmem:[#allocation2 + $0x740] sm:$0xff]
    %v1595 = vld [vmem:[#allocation2 + $0x748] sm:$0xff]
    %v1596 = vld [vmem:[#allocation2 + $0x750] sm:$0xff]
    %v1597 = vld [vmem:[#allocation2 + $0x758] sm:$0xff]
    %v1598 = vld [vmem:[#allocation2 + $0x760] sm:$0xff]
    %v1599 = vld [vmem:[#allocation2 + $0x768] sm:$0xff]
    %v1600 = vld [vmem:[#allocation2 + $0x770] sm:$0xff]
    %v1601 = vld [vmem:[#allocation2 + $0x778] sm:$0xff]
    %v1602 = vld [vmem:[#allocation2 + $0x780] sm:$0xff]
    %v1603 = vld [vmem:[#allocation2 + $0x788] sm:$0xff]
    %v1604 = vld [vmem:[#allocation2 + $0x790] sm:$0xff]
    %v1605 = vld [vmem:[#allocation2 + $0x798] sm:$0xff]
    %v1606 = vld [vmem:[#allocation2 + $0x7a0] sm:$0xff]
    %v1607 = vld [vmem:[#allocation2 + $0x7a8] sm:$0xff]
    %v1608 = vld [vmem:[#allocation2 + $0x7b0] sm:$0xff]
    %v1609 = vld [vmem:[#allocation2 + $0x7b8] sm:$0xff]
    %v1610 = vld [vmem:[#allocation2 + $0x7c0] sm:$0xff]
    %v1611 = vld [vmem:[#allocation2 + $0x7c8] sm:$0xff]
    %v1612 = vld [vmem:[#allocation2 + $0x7d0] sm:$0xff]
    %v1613 = vld [vmem:[#allocation2 + $0x7d8] sm:$0xff]
    %v1614 = vld [vmem:[#allocation2 + $0x7e0] sm:$0xff]
    %v1615 = vld [vmem:[#allocation2 + $0x7e8] sm:$0xff]
    %v1616 = vld [vmem:[#allocation2 + $0x7f0] sm:$0xff]
    %v1617 = vld [vmem:[#allocation2 + $0x7f8] sm:$0xff]
    %v1618 = vpack.c.bf16 %v1235, %v1234
    %v1619 = vpack.c.bf16 %v1237, %v1236
    %v1620 = vpack.c.bf16 %v1239, %v1238
    %v1621 = vpack.c.bf16 %v1241, %v1240
    %v1622 = vpack.c.bf16 %v1243, %v1242
    %v1623 = vpack.c.bf16 %v1245, %v1244
    %v1624 = vpack.c.bf16 %v1247, %v1246
    %v1625 = vpack.c.bf16 %v1249, %v1248
    %v1626 = vpack.c.bf16 %v1251, %v1250
    %v1627 = vpack.c.bf16 %v1253, %v1252
    %v1628 = vpack.c.bf16 %v1255, %v1254
    %v1629 = vpack.c.bf16 %v1257, %v1256
    %v1630 = vpack.c.bf16 %v1259, %v1258
    %v1631 = vpack.c.bf16 %v1261, %v1260
    %v1632 = vpack.c.bf16 %v1263, %v1262
    %v1633 = vpack.c.bf16 %v1265, %v1264
    %v1634 = vpack.c.bf16 %v1267, %v1266
    %v1635 = vpack.c.bf16 %v1269, %v1268
    %v1636 = vpack.c.bf16 %v1271, %v1270
    %v1637 = vpack.c.bf16 %v1273, %v1272
    %v1638 = vpack.c.bf16 %v1275, %v1274
    %v1639 = vpack.c.bf16 %v1277, %v1276
    %v1640 = vpack.c.bf16 %v1279, %v1278
    %v1641 = vpack.c.bf16 %v1281, %v1280
    %v1642 = vpack.c.bf16 %v1283, %v1282
    %v1643 = vpack.c.bf16 %v1285, %v1284
    %v1644 = vpack.c.bf16 %v1287, %v1286
    %v1645 = vpack.c.bf16 %v1289, %v1288
    %v1646 = vpack.c.bf16 %v1291, %v1290
    %v1647 = vpack.c.bf16 %v1293, %v1292
    %v1648 = vpack.c.bf16 %v1295, %v1294
    %v1649 = vpack.c.bf16 %v1297, %v1296
    %v1650 = vpack.c.bf16 %v1299, %v1298
    %v1651 = vpack.c.bf16 %v1301, %v1300
    %v1652 = vpack.c.bf16 %v1303, %v1302
    %v1653 = vpack.c.bf16 %v1305, %v1304
    %v1654 = vpack.c.bf16 %v1307, %v1306
    %v1655 = vpack.c.bf16 %v1309, %v1308
    %v1656 = vpack.c.bf16 %v1311, %v1310
    %v1657 = vpack.c.bf16 %v1313, %v1312
    %v1658 = vpack.c.bf16 %v1315, %v1314
    %v1659 = vpack.c.bf16 %v1317, %v1316
    %v1660 = vpack.c.bf16 %v1319, %v1318
    %v1661 = vpack.c.bf16 %v1321, %v1320
    %v1662 = vpack.c.bf16 %v1323, %v1322
    %v1663 = vpack.c.bf16 %v1325, %v1324
    %v1664 = vpack.c.bf16 %v1327, %v1326
    %v1665 = vpack.c.bf16 %v1329, %v1328
    %v1666 = vpack.c.bf16 %v1331, %v1330
    %v1667 = vpack.c.bf16 %v1333, %v1332
    %v1668 = vpack.c.bf16 %v1335, %v1334
    %v1669 = vpack.c.bf16 %v1337, %v1336
    %v1670 = vpack.c.bf16 %v1339, %v1338
    %v1671 = vpack.c.bf16 %v1341, %v1340
    %v1672 = vpack.c.bf16 %v1343, %v1342
    %v1673 = vpack.c.bf16 %v1345, %v1344
    %v1674 = vpack.c.bf16 %v1347, %v1346
    %v1675 = vpack.c.bf16 %v1349, %v1348
    %v1676 = vpack.c.bf16 %v1351, %v1350
    %v1677 = vpack.c.bf16 %v1353, %v1352
    %v1678 = vpack.c.bf16 %v1355, %v1354
    %v1679 = vpack.c.bf16 %v1357, %v1356
    %v1680 = vpack.c.bf16 %v1359, %v1358
    %v1681 = vpack.c.bf16 %v1361, %v1360
    %v1938 = vunpack.c.l.b16 %v1362
    %v1939 = vunpack.c.h.b16 %v1362
    %v1940 = vunpack.c.l.b16 %v1363
    %v1941 = vunpack.c.h.b16 %v1363
    %v1942 = vunpack.c.l.b16 %v1364
    %v1943 = vunpack.c.h.b16 %v1364
    %v1944 = vunpack.c.l.b16 %v1365
    %v1945 = vunpack.c.h.b16 %v1365
    %v1946 = vunpack.c.l.b16 %v1366
    %v1947 = vunpack.c.h.b16 %v1366
    %v1948 = vunpack.c.l.b16 %v1367
    %v1949 = vunpack.c.h.b16 %v1367
    %v1950 = vunpack.c.l.b16 %v1368
    %v1951 = vunpack.c.h.b16 %v1368
    %v1952 = vunpack.c.l.b16 %v1369
    %v1953 = vunpack.c.h.b16 %v1369
    %v1954 = vunpack.c.l.b16 %v1370
    %v1955 = vunpack.c.h.b16 %v1370
    %v1956 = vunpack.c.l.b16 %v1371
    %v1957 = vunpack.c.h.b16 %v1371
    %v1958 = vunpack.c.l.b16 %v1372
    %v1959 = vunpack.c.h.b16 %v1372
    %v1960 = vunpack.c.l.b16 %v1373
    %v1961 = vunpack.c.h.b16 %v1373
    %v1962 = vunpack.c.l.b16 %v1374
    %v1963 = vunpack.c.h.b16 %v1374
    %v1964 = vunpack.c.l.b16 %v1375
    %v1965 = vunpack.c.h.b16 %v1375
    %v1966 = vunpack.c.l.b16 %v1376
    %v1967 = vunpack.c.h.b16 %v1376
    %v1968 = vunpack.c.l.b16 %v1377
    %v1969 = vunpack.c.h.b16 %v1377
    %v1970 = vunpack.c.l.b16 %v1378
    %v1971 = vunpack.c.h.b16 %v1378
    %v1972 = vunpack.c.l.b16 %v1379
    %v1973 = vunpack.c.h.b16 %v1379
    %v1974 = vunpack.c.l.b16 %v1380
    %v1975 = vunpack.c.h.b16 %v1380
    %v1976 = vunpack.c.l.b16 %v1381
    %v1977 = vunpack.c.h.b16 %v1381
    %v1978 = vunpack.c.l.b16 %v1382
    %v1979 = vunpack.c.h.b16 %v1382
    %v1980 = vunpack.c.l.b16 %v1383
    %v1981 = vunpack.c.h.b16 %v1383
    %v1982 = vunpack.c.l.b16 %v1384
    %v1983 = vunpack.c.h.b16 %v1384
    %v1984 = vunpack.c.l.b16 %v1385
    %v1985 = vunpack.c.h.b16 %v1385
    %v1986 = vunpack.c.l.b16 %v1386
    %v1987 = vunpack.c.h.b16 %v1386
    %v1988 = vunpack.c.l.b16 %v1387
    %v1989 = vunpack.c.h.b16 %v1387
    %v1990 = vunpack.c.l.b16 %v1388
    %v1991 = vunpack.c.h.b16 %v1388
    %v1992 = vunpack.c.l.b16 %v1389
    %v1993 = vunpack.c.h.b16 %v1389
    %v1994 = vunpack.c.l.b16 %v1390
    %v1995 = vunpack.c.h.b16 %v1390
    %v1996 = vunpack.c.l.b16 %v1391
    %v1997 = vunpack.c.h.b16 %v1391
    %v1998 = vunpack.c.l.b16 %v1392
    %v1999 = vunpack.c.h.b16 %v1392
    %v2000 = vunpack.c.l.b16 %v1393
    %v2001 = vunpack.c.h.b16 %v1393
    %v2002 = vunpack.c.l.b16 %v1394
    %v2003 = vunpack.c.h.b16 %v1394
    %v2004 = vunpack.c.l.b16 %v1395
    %v2005 = vunpack.c.h.b16 %v1395
    %v2006 = vunpack.c.l.b16 %v1396
    %v2007 = vunpack.c.h.b16 %v1396
    %v2008 = vunpack.c.l.b16 %v1397
    %v2009 = vunpack.c.h.b16 %v1397
    %v2010 = vunpack.c.l.b16 %v1398
    %v2011 = vunpack.c.h.b16 %v1398
    %v2012 = vunpack.c.l.b16 %v1399
    %v2013 = vunpack.c.h.b16 %v1399
    %v2014 = vunpack.c.l.b16 %v1400
    %v2015 = vunpack.c.h.b16 %v1400
    %v2016 = vunpack.c.l.b16 %v1401
    %v2017 = vunpack.c.h.b16 %v1401
    %v2018 = vunpack.c.l.b16 %v1402
    %v2019 = vunpack.c.h.b16 %v1402
    %v2020 = vunpack.c.l.b16 %v1403
    %v2021 = vunpack.c.h.b16 %v1403
    %v2022 = vunpack.c.l.b16 %v1404
    %v2023 = vunpack.c.h.b16 %v1404
    %v2024 = vunpack.c.l.b16 %v1405
    %v2025 = vunpack.c.h.b16 %v1405
    %v2026 = vunpack.c.l.b16 %v1406
    %v2027 = vunpack.c.h.b16 %v1406
    %v2028 = vunpack.c.l.b16 %v1407
    %v2029 = vunpack.c.h.b16 %v1407
    %v2030 = vunpack.c.l.b16 %v1408
    %v2031 = vunpack.c.h.b16 %v1408
    %v2032 = vunpack.c.l.b16 %v1409
    %v2033 = vunpack.c.h.b16 %v1409
    %v2034 = vunpack.c.l.b16 %v1410
    %v2035 = vunpack.c.h.b16 %v1410
    %v2036 = vunpack.c.l.b16 %v1411
    %v2037 = vunpack.c.h.b16 %v1411
    %v2038 = vunpack.c.l.b16 %v1412
    %v2039 = vunpack.c.h.b16 %v1412
    %v2040 = vunpack.c.l.b16 %v1413
    %v2041 = vunpack.c.h.b16 %v1413
    %v2042 = vunpack.c.l.b16 %v1414
    %v2043 = vunpack.c.h.b16 %v1414
    %v2044 = vunpack.c.l.b16 %v1415
    %v2045 = vunpack.c.h.b16 %v1415
    %v2046 = vunpack.c.l.b16 %v1416
    %v2047 = vunpack.c.h.b16 %v1416
    %v2048 = vunpack.c.l.b16 %v1417
    %v2049 = vunpack.c.h.b16 %v1417
    %v2050 = vunpack.c.l.b16 %v1418
    %v2051 = vunpack.c.h.b16 %v1418
    %v2052 = vunpack.c.l.b16 %v1419
    %v2053 = vunpack.c.h.b16 %v1419
    %v2054 = vunpack.c.l.b16 %v1420
    %v2055 = vunpack.c.h.b16 %v1420
    %v2056 = vunpack.c.l.b16 %v1421
    %v2057 = vunpack.c.h.b16 %v1421
    %v2058 = vunpack.c.l.b16 %v1422
    %v2059 = vunpack.c.h.b16 %v1422
    %v2060 = vunpack.c.l.b16 %v1423
    %v2061 = vunpack.c.h.b16 %v1423
    %v2062 = vunpack.c.l.b16 %v1424
    %v2063 = vunpack.c.h.b16 %v1424
    %v2064 = vunpack.c.l.b16 %v1425
    %v2065 = vunpack.c.h.b16 %v1425
    %v2066 = vunpack.c.l.b16 %v1426
    %v2067 = vunpack.c.h.b16 %v1426
    %v2068 = vunpack.c.l.b16 %v1427
    %v2069 = vunpack.c.h.b16 %v1427
    %v2070 = vunpack.c.l.b16 %v1428
    %v2071 = vunpack.c.h.b16 %v1428
    %v2072 = vunpack.c.l.b16 %v1429
    %v2073 = vunpack.c.h.b16 %v1429
    %v2074 = vunpack.c.l.b16 %v1430
    %v2075 = vunpack.c.h.b16 %v1430
    %v2076 = vunpack.c.l.b16 %v1431
    %v2077 = vunpack.c.h.b16 %v1431
    %v2078 = vunpack.c.l.b16 %v1432
    %v2079 = vunpack.c.h.b16 %v1432
    %v2080 = vunpack.c.l.b16 %v1433
    %v2081 = vunpack.c.h.b16 %v1433
    %v2082 = vunpack.c.l.b16 %v1434
    %v2083 = vunpack.c.h.b16 %v1434
    %v2084 = vunpack.c.l.b16 %v1435
    %v2085 = vunpack.c.h.b16 %v1435
    %v2086 = vunpack.c.l.b16 %v1436
    %v2087 = vunpack.c.h.b16 %v1436
    %v2088 = vunpack.c.l.b16 %v1437
    %v2089 = vunpack.c.h.b16 %v1437
    %v2090 = vunpack.c.l.b16 %v1438
    %v2091 = vunpack.c.h.b16 %v1438
    %v2092 = vunpack.c.l.b16 %v1439
    %v2093 = vunpack.c.h.b16 %v1439
    %v2094 = vunpack.c.l.b16 %v1440
    %v2095 = vunpack.c.h.b16 %v1440
    %v2096 = vunpack.c.l.b16 %v1441
    %v2097 = vunpack.c.h.b16 %v1441
    %v2098 = vunpack.c.l.b16 %v1442
    %v2099 = vunpack.c.h.b16 %v1442
    %v2100 = vunpack.c.l.b16 %v1443
    %v2101 = vunpack.c.h.b16 %v1443
    %v2102 = vunpack.c.l.b16 %v1444
    %v2103 = vunpack.c.h.b16 %v1444
    %v2104 = vunpack.c.l.b16 %v1445
    %v2105 = vunpack.c.h.b16 %v1445
    %v2106 = vunpack.c.l.b16 %v1446
    %v2107 = vunpack.c.h.b16 %v1446
    %v2108 = vunpack.c.l.b16 %v1447
    %v2109 = vunpack.c.h.b16 %v1447
    %v2110 = vunpack.c.l.b16 %v1448
    %v2111 = vunpack.c.h.b16 %v1448
    %v2112 = vunpack.c.l.b16 %v1449
    %v2113 = vunpack.c.h.b16 %v1449
    %v2114 = vunpack.c.l.b16 %v1450
    %v2115 = vunpack.c.h.b16 %v1450
    %v2116 = vunpack.c.l.b16 %v1451
    %v2117 = vunpack.c.h.b16 %v1451
    %v2118 = vunpack.c.l.b16 %v1452
    %v2119 = vunpack.c.h.b16 %v1452
    %v2120 = vunpack.c.l.b16 %v1453
    %v2121 = vunpack.c.h.b16 %v1453
    %v2122 = vunpack.c.l.b16 %v1454
    %v2123 = vunpack.c.h.b16 %v1454
    %v2124 = vunpack.c.l.b16 %v1455
    %v2125 = vunpack.c.h.b16 %v1455
    %v2126 = vunpack.c.l.b16 %v1456
    %v2127 = vunpack.c.h.b16 %v1456
    %v2128 = vunpack.c.l.b16 %v1457
    %v2129 = vunpack.c.h.b16 %v1457
    %v2130 = vunpack.c.l.b16 %v1458
    %v2131 = vunpack.c.h.b16 %v1458
    %v2132 = vunpack.c.l.b16 %v1459
    %v2133 = vunpack.c.h.b16 %v1459
    %v2134 = vunpack.c.l.b16 %v1460
    %v2135 = vunpack.c.h.b16 %v1460
    %v2136 = vunpack.c.l.b16 %v1461
    %v2137 = vunpack.c.h.b16 %v1461
    %v2138 = vunpack.c.l.b16 %v1462
    %v2139 = vunpack.c.h.b16 %v1462
    %v2140 = vunpack.c.l.b16 %v1463
    %v2141 = vunpack.c.h.b16 %v1463
    %v2142 = vunpack.c.l.b16 %v1464
    %v2143 = vunpack.c.h.b16 %v1464
    %v2144 = vunpack.c.l.b16 %v1465
    %v2145 = vunpack.c.h.b16 %v1465
    %v2146 = vunpack.c.l.b16 %v1466
    %v2147 = vunpack.c.h.b16 %v1466
    %v2148 = vunpack.c.l.b16 %v1467
    %v2149 = vunpack.c.h.b16 %v1467
    %v2150 = vunpack.c.l.b16 %v1468
    %v2151 = vunpack.c.h.b16 %v1468
    %v2152 = vunpack.c.l.b16 %v1469
    %v2153 = vunpack.c.h.b16 %v1469
    %v2154 = vunpack.c.l.b16 %v1470
    %v2155 = vunpack.c.h.b16 %v1470
    %v2156 = vunpack.c.l.b16 %v1471
    %v2157 = vunpack.c.h.b16 %v1471
    %v2158 = vunpack.c.l.b16 %v1472
    %v2159 = vunpack.c.h.b16 %v1472
    %v2160 = vunpack.c.l.b16 %v1473
    %v2161 = vunpack.c.h.b16 %v1473
    %v2162 = vunpack.c.l.b16 %v1474
    %v2163 = vunpack.c.h.b16 %v1474
    %v2164 = vunpack.c.l.b16 %v1475
    %v2165 = vunpack.c.h.b16 %v1475
    %v2166 = vunpack.c.l.b16 %v1476
    %v2167 = vunpack.c.h.b16 %v1476
    %v2168 = vunpack.c.l.b16 %v1477
    %v2169 = vunpack.c.h.b16 %v1477
    %v2170 = vunpack.c.l.b16 %v1478
    %v2171 = vunpack.c.h.b16 %v1478
    %v2172 = vunpack.c.l.b16 %v1479
    %v2173 = vunpack.c.h.b16 %v1479
    %v2174 = vunpack.c.l.b16 %v1480
    %v2175 = vunpack.c.h.b16 %v1480
    %v2176 = vunpack.c.l.b16 %v1481
    %v2177 = vunpack.c.h.b16 %v1481
    %v2178 = vunpack.c.l.b16 %v1482
    %v2179 = vunpack.c.h.b16 %v1482
    %v2180 = vunpack.c.l.b16 %v1483
    %v2181 = vunpack.c.h.b16 %v1483
    %v2182 = vunpack.c.l.b16 %v1484
    %v2183 = vunpack.c.h.b16 %v1484
    %v2184 = vunpack.c.l.b16 %v1485
    %v2185 = vunpack.c.h.b16 %v1485
    %v2186 = vunpack.c.l.b16 %v1486
    %v2187 = vunpack.c.h.b16 %v1486
    %v2188 = vunpack.c.l.b16 %v1487
    %v2189 = vunpack.c.h.b16 %v1487
    %v2190 = vunpack.c.l.b16 %v1488
    %v2191 = vunpack.c.h.b16 %v1488
    %v2192 = vunpack.c.l.b16 %v1489
    %v2193 = vunpack.c.h.b16 %v1489
    %v2194 = vunpack.c.l.b16 %v1490
    %v2195 = vunpack.c.h.b16 %v1490
    %v2196 = vunpack.c.l.b16 %v1491
    %v2197 = vunpack.c.h.b16 %v1491
    %v2198 = vunpack.c.l.b16 %v1492
    %v2199 = vunpack.c.h.b16 %v1492
    %v2200 = vunpack.c.l.b16 %v1493
    %v2201 = vunpack.c.h.b16 %v1493
    %v2202 = vunpack.c.l.b16 %v1494
    %v2203 = vunpack.c.h.b16 %v1494
    %v2204 = vunpack.c.l.b16 %v1495
    %v2205 = vunpack.c.h.b16 %v1495
    %v2206 = vunpack.c.l.b16 %v1496
    %v2207 = vunpack.c.h.b16 %v1496
    %v2208 = vunpack.c.l.b16 %v1497
    %v2209 = vunpack.c.h.b16 %v1497
    %v2210 = vunpack.c.l.b16 %v1498
    %v2211 = vunpack.c.h.b16 %v1498
    %v2212 = vunpack.c.l.b16 %v1499
    %v2213 = vunpack.c.h.b16 %v1499
    %v2214 = vunpack.c.l.b16 %v1500
    %v2215 = vunpack.c.h.b16 %v1500
    %v2216 = vunpack.c.l.b16 %v1501
    %v2217 = vunpack.c.h.b16 %v1501
    %v2218 = vunpack.c.l.b16 %v1502
    %v2219 = vunpack.c.h.b16 %v1502
    %v2220 = vunpack.c.l.b16 %v1503
    %v2221 = vunpack.c.h.b16 %v1503
    %v2222 = vunpack.c.l.b16 %v1504
    %v2223 = vunpack.c.h.b16 %v1504
    %v2224 = vunpack.c.l.b16 %v1505
    %v2225 = vunpack.c.h.b16 %v1505
    %v2226 = vunpack.c.l.b16 %v1506
    %v2227 = vunpack.c.h.b16 %v1506
    %v2228 = vunpack.c.l.b16 %v1507
    %v2229 = vunpack.c.h.b16 %v1507
    %v2230 = vunpack.c.l.b16 %v1508
    %v2231 = vunpack.c.h.b16 %v1508
    %v2232 = vunpack.c.l.b16 %v1509
    %v2233 = vunpack.c.h.b16 %v1509
    %v2234 = vunpack.c.l.b16 %v1510
    %v2235 = vunpack.c.h.b16 %v1510
    %v2236 = vunpack.c.l.b16 %v1511
    %v2237 = vunpack.c.h.b16 %v1511
    %v2238 = vunpack.c.l.b16 %v1512
    %v2239 = vunpack.c.h.b16 %v1512
    %v2240 = vunpack.c.l.b16 %v1513
    %v2241 = vunpack.c.h.b16 %v1513
    %v2242 = vunpack.c.l.b16 %v1514
    %v2243 = vunpack.c.h.b16 %v1514
    %v2244 = vunpack.c.l.b16 %v1515
    %v2245 = vunpack.c.h.b16 %v1515
    %v2246 = vunpack.c.l.b16 %v1516
    %v2247 = vunpack.c.h.b16 %v1516
    %v2248 = vunpack.c.l.b16 %v1517
    %v2249 = vunpack.c.h.b16 %v1517
    %v2250 = vunpack.c.l.b16 %v1518
    %v2251 = vunpack.c.h.b16 %v1518
    %v2252 = vunpack.c.l.b16 %v1519
    %v2253 = vunpack.c.h.b16 %v1519
    %v2254 = vunpack.c.l.b16 %v1520
    %v2255 = vunpack.c.h.b16 %v1520
    %v2256 = vunpack.c.l.b16 %v1521
    %v2257 = vunpack.c.h.b16 %v1521
    %v2258 = vunpack.c.l.b16 %v1522
    %v2259 = vunpack.c.h.b16 %v1522
    %v2260 = vunpack.c.l.b16 %v1523
    %v2261 = vunpack.c.h.b16 %v1523
    %v2262 = vunpack.c.l.b16 %v1524
    %v2263 = vunpack.c.h.b16 %v1524
    %v2264 = vunpack.c.l.b16 %v1525
    %v2265 = vunpack.c.h.b16 %v1525
    %v2266 = vunpack.c.l.b16 %v1526
    %v2267 = vunpack.c.h.b16 %v1526
    %v2268 = vunpack.c.l.b16 %v1527
    %v2269 = vunpack.c.h.b16 %v1527
    %v2270 = vunpack.c.l.b16 %v1528
    %v2271 = vunpack.c.h.b16 %v1528
    %v2272 = vunpack.c.l.b16 %v1529
    %v2273 = vunpack.c.h.b16 %v1529
    %v2274 = vunpack.c.l.b16 %v1530
    %v2275 = vunpack.c.h.b16 %v1530
    %v2276 = vunpack.c.l.b16 %v1531
    %v2277 = vunpack.c.h.b16 %v1531
    %v2278 = vunpack.c.l.b16 %v1532
    %v2279 = vunpack.c.h.b16 %v1532
    %v2280 = vunpack.c.l.b16 %v1533
    %v2281 = vunpack.c.h.b16 %v1533
    %v2282 = vunpack.c.l.b16 %v1534
    %v2283 = vunpack.c.h.b16 %v1534
    %v2284 = vunpack.c.l.b16 %v1535
    %v2285 = vunpack.c.h.b16 %v1535
    %v2286 = vunpack.c.l.b16 %v1536
    %v2287 = vunpack.c.h.b16 %v1536
    %v2288 = vunpack.c.l.b16 %v1537
    %v2289 = vunpack.c.h.b16 %v1537
    %v2290 = vunpack.c.l.b16 %v1538
    %v2291 = vunpack.c.h.b16 %v1538
    %v2292 = vunpack.c.l.b16 %v1539
    %v2293 = vunpack.c.h.b16 %v1539
    %v2294 = vunpack.c.l.b16 %v1540
    %v2295 = vunpack.c.h.b16 %v1540
    %v2296 = vunpack.c.l.b16 %v1541
    %v2297 = vunpack.c.h.b16 %v1541
    %v2298 = vunpack.c.l.b16 %v1542
    %v2299 = vunpack.c.h.b16 %v1542
    %v2300 = vunpack.c.l.b16 %v1543
    %v2301 = vunpack.c.h.b16 %v1543
    %v2302 = vunpack.c.l.b16 %v1544
    %v2303 = vunpack.c.h.b16 %v1544
    %v2304 = vunpack.c.l.b16 %v1545
    %v2305 = vunpack.c.h.b16 %v1545
    %v2306 = vunpack.c.l.b16 %v1546
    %v2307 = vunpack.c.h.b16 %v1546
    %v2308 = vunpack.c.l.b16 %v1547
    %v2309 = vunpack.c.h.b16 %v1547
    %v2310 = vunpack.c.l.b16 %v1548
    %v2311 = vunpack.c.h.b16 %v1548
    %v2312 = vunpack.c.l.b16 %v1549
    %v2313 = vunpack.c.h.b16 %v1549
    %v2314 = vunpack.c.l.b16 %v1550
    %v2315 = vunpack.c.h.b16 %v1550
    %v2316 = vunpack.c.l.b16 %v1551
    %v2317 = vunpack.c.h.b16 %v1551
    %v2318 = vunpack.c.l.b16 %v1552
    %v2319 = vunpack.c.h.b16 %v1552
    %v2320 = vunpack.c.l.b16 %v1553
    %v2321 = vunpack.c.h.b16 %v1553
    %v2322 = vunpack.c.l.b16 %v1554
    %v2323 = vunpack.c.h.b16 %v1554
    %v2324 = vunpack.c.l.b16 %v1555
    %v2325 = vunpack.c.h.b16 %v1555
    %v2326 = vunpack.c.l.b16 %v1556
    %v2327 = vunpack.c.h.b16 %v1556
    %v2328 = vunpack.c.l.b16 %v1557
    %v2329 = vunpack.c.h.b16 %v1557
    %v2330 = vunpack.c.l.b16 %v1558
    %v2331 = vunpack.c.h.b16 %v1558
    %v2332 = vunpack.c.l.b16 %v1559
    %v2333 = vunpack.c.h.b16 %v1559
    %v2334 = vunpack.c.l.b16 %v1560
    %v2335 = vunpack.c.h.b16 %v1560
    %v2336 = vunpack.c.l.b16 %v1561
    %v2337 = vunpack.c.h.b16 %v1561
    %v2338 = vunpack.c.l.b16 %v1562
    %v2339 = vunpack.c.h.b16 %v1562
    %v2340 = vunpack.c.l.b16 %v1563
    %v2341 = vunpack.c.h.b16 %v1563
    %v2342 = vunpack.c.l.b16 %v1564
    %v2343 = vunpack.c.h.b16 %v1564
    %v2344 = vunpack.c.l.b16 %v1565
    %v2345 = vunpack.c.h.b16 %v1565
    %v2346 = vunpack.c.l.b16 %v1566
    %v2347 = vunpack.c.h.b16 %v1566
    %v2348 = vunpack.c.l.b16 %v1567
    %v2349 = vunpack.c.h.b16 %v1567
    %v2350 = vunpack.c.l.b16 %v1568
    %v2351 = vunpack.c.h.b16 %v1568
    %v2352 = vunpack.c.l.b16 %v1569
    %v2353 = vunpack.c.h.b16 %v1569
    %v2354 = vunpack.c.l.b16 %v1570
    %v2355 = vunpack.c.h.b16 %v1570
    %v2356 = vunpack.c.l.b16 %v1571
    %v2357 = vunpack.c.h.b16 %v1571
    %v2358 = vunpack.c.l.b16 %v1572
    %v2359 = vunpack.c.h.b16 %v1572
    %v2360 = vunpack.c.l.b16 %v1573
    %v2361 = vunpack.c.h.b16 %v1573
    %v2362 = vunpack.c.l.b16 %v1574
    %v2363 = vunpack.c.h.b16 %v1574
    %v2364 = vunpack.c.l.b16 %v1575
    %v2365 = vunpack.c.h.b16 %v1575
    %v2366 = vunpack.c.l.b16 %v1576
    %v2367 = vunpack.c.h.b16 %v1576
    %v2368 = vunpack.c.l.b16 %v1577
    %v2369 = vunpack.c.h.b16 %v1577
    %v2370 = vunpack.c.l.b16 %v1578
    %v2371 = vunpack.c.h.b16 %v1578
    %v2372 = vunpack.c.l.b16 %v1579
    %v2373 = vunpack.c.h.b16 %v1579
    %v2374 = vunpack.c.l.b16 %v1580
    %v2375 = vunpack.c.h.b16 %v1580
    %v2376 = vunpack.c.l.b16 %v1581
    %v2377 = vunpack.c.h.b16 %v1581
    %v2378 = vunpack.c.l.b16 %v1582
    %v2379 = vunpack.c.h.b16 %v1582
    %v2380 = vunpack.c.l.b16 %v1583
    %v2381 = vunpack.c.h.b16 %v1583
    %v2382 = vunpack.c.l.b16 %v1584
    %v2383 = vunpack.c.h.b16 %v1584
    %v2384 = vunpack.c.l.b16 %v1585
    %v2385 = vunpack.c.h.b16 %v1585
    %v2386 = vunpack.c.l.b16 %v1586
    %v2387 = vunpack.c.h.b16 %v1586
    %v2388 = vunpack.c.l.b16 %v1587
    %v2389 = vunpack.c.h.b16 %v1587
    %v2390 = vunpack.c.l.b16 %v1588
    %v2391 = vunpack.c.h.b16 %v1588
    %v2392 = vunpack.c.l.b16 %v1589
    %v2393 = vunpack.c.h.b16 %v1589
    %v2394 = vunpack.c.l.b16 %v1590
    %v2395 = vunpack.c.h.b16 %v1590
    %v2396 = vunpack.c.l.b16 %v1591
    %v2397 = vunpack.c.h.b16 %v1591
    %v2398 = vunpack.c.l.b16 %v1592
    %v2399 = vunpack.c.h.b16 %v1592
    %v2400 = vunpack.c.l.b16 %v1593
    %v2401 = vunpack.c.h.b16 %v1593
    %v2402 = vunpack.c.l.b16 %v1594
    %v2403 = vunpack.c.h.b16 %v1594
    %v2404 = vunpack.c.l.b16 %v1595
    %v2405 = vunpack.c.h.b16 %v1595
    %v2406 = vunpack.c.l.b16 %v1596
    %v2407 = vunpack.c.h.b16 %v1596
    %v2408 = vunpack.c.l.b16 %v1597
    %v2409 = vunpack.c.h.b16 %v1597
    %v2410 = vunpack.c.l.b16 %v1598
    %v2411 = vunpack.c.h.b16 %v1598
    %v2412 = vunpack.c.l.b16 %v1599
    %v2413 = vunpack.c.h.b16 %v1599
    %v2414 = vunpack.c.l.b16 %v1600
    %v2415 = vunpack.c.h.b16 %v1600
    %v2416 = vunpack.c.l.b16 %v1601
    %v2417 = vunpack.c.h.b16 %v1601
    %v2418 = vunpack.c.l.b16 %v1602
    %v2419 = vunpack.c.h.b16 %v1602
    %v2420 = vunpack.c.l.b16 %v1603
    %v2421 = vunpack.c.h.b16 %v1603
    %v2422 = vunpack.c.l.b16 %v1604
    %v2423 = vunpack.c.h.b16 %v1604
    %v2424 = vunpack.c.l.b16 %v1605
    %v2425 = vunpack.c.h.b16 %v1605
    %v2426 = vunpack.c.l.b16 %v1606
    %v2427 = vunpack.c.h.b16 %v1606
    %v2428 = vunpack.c.l.b16 %v1607
    %v2429 = vunpack.c.h.b16 %v1607
    %v2430 = vunpack.c.l.b16 %v1608
    %v2431 = vunpack.c.h.b16 %v1608
    %v2432 = vunpack.c.l.b16 %v1609
    %v2433 = vunpack.c.h.b16 %v1609
    %v2434 = vunpack.c.l.b16 %v1610
    %v2435 = vunpack.c.h.b16 %v1610
    %v2436 = vunpack.c.l.b16 %v1611
    %v2437 = vunpack.c.h.b16 %v1611
    %v2438 = vunpack.c.l.b16 %v1612
    %v2439 = vunpack.c.h.b16 %v1612
    %v2440 = vunpack.c.l.b16 %v1613
    %v2441 = vunpack.c.h.b16 %v1613
    %v2442 = vunpack.c.l.b16 %v1614
    %v2443 = vunpack.c.h.b16 %v1614
    %v2444 = vunpack.c.l.b16 %v1615
    %v2445 = vunpack.c.h.b16 %v1615
    %v2446 = vunpack.c.l.b16 %v1616
    %v2447 = vunpack.c.h.b16 %v1616
    %v2448 = vunpack.c.l.b16 %v1617
    %v2449 = vunpack.c.h.b16 %v1617
    %v2450 = vpack.c.b16 %v1946, %v1938
    %v2451 = vpack.c.b16 %v1947, %v1939
    %v2452 = vpack.c.b16 %v1948, %v1940
    %v2453 = vpack.c.b16 %v1949, %v1941
    %v2454 = vpack.c.b16 %v1950, %v1942
    %v2455 = vpack.c.b16 %v1951, %v1943
    %v2456 = vpack.c.b16 %v1952, %v1944
    %v2457 = vpack.c.b16 %v1953, %v1945
    %v2458 = vpack.c.b16 %v1962, %v1954
    %v2459 = vpack.c.b16 %v1963, %v1955
    %v2460 = vpack.c.b16 %v1964, %v1956
    %v2461 = vpack.c.b16 %v1965, %v1957
    %v2462 = vpack.c.b16 %v1966, %v1958
    %v2463 = vpack.c.b16 %v1967, %v1959
    %v2464 = vpack.c.b16 %v1968, %v1960
    %v2465 = vpack.c.b16 %v1969, %v1961
    %v2466 = vpack.c.b16 %v1978, %v1970
    %v2467 = vpack.c.b16 %v1979, %v1971
    %v2468 = vpack.c.b16 %v1980, %v1972
    %v2469 = vpack.c.b16 %v1981, %v1973
    %v2470 = vpack.c.b16 %v1982, %v1974
    %v2471 = vpack.c.b16 %v1983, %v1975
    %v2472 = vpack.c.b16 %v1984, %v1976
    %v2473 = vpack.c.b16 %v1985, %v1977
    %v2474 = vpack.c.b16 %v1994, %v1986
    %v2475 = vpack.c.b16 %v1995, %v1987
    %v2476 = vpack.c.b16 %v1996, %v1988
    %v2477 = vpack.c.b16 %v1997, %v1989
    %v2478 = vpack.c.b16 %v1998, %v1990
    %v2479 = vpack.c.b16 %v1999, %v1991
    %v2480 = vpack.c.b16 %v2000, %v1992
    %v2481 = vpack.c.b16 %v2001, %v1993
    %v2482 = vpack.c.b16 %v2010, %v2002
    %v2483 = vpack.c.b16 %v2011, %v2003
    %v2484 = vpack.c.b16 %v2012, %v2004
    %v2485 = vpack.c.b16 %v2013, %v2005
    %v2486 = vpack.c.b16 %v2014, %v2006
    %v2487 = vpack.c.b16 %v2015, %v2007
    %v2488 = vpack.c.b16 %v2016, %v2008
    %v2489 = vpack.c.b16 %v2017, %v2009
    %v2490 = vpack.c.b16 %v2026, %v2018
    %v2491 = vpack.c.b16 %v2027, %v2019
    %v2492 = vpack.c.b16 %v2028, %v2020
    %v2493 = vpack.c.b16 %v2029, %v2021
    %v2494 = vpack.c.b16 %v2030, %v2022
    %v2495 = vpack.c.b16 %v2031, %v2023
    %v2496 = vpack.c.b16 %v2032, %v2024
    %v2497 = vpack.c.b16 %v2033, %v2025
    %v2498 = vpack.c.b16 %v2042, %v2034
    %v2499 = vpack.c.b16 %v2043, %v2035
    %v2500 = vpack.c.b16 %v2044, %v2036
    %v2501 = vpack.c.b16 %v2045, %v2037
    %v2502 = vpack.c.b16 %v2046, %v2038
    %v2503 = vpack.c.b16 %v2047, %v2039
    %v2504 = vpack.c.b16 %v2048, %v2040
    %v2505 = vpack.c.b16 %v2049, %v2041
    %v2506 = vpack.c.b16 %v2058, %v2050
    %v2507 = vpack.c.b16 %v2059, %v2051
    %v2508 = vpack.c.b16 %v2060, %v2052
    %v2509 = vpack.c.b16 %v2061, %v2053
    %v2510 = vpack.c.b16 %v2062, %v2054
    %v2511 = vpack.c.b16 %v2063, %v2055
    %v2512 = vpack.c.b16 %v2064, %v2056
    %v2513 = vpack.c.b16 %v2065, %v2057
    %v2514 = vpack.c.b16 %v2074, %v2066
    %v2515 = vpack.c.b16 %v2075, %v2067
    %v2516 = vpack.c.b16 %v2076, %v2068
    %v2517 = vpack.c.b16 %v2077, %v2069
    %v2518 = vpack.c.b16 %v2078, %v2070
    %v2519 = vpack.c.b16 %v2079, %v2071
    %v2520 = vpack.c.b16 %v2080, %v2072
    %v2521 = vpack.c.b16 %v2081, %v2073
    %v2522 = vpack.c.b16 %v2090, %v2082
    %v2523 = vpack.c.b16 %v2091, %v2083
    %v2524 = vpack.c.b16 %v2092, %v2084
    %v2525 = vpack.c.b16 %v2093, %v2085
    %v2526 = vpack.c.b16 %v2094, %v2086
    %v2527 = vpack.c.b16 %v2095, %v2087
    %v2528 = vpack.c.b16 %v2096, %v2088
    %v2529 = vpack.c.b16 %v2097, %v2089
    %v2530 = vpack.c.b16 %v2106, %v2098
    %v2531 = vpack.c.b16 %v2107, %v2099
    %v2532 = vpack.c.b16 %v2108, %v2100
    %v2533 = vpack.c.b16 %v2109, %v2101
    %v2534 = vpack.c.b16 %v2110, %v2102
    %v2535 = vpack.c.b16 %v2111, %v2103
    %v2536 = vpack.c.b16 %v2112, %v2104
    %v2537 = vpack.c.b16 %v2113, %v2105
    %v2538 = vpack.c.b16 %v2122, %v2114
    %v2539 = vpack.c.b16 %v2123, %v2115
    %v2540 = vpack.c.b16 %v2124, %v2116
    %v2541 = vpack.c.b16 %v2125, %v2117
    %v2542 = vpack.c.b16 %v2126, %v2118
    %v2543 = vpack.c.b16 %v2127, %v2119
    %v2544 = vpack.c.b16 %v2128, %v2120
    %v2545 = vpack.c.b16 %v2129, %v2121
    %v2546 = vpack.c.b16 %v2138, %v2130
    %v2547 = vpack.c.b16 %v2139, %v2131
    %v2548 = vpack.c.b16 %v2140, %v2132
    %v2549 = vpack.c.b16 %v2141, %v2133
    %v2550 = vpack.c.b16 %v2142, %v2134
    %v2551 = vpack.c.b16 %v2143, %v2135
    %v2552 = vpack.c.b16 %v2144, %v2136
    %v2553 = vpack.c.b16 %v2145, %v2137
    %v2554 = vpack.c.b16 %v2154, %v2146
    %v2555 = vpack.c.b16 %v2155, %v2147
    %v2556 = vpack.c.b16 %v2156, %v2148
    %v2557 = vpack.c.b16 %v2157, %v2149
    %v2558 = vpack.c.b16 %v2158, %v2150
    %v2559 = vpack.c.b16 %v2159, %v2151
    %v2560 = vpack.c.b16 %v2160, %v2152
    %v2561 = vpack.c.b16 %v2161, %v2153
    %v2562 = vpack.c.b16 %v2170, %v2162
    %v2563 = vpack.c.b16 %v2171, %v2163
    %v2564 = vpack.c.b16 %v2172, %v2164
    %v2565 = vpack.c.b16 %v2173, %v2165
    %v2566 = vpack.c.b16 %v2174, %v2166
    %v2567 = vpack.c.b16 %v2175, %v2167
    %v2568 = vpack.c.b16 %v2176, %v2168
    %v2569 = vpack.c.b16 %v2177, %v2169
    %v2570 = vpack.c.b16 %v2186, %v2178
    %v2571 = vpack.c.b16 %v2187, %v2179
    %v2572 = vpack.c.b16 %v2188, %v2180
    %v2573 = vpack.c.b16 %v2189, %v2181
    %v2574 = vpack.c.b16 %v2190, %v2182
    %v2575 = vpack.c.b16 %v2191, %v2183
    %v2576 = vpack.c.b16 %v2192, %v2184
    %v2577 = vpack.c.b16 %v2193, %v2185
    %v2578 = vpack.c.b16 %v2202, %v2194
    %v2579 = vpack.c.b16 %v2203, %v2195
    %v2580 = vpack.c.b16 %v2204, %v2196
    %v2581 = vpack.c.b16 %v2205, %v2197
    %v2582 = vpack.c.b16 %v2206, %v2198
    %v2583 = vpack.c.b16 %v2207, %v2199
    %v2584 = vpack.c.b16 %v2208, %v2200
    %v2585 = vpack.c.b16 %v2209, %v2201
    %v2586 = vpack.c.b16 %v2218, %v2210
    %v2587 = vpack.c.b16 %v2219, %v2211
    %v2588 = vpack.c.b16 %v2220, %v2212
    %v2589 = vpack.c.b16 %v2221, %v2213
    %v2590 = vpack.c.b16 %v2222, %v2214
    %v2591 = vpack.c.b16 %v2223, %v2215
    %v2592 = vpack.c.b16 %v2224, %v2216
    %v2593 = vpack.c.b16 %v2225, %v2217
    %v2594 = vpack.c.b16 %v2234, %v2226
    %v2595 = vpack.c.b16 %v2235, %v2227
    %v2596 = vpack.c.b16 %v2236, %v2228
    %v2597 = vpack.c.b16 %v2237, %v2229
    %v2598 = vpack.c.b16 %v2238, %v2230
    %v2599 = vpack.c.b16 %v2239, %v2231
    %v2600 = vpack.c.b16 %v2240, %v2232
    %v2601 = vpack.c.b16 %v2241, %v2233
    %v2602 = vpack.c.b16 %v2250, %v2242
    %v2603 = vpack.c.b16 %v2251, %v2243
    %v2604 = vpack.c.b16 %v2252, %v2244
    %v2605 = vpack.c.b16 %v2253, %v2245
    %v2606 = vpack.c.b16 %v2254, %v2246
    %v2607 = vpack.c.b16 %v2255, %v2247
    %v2608 = vpack.c.b16 %v2256, %v2248
    %v2609 = vpack.c.b16 %v2257, %v2249
    %v2610 = vpack.c.b16 %v2266, %v2258
    %v2611 = vpack.c.b16 %v2267, %v2259
    %v2612 = vpack.c.b16 %v2268, %v2260
    %v2613 = vpack.c.b16 %v2269, %v2261
    %v2614 = vpack.c.b16 %v2270, %v2262
    %v2615 = vpack.c.b16 %v2271, %v2263
    %v2616 = vpack.c.b16 %v2272, %v2264
    %v2617 = vpack.c.b16 %v2273, %v2265
    %v2618 = vpack.c.b16 %v2282, %v2274
    %v2619 = vpack.c.b16 %v2283, %v2275
    %v2620 = vpack.c.b16 %v2284, %v2276
    %v2621 = vpack.c.b16 %v2285, %v2277
    %v2622 = vpack.c.b16 %v2286, %v2278
    %v2623 = vpack.c.b16 %v2287, %v2279
    %v2624 = vpack.c.b16 %v2288, %v2280
    %v2625 = vpack.c.b16 %v2289, %v2281
    %v2626 = vpack.c.b16 %v2298, %v2290
    %v2627 = vpack.c.b16 %v2299, %v2291
    %v2628 = vpack.c.b16 %v2300, %v2292
    %v2629 = vpack.c.b16 %v2301, %v2293
    %v2630 = vpack.c.b16 %v2302, %v2294
    %v2631 = vpack.c.b16 %v2303, %v2295
    %v2632 = vpack.c.b16 %v2304, %v2296
    %v2633 = vpack.c.b16 %v2305, %v2297
    %v2634 = vpack.c.b16 %v2314, %v2306
    %v2635 = vpack.c.b16 %v2315, %v2307
    %v2636 = vpack.c.b16 %v2316, %v2308
    %v2637 = vpack.c.b16 %v2317, %v2309
    %v2638 = vpack.c.b16 %v2318, %v2310
    %v2639 = vpack.c.b16 %v2319, %v2311
    %v2640 = vpack.c.b16 %v2320, %v2312
    %v2641 = vpack.c.b16 %v2321, %v2313
    %v2642 = vpack.c.b16 %v2330, %v2322
    %v2643 = vpack.c.b16 %v2331, %v2323
    %v2644 = vpack.c.b16 %v2332, %v2324
    %v2645 = vpack.c.b16 %v2333, %v2325
    %v2646 = vpack.c.b16 %v2334, %v2326
    %v2647 = vpack.c.b16 %v2335, %v2327
    %v2648 = vpack.c.b16 %v2336, %v2328
    %v2649 = vpack.c.b16 %v2337, %v2329
    %v2650 = vpack.c.b16 %v2346, %v2338
    %v2651 = vpack.c.b16 %v2347, %v2339
    %v2652 = vpack.c.b16 %v2348, %v2340
    %v2653 = vpack.c.b16 %v2349, %v2341
    %v2654 = vpack.c.b16 %v2350, %v2342
    %v2655 = vpack.c.b16 %v2351, %v2343
    %v2656 = vpack.c.b16 %v2352, %v2344
    %v2657 = vpack.c.b16 %v2353, %v2345
    %v2658 = vpack.c.b16 %v2362, %v2354
    %v2659 = vpack.c.b16 %v2363, %v2355
    %v2660 = vpack.c.b16 %v2364, %v2356
    %v2661 = vpack.c.b16 %v2365, %v2357
    %v2662 = vpack.c.b16 %v2366, %v2358
    %v2663 = vpack.c.b16 %v2367, %v2359
    %v2664 = vpack.c.b16 %v2368, %v2360
    %v2665 = vpack.c.b16 %v2369, %v2361
    %v2666 = vpack.c.b16 %v2378, %v2370
    %v2667 = vpack.c.b16 %v2379, %v2371
    %v2668 = vpack.c.b16 %v2380, %v2372
    %v2669 = vpack.c.b16 %v2381, %v2373
    %v2670 = vpack.c.b16 %v2382, %v2374
    %v2671 = vpack.c.b16 %v2383, %v2375
    %v2672 = vpack.c.b16 %v2384, %v2376
    %v2673 = vpack.c.b16 %v2385, %v2377
    %v2674 = vpack.c.b16 %v2394, %v2386
    %v2675 = vpack.c.b16 %v2395, %v2387
    %v2676 = vpack.c.b16 %v2396, %v2388
    %v2677 = vpack.c.b16 %v2397, %v2389
    %v2678 = vpack.c.b16 %v2398, %v2390
    %v2679 = vpack.c.b16 %v2399, %v2391
    %v2680 = vpack.c.b16 %v2400, %v2392
    %v2681 = vpack.c.b16 %v2401, %v2393
    %v2682 = vpack.c.b16 %v2410, %v2402
    %v2683 = vpack.c.b16 %v2411, %v2403
    %v2684 = vpack.c.b16 %v2412, %v2404
    %v2685 = vpack.c.b16 %v2413, %v2405
    %v2686 = vpack.c.b16 %v2414, %v2406
    %v2687 = vpack.c.b16 %v2415, %v2407
    %v2688 = vpack.c.b16 %v2416, %v2408
    %v2689 = vpack.c.b16 %v2417, %v2409
    %v2690 = vpack.c.b16 %v2426, %v2418
    %v2691 = vpack.c.b16 %v2427, %v2419
    %v2692 = vpack.c.b16 %v2428, %v2420
    %v2693 = vpack.c.b16 %v2429, %v2421
    %v2694 = vpack.c.b16 %v2430, %v2422
    %v2695 = vpack.c.b16 %v2431, %v2423
    %v2696 = vpack.c.b16 %v2432, %v2424
    %v2697 = vpack.c.b16 %v2433, %v2425
    %v2698 = vpack.c.b16 %v2442, %v2434
    %v2699 = vpack.c.b16 %v2443, %v2435
    %v2700 = vpack.c.b16 %v2444, %v2436
    %v2701 = vpack.c.b16 %v2445, %v2437
    %v2702 = vpack.c.b16 %v2446, %v2438
    %v2703 = vpack.c.b16 %v2447, %v2439
    %v2704 = vpack.c.b16 %v2448, %v2440
    %v2705 = vpack.c.b16 %v2449, %v2441
    %2962 = vmatprep.subr.bf16.mxu0 0
    %2963 = vmatpush1.bf16.msra.mxu0 %v1618
    %2964 = vmatprep.subr.bf16.mxu0 0
    %2965 = vmatpush1.bf16.msra.mxu0 %v1619
    %2966 = vmatprep.subr.bf16.mxu0 0
    %2967 = vmatpush1.bf16.msra.mxu0 %v1620
    %2968 = vmatprep.subr.bf16.mxu0 0
    %2969 = vmatpush1.bf16.msra.mxu0 %v1621
    %2970 = vmatprep.subr.bf16.mxu0 0
    %2971 = vmatpush1.bf16.msra.mxu0 %v1622
    %2972 = vmatprep.subr.bf16.mxu0 0
    %2973 = vmatpush1.bf16.msra.mxu0 %v1623
    %2974 = vmatprep.subr.bf16.mxu0 0
    %2975 = vmatpush1.bf16.msra.mxu0 %v1624
    %2976 = vmatprep.subr.bf16.mxu0 0
    %2977 = vmatpush1.bf16.msra.mxu0 %v1625
    %2978 = vmatprep.subr.bf16.mxu0 0
    %2979 = vmatpush1.bf16.msra.mxu0 %v1626
    %2980 = vmatprep.subr.bf16.mxu0 0
    %2981 = vmatpush1.bf16.msra.mxu0 %v1627
    %2982 = vmatprep.subr.bf16.mxu0 0
    %2983 = vmatpush1.bf16.msra.mxu0 %v1628
    %2984 = vmatprep.subr.bf16.mxu0 0
    %2985 = vmatpush1.bf16.msra.mxu0 %v1629
    %2986 = vmatprep.subr.bf16.mxu0 0
    %2987 = vmatpush1.bf16.msra.mxu0 %v1630
    %2988 = vmatprep.subr.bf16.mxu0 0
    %2989 = vmatpush1.bf16.msra.mxu0 %v1631
    %2990 = vmatprep.subr.bf16.mxu0 0
    %2991 = vmatpush1.bf16.msra.mxu0 %v1632
    %2992 = vmatprep.subr.bf16.mxu0 0
    %2993 = vmatpush1.bf16.msra.mxu0 %v1633
    %2994 = vmatprep.mubr.bf16.mxu0 %v2451
    %2995 = vmatmul.mubr.bf16.gmra.mrb[0].mxu0 %v2450
    %v2996 = vpop.f32.mrb[0].mxu0
    %v2997 = vadd.f32 0.0, %v2996
    %v2998 = vpop.f32.mrb[0].mxu0
    %v2999 = vpop.f32.mrb[0].mxu0
    %v3000 = vadd.f32 0.0, %v2999
    %v3001 = vpop.f32.mrb[0].mxu0
    %3002 = vmatprep.mubr.bf16.mxu0 %v2459
    %3003 = vmatmul.mubr.bf16.gmra.mrb[0].mxu0 %v2458
    %v3004 = vpop.f32.mrb[0].mxu0
    %v3005 = vadd.f32 0.0, %v3004
    %v3006 = vpop.f32.mrb[0].mxu0
    %v3007 = vpop.f32.mrb[0].mxu0
    %v3008 = vadd.f32 0.0, %v3007
    %v3009 = vpop.f32.mrb[0].mxu0
    %3010 = vmatprep.mubr.bf16.mxu0 %v2467
    %3011 = vmatmul.mubr.bf16.gmra.mrb[0].mxu0 %v2466
    %v3012 = vpop.f32.mrb[0].mxu0
    %v3013 = vadd.f32 0.0, %v3012
    %v3014 = vpop.f32.mrb[0].mxu0
    %v3015 = vpop.f32.mrb[0].mxu0
    %v3016 = vadd.f32 0.0, %v3015
    %v3017 = vpop.f32.mrb[0].mxu0
    %3018 = vmatprep.mubr.bf16.mxu0 %v2475
    %3019 = vmatmul.mubr.bf16.gmra.mrb[0].mxu0 %v2474
    %v3020 = vpop.f32.mrb[0].mxu0
    %v3021 = vadd.f32 0.0, %v3020
    %v3022 = vpop.f32.mrb[0].mxu0
    %v3023 = vpop.f32.mrb[0].mxu0
    %v3024 = vadd.f32 0.0, %v3023
    %v3025 = vpop.f32.mrb[0].mxu0
    %3026 = vmatprep.mubr.bf16.mxu0 %v2483
    %3027 = vmatmul.mubr.bf16.gmra.mrb[0].mxu0 %v2482
    %v3028 = vpop.f32.mrb[0].mxu0
    %v3029 = vadd.f32 0.0, %v3028
    %v3030 = vpop.f32.mrb[0].mxu0
    %v3031 = vpop.f32.mrb[0].mxu0
    %v3032 = vadd.f32 0.0, %v3031
    %v3033 = vpop.f32.mrb[0].mxu0
    %3034 = vmatprep.mubr.bf16.mxu0 %v2491
    %3035 = vmatmul.mubr.bf16.gmra.mrb[0].mxu0 %v2490
    %v3036 = vpop.f32.mrb[0].mxu0
    %v3037 = vadd.f32 0.0, %v3036
    %v3038 = vpop.f32.mrb[0].mxu0
    %v3039 = vpop.f32.mrb[0].mxu0
    %v3040 = vadd.f32 0.0, %v3039
    %v3041 = vpop.f32.mrb[0].mxu0
    %3042 = vmatprep.mubr.bf16.mxu0 %v2499
    %3043 = vmatmul.mubr.bf16.gmra.mrb[0].mxu0 %v2498
    %v3044 = vpop.f32.mrb[0].mxu0
    %v3045 = vadd.f32 0.0, %v3044
    %v3046 = vpop.f32.mrb[0].mxu0
    %v3047 = vpop.f32.mrb[0].mxu0
    %v3048 = vadd.f32 0.0, %v3047
    %v3049 = vpop.f32.mrb[0].mxu0
    %3050 = vmatprep.mubr.bf16.mxu0 %v2507
    %3051 = vmatmul.mubr.bf16.gmra.mrb[0].mxu0 %v2506
    %v3052 = vpop.f32.mrb[0].mxu0
    %v3053 = vadd.f32 0.0, %v3052
    %v3054 = vpop.f32.mrb[0].mxu0
    %v3055 = vpop.f32.mrb[0].mxu0
    %v3056 = vadd.f32 0.0, %v3055
    %v3057 = vpop.f32.mrb[0].mxu0
    %3058 = vmatprep.mubr.bf16.mxu0 %v2515
    %3059 = vmatmul.mubr.bf16.gmra.mrb[0].mxu0 %v2514
    %v3060 = vpop.f32.mrb[0].mxu0
    %v3061 = vadd.f32 0.0, %v3060
    %v3062 = vpop.f32.mrb[0].mxu0
    %v3063 = vpop.f32.mrb[0].mxu0
    %v3064 = vadd.f32 0.0, %v3063
    %v3065 = vpop.f32.mrb[0].mxu0
    %3066 = vmatprep.mubr.bf16.mxu0 %v2523
    %3067 = vmatmul.mubr.bf16.gmra.mrb[0].mxu0 %v2522
    %v3068 = vpop.f32.mrb[0].mxu0
    %v3069 = vadd.f32 0.0, %v3068
    %v3070 = vpop.f32.mrb[0].mxu0
    %v3071 = vpop.f32.mrb[0].mxu0
    %v3072 = vadd.f32 0.0, %v3071
    %v3073 = vpop.f32.mrb[0].mxu0
    %3074 = vmatprep.mubr.bf16.mxu0 %v2531
    %3075 = vmatmul.mubr.bf16.gmra.mrb[0].mxu0 %v2530
    %v3076 = vpop.f32.mrb[0].mxu0
    %v3077 = vadd.f32 0.0, %v3076
    %v3078 = vpop.f32.mrb[0].mxu0
    %v3079 = vpop.f32.mrb[0].mxu0
    %v3080 = vadd.f32 0.0, %v3079
    %v3081 = vpop.f32.mrb[0].mxu0
    %3082 = vmatprep.mubr.bf16.mxu0 %v2539
    %3083 = vmatmul.mubr.bf16.gmra.mrb[0].mxu0 %v2538
    %v3084 = vpop.f32.mrb[0].mxu0
    %v3085 = vadd.f32 0.0, %v3084
    %v3086 = vpop.f32.mrb[0].mxu0
    %v3087 = vpop.f32.mrb[0].mxu0
    %v3088 = vadd.f32 0.0, %v3087
    %v3089 = vpop.f32.mrb[0].mxu0
    %3090 = vmatprep.mubr.bf16.mxu0 %v2547
    %3091 = vmatmul.mubr.bf16.gmra.mrb[0].mxu0 %v2546
    %v3092 = vpop.f32.mrb[0].mxu0
    %v3093 = vadd.f32 0.0, %v3092
    %v3094 = vpop.f32.mrb[0].mxu0
    %v3095 = vpop.f32.mrb[0].mxu0
    %v3096 = vadd.f32 0.0, %v3095
    %v3097 = vpop.f32.mrb[0].mxu0
    %3098 = vmatprep.mubr.bf16.mxu0 %v2555
    %3099 = vmatmul.mubr.bf16.gmra.mrb[0].mxu0 %v2554
    %v3100 = vpop.f32.mrb[0].mxu0
    %v3101 = vadd.f32 0.0, %v3100
    %v3102 = vpop.f32.mrb[0].mxu0
    %v3103 = vpop.f32.mrb[0].mxu0
    %v3104 = vadd.f32 0.0, %v3103
    %v3105 = vpop.f32.mrb[0].mxu0
    %3106 = vmatprep.mubr.bf16.mxu0 %v2563
    %3107 = vmatmul.mubr.bf16.gmra.mrb[0].mxu0 %v2562
    %v3108 = vpop.f32.mrb[0].mxu0
    %v3109 = vadd.f32 0.0, %v3108
    %v3110 = vpop.f32.mrb[0].mxu0
    %v3111 = vpop.f32.mrb[0].mxu0
    %v3112 = vadd.f32 0.0, %v3111
    %v3113 = vpop.f32.mrb[0].mxu0
    %3114 = vmatprep.mubr.bf16.mxu0 %v2571
    %3115 = vmatmul.mubr.bf16.gmra.mrb[0].mxu0 %v2570
    %v3116 = vpop.f32.mrb[0].mxu0
    %v3117 = vadd.f32 0.0, %v3116
    %v3118 = vpop.f32.mrb[0].mxu0
    %v3119 = vpop.f32.mrb[0].mxu0
    %v3120 = vadd.f32 0.0, %v3119
    %v3121 = vpop.f32.mrb[0].mxu0
    %3122 = vmatprep.mubr.bf16.mxu0 %v2579
    %3123 = vmatmul.mubr.bf16.gmra.mrb[0].mxu0 %v2578
    %v3124 = vpop.f32.mrb[0].mxu0
    %v3125 = vadd.f32 0.0, %v3124
    %v3126 = vpop.f32.mrb[0].mxu0
    %v3127 = vpop.f32.mrb[0].mxu0
    %v3128 = vadd.f32 0.0, %v3127
    %v3129 = vpop.f32.mrb[0].mxu0
    %3130 = vmatprep.mubr.bf16.mxu0 %v2587
    %3131 = vmatmul.mubr.bf16.gmra.mrb[0].mxu0 %v2586
    %v3132 = vpop.f32.mrb[0].mxu0
    %v3133 = vadd.f32 0.0, %v3132
    %v3134 = vpop.f32.mrb[0].mxu0
    %v3135 = vpop.f32.mrb[0].mxu0
    %v3136 = vadd.f32 0.0, %v3135
    %v3137 = vpop.f32.mrb[0].mxu0
    %3138 = vmatprep.mubr.bf16.mxu0 %v2595
    %3139 = vmatmul.mubr.bf16.gmra.mrb[0].mxu0 %v2594
    %v3140 = vpop.f32.mrb[0].mxu0
    %v3141 = vadd.f32 0.0, %v3140
    %v3142 = vpop.f32.mrb[0].mxu0
    %v3143 = vpop.f32.mrb[0].mxu0
    %v3144 = vadd.f32 0.0, %v3143
    %v3145 = vpop.f32.mrb[0].mxu0
    %3146 = vmatprep.mubr.bf16.mxu0 %v2603
    %3147 = vmatmul.mubr.bf16.gmra.mrb[0].mxu0 %v2602
    %v3148 = vpop.f32.mrb[0].mxu0
    %v3149 = vadd.f32 0.0, %v3148
    %v3150 = vpop.f32.mrb[0].mxu0
    %v3151 = vpop.f32.mrb[0].mxu0
    %v3152 = vadd.f32 0.0, %v3151
    %v3153 = vpop.f32.mrb[0].mxu0
    %3154 = vmatprep.mubr.bf16.mxu0 %v2611
    %3155 = vmatmul.mubr.bf16.gmra.mrb[0].mxu0 %v2610
    %v3156 = vpop.f32.mrb[0].mxu0
    %v3157 = vadd.f32 0.0, %v3156
    %v3158 = vpop.f32.mrb[0].mxu0
    %v3159 = vpop.f32.mrb[0].mxu0
    %v3160 = vadd.f32 0.0, %v3159
    %v3161 = vpop.f32.mrb[0].mxu0
    %3162 = vmatprep.mubr.bf16.mxu0 %v2619
    %3163 = vmatmul.mubr.bf16.gmra.mrb[0].mxu0 %v2618
    %v3164 = vpop.f32.mrb[0].mxu0
    %v3165 = vadd.f32 0.0, %v3164
    %v3166 = vpop.f32.mrb[0].mxu0
    %v3167 = vpop.f32.mrb[0].mxu0
    %v3168 = vadd.f32 0.0, %v3167
    %v3169 = vpop.f32.mrb[0].mxu0
    %3170 = vmatprep.mubr.bf16.mxu0 %v2627
    %3171 = vmatmul.mubr.bf16.gmra.mrb[0].mxu0 %v2626
    %v3172 = vpop.f32.mrb[0].mxu0
    %v3173 = vadd.f32 0.0, %v3172
    %v3174 = vpop.f32.mrb[0].mxu0
    %v3175 = vpop.f32.mrb[0].mxu0
    %v3176 = vadd.f32 0.0, %v3175
    %v3177 = vpop.f32.mrb[0].mxu0
    %3178 = vmatprep.mubr.bf16.mxu0 %v2635
    %3179 = vmatmul.mubr.bf16.gmra.mrb[0].mxu0 %v2634
    %v3180 = vpop.f32.mrb[0].mxu0
    %v3181 = vadd.f32 0.0, %v3180
    %v3182 = vpop.f32.mrb[0].mxu0
    %v3183 = vpop.f32.mrb[0].mxu0
    %v3184 = vadd.f32 0.0, %v3183
    %v3185 = vpop.f32.mrb[0].mxu0
    %3186 = vmatprep.mubr.bf16.mxu0 %v2643
    %3187 = vmatmul.mubr.bf16.gmra.mrb[0].mxu0 %v2642
    %v3188 = vpop.f32.mrb[0].mxu0
    %v3189 = vadd.f32 0.0, %v3188
    %v3190 = vpop.f32.mrb[0].mxu0
    %v3191 = vpop.f32.mrb[0].mxu0
    %v3192 = vadd.f32 0.0, %v3191
    %v3193 = vpop.f32.mrb[0].mxu0
    %3194 = vmatprep.mubr.bf16.mxu0 %v2651
    %3195 = vmatmul.mubr.bf16.gmra.mrb[0].mxu0 %v2650
    %v3196 = vpop.f32.mrb[0].mxu0
    %v3197 = vadd.f32 0.0, %v3196
    %v3198 = vpop.f32.mrb[0].mxu0
    %v3199 = vpop.f32.mrb[0].mxu0
    %v3200 = vadd.f32 0.0, %v3199
    %v3201 = vpop.f32.mrb[0].mxu0
    %3202 = vmatprep.mubr.bf16.mxu0 %v2659
    %3203 = vmatmul.mubr.bf16.gmra.mrb[0].mxu0 %v2658
    %v3204 = vpop.f32.mrb[0].mxu0
    %v3205 = vadd.f32 0.0, %v3204
    %v3206 = vpop.f32.mrb[0].mxu0
    %v3207 = vpop.f32.mrb[0].mxu0
    %v3208 = vadd.f32 0.0, %v3207
    %v3209 = vpop.f32.mrb[0].mxu0
    %3210 = vmatprep.mubr.bf16.mxu0 %v2667
    %3211 = vmatmul.mubr.bf16.gmra.mrb[0].mxu0 %v2666
    %v3212 = vpop.f32.mrb[0].mxu0
    %v3213 = vadd.f32 0.0, %v3212
    %v3214 = vpop.f32.mrb[0].mxu0
    %v3215 = vpop.f32.mrb[0].mxu0
    %v3216 = vadd.f32 0.0, %v3215
    %v3217 = vpop.f32.mrb[0].mxu0
    %3218 = vmatprep.mubr.bf16.mxu0 %v2675
    %3219 = vmatmul.mubr.bf16.gmra.mrb[0].mxu0 %v2674
    %v3220 = vpop.f32.mrb[0].mxu0
    %v3221 = vadd.f32 0.0, %v3220
    %v3222 = vpop.f32.mrb[0].mxu0
    %v3223 = vpop.f32.mrb[0].mxu0
    %v3224 = vadd.f32 0.0, %v3223
    %v3225 = vpop.f32.mrb[0].mxu0
    %3226 = vmatprep.mubr.bf16.mxu0 %v2683
    %3227 = vmatmul.mubr.bf16.gmra.mrb[0].mxu0 %v2682
    %v3228 = vpop.f32.mrb[0].mxu0
    %v3229 = vadd.f32 0.0, %v3228
    %v3230 = vpop.f32.mrb[0].mxu0
    %v3231 = vpop.f32.mrb[0].mxu0
    %v3232 = vadd.f32 0.0, %v3231
    %v3233 = vpop.f32.mrb[0].mxu0
    %3234 = vmatprep.mubr.bf16.mxu0 %v2691
    %3235 = vmatmul.mubr.bf16.gmra.mrb[0].mxu0 %v2690
    %v3236 = vpop.f32.mrb[0].mxu0
    %v3237 = vadd.f32 0.0, %v3236
    %v3238 = vpop.f32.mrb[0].mxu0
    %v3239 = vpop.f32.mrb[0].mxu0
    %v3240 = vadd.f32 0.0, %v3239
    %v3241 = vpop.f32.mrb[0].mxu0
    %3242 = vmatprep.mubr.bf16.mxu0 %v2699
    %3243 = vmatmul.mubr.bf16.gmra.mrb[0].mxu0 %v2698
    %v3244 = vpop.f32.mrb[0].mxu0
    %v3245 = vadd.f32 0.0, %v3244
    %v3246 = vpop.f32.mrb[0].mxu0
    %v3247 = vpop.f32.mrb[0].mxu0
    %v3248 = vadd.f32 0.0, %v3247
    %v3249 = vpop.f32.mrb[0].mxu0
    %3250 = vdwg.mxu0
    %3251 = vmatprep.subr.bf16.mxu0 0
    %3252 = vmatpush1.bf16.msra.mxu0 %v1634
    %3253 = vmatprep.subr.bf16.mxu0 0
    %3254 = vmatpush1.bf16.msra.mxu0 %v1635
    %3255 = vmatprep.subr.bf16.mxu0 0
    %3256 = vmatpush1.bf16.msra.mxu0 %v1636
    %3257 = vmatprep.subr.bf16.mxu0 0
    %3258 = vmatpush1.bf16.msra.mxu0 %v1637
    %3259 = vmatprep.subr.bf16.mxu0 0
    %3260 = vmatpush1.bf16.msra.mxu0 %v1638
    %3261 = vmatprep.subr.bf16.mxu0 0
    %3262 = vmatpush1.bf16.msra.mxu0 %v1639
    %3263 = vmatprep.subr.bf16.mxu0 0
    %3264 = vmatpush1.bf16.msra.mxu0 %v1640
    %3265 = vmatprep.subr.bf16.mxu0 0
    %3266 = vmatpush1.bf16.msra.mxu0 %v1641
    %3267 = vmatprep.subr.bf16.mxu0 0
    %3268 = vmatpush1.bf16.msra.mxu0 %v1642
    %3269 = vmatprep.subr.bf16.mxu0 0
    %3270 = vmatpush1.bf16.msra.mxu0 %v1643
    %3271 = vmatprep.subr.bf16.mxu0 0
    %3272 = vmatpush1.bf16.msra.mxu0 %v1644
    %3273 = vmatprep.subr.bf16.mxu0 0
    %3274 = vmatpush1.bf16.msra.mxu0 %v1645
    %3275 = vmatprep.subr.bf16.mxu0 0
    %3276 = vmatpush1.bf16.msra.mxu0 %v1646
    %3277 = vmatprep.subr.bf16.mxu0 0
    %3278 = vmatpush1.bf16.msra.mxu0 %v1647
    %3279 = vmatprep.subr.bf16.mxu0 0
    %3280 = vmatpush1.bf16.msra.mxu0 %v1648
    %3281 = vmatprep.subr.bf16.mxu0 0
    %3282 = vmatpush1.bf16.msra.mxu0 %v1649
    %3283 = vmatprep.mubr.bf16.mxu0 %v2453
    %3284 = vmatmul.mubr.bf16.gmra.mrb[0].mxu0 %v2452
    %v3285 = vpop.f32.mrb[0].mxu0
    %v3286 = vadd.f32 %v2997, %v3285
    %v3287 = vpop.f32.mrb[0].mxu0
    %v3288 = vpop.f32.mrb[0].mxu0
    %v3289 = vadd.f32 %v3000, %v3288
    %v3290 = vpop.f32.mrb[0].mxu0
    %3291 = vmatprep.mubr.bf16.mxu0 %v2461
    %3292 = vmatmul.mubr.bf16.gmra.mrb[0].mxu0 %v2460
    %v3293 = vpop.f32.mrb[0].mxu0
    %v3294 = vadd.f32 %v3005, %v3293
    %v3295 = vpop.f32.mrb[0].mxu0
    %v3296 = vpop.f32.mrb[0].mxu0
    %v3297 = vadd.f32 %v3008, %v3296
    %v3298 = vpop.f32.mrb[0].mxu0
    %3299 = vmatprep.mubr.bf16.mxu0 %v2469
    %3300 = vmatmul.mubr.bf16.gmra.mrb[0].mxu0 %v2468
    %v3301 = vpop.f32.mrb[0].mxu0
    %v3302 = vadd.f32 %v3013, %v3301
    %v3303 = vpop.f32.mrb[0].mxu0
    %v3304 = vpop.f32.mrb[0].mxu0
    %v3305 = vadd.f32 %v3016, %v3304
    %v3306 = vpop.f32.mrb[0].mxu0
    %3307 = vmatprep.mubr.bf16.mxu0 %v2477
    %3308 = vmatmul.mubr.bf16.gmra.mrb[0].mxu0 %v2476
    %v3309 = vpop.f32.mrb[0].mxu0
    %v3310 = vadd.f32 %v3021, %v3309
    %v3311 = vpop.f32.mrb[0].mxu0
    %v3312 = vpop.f32.mrb[0].mxu0
    %v3313 = vadd.f32 %v3024, %v3312
    %v3314 = vpop.f32.mrb[0].mxu0
    %3315 = vmatprep.mubr.bf16.mxu0 %v2485
    %3316 = vmatmul.mubr.bf16.gmra.mrb[0].mxu0 %v2484
    %v3317 = vpop.f32.mrb[0].mxu0
    %v3318 = vadd.f32 %v3029, %v3317
    %v3319 = vpop.f32.mrb[0].mxu0
    %v3320 = vpop.f32.mrb[0].mxu0
    %v3321 = vadd.f32 %v3032, %v3320
    %v3322 = vpop.f32.mrb[0].mxu0
    %3323 = vmatprep.mubr.bf16.mxu0 %v2493
    %3324 = vmatmul.mubr.bf16.gmra.mrb[0].mxu0 %v2492
    %v3325 = vpop.f32.mrb[0].mxu0
    %v3326 = vadd.f32 %v3037, %v3325
    %v3327 = vpop.f32.mrb[0].mxu0
    %v3328 = vpop.f32.mrb[0].mxu0
    %v3329 = vadd.f32 %v3040, %v3328
    %v3330 = vpop.f32.mrb[0].mxu0
    %3331 = vmatprep.mubr.bf16.mxu0 %v2501
    %3332 = vmatmul.mubr.bf16.gmra.mrb[0].mxu0 %v2500
    %v3333 = vpop.f32.mrb[0].mxu0
    %v3334 = vadd.f32 %v3045, %v3333
    %v3335 = vpop.f32.mrb[0].mxu0
    %v3336 = vpop.f32.mrb[0].mxu0
    %v3337 = vadd.f32 %v3048, %v3336
    %v3338 = vpop.f32.mrb[0].mxu0
    %3339 = vmatprep.mubr.bf16.mxu0 %v2509
    %3340 = vmatmul.mubr.bf16.gmra.mrb[0].mxu0 %v2508
    %v3341 = vpop.f32.mrb[0].mxu0
    %v3342 = vadd.f32 %v3053, %v3341
    %v3343 = vpop.f32.mrb[0].mxu0
    %v3344 = vpop.f32.mrb[0].mxu0
    %v3345 = vadd.f32 %v3056, %v3344
    %v3346 = vpop.f32.mrb[0].mxu0
    %3347 = vmatprep.mubr.bf16.mxu0 %v2517
    %3348 = vmatmul.mubr.bf16.gmra.mrb[0].mxu0 %v2516
    %v3349 = vpop.f32.mrb[0].mxu0
    %v3350 = vadd.f32 %v3061, %v3349
    %v3351 = vpop.f32.mrb[0].mxu0
    %v3352 = vpop.f32.mrb[0].mxu0
    %v3353 = vadd.f32 %v3064, %v3352
    %v3354 = vpop.f32.mrb[0].mxu0
    %3355 = vmatprep.mubr.bf16.mxu0 %v2525
    %3356 = vmatmul.mubr.bf16.gmra.mrb[0].mxu0 %v2524
    %v3357 = vpop.f32.mrb[0].mxu0
    %v3358 = vadd.f32 %v3069, %v3357
    %v3359 = vpop.f32.mrb[0].mxu0
    %v3360 = vpop.f32.mrb[0].mxu0
    %v3361 = vadd.f32 %v3072, %v3360
    %v3362 = vpop.f32.mrb[0].mxu0
    %3363 = vmatprep.mubr.bf16.mxu0 %v2533
    %3364 = vmatmul.mubr.bf16.gmra.mrb[0].mxu0 %v2532
    %v3365 = vpop.f32.mrb[0].mxu0
    %v3366 = vadd.f32 %v3077, %v3365
    %v3367 = vpop.f32.mrb[0].mxu0
    %v3368 = vpop.f32.mrb[0].mxu0
    %v3369 = vadd.f32 %v3080, %v3368
    %v3370 = vpop.f32.mrb[0].mxu0
    %3371 = vmatprep.mubr.bf16.mxu0 %v2541
    %3372 = vmatmul.mubr.bf16.gmra.mrb[0].mxu0 %v2540
    %v3373 = vpop.f32.mrb[0].mxu0
    %v3374 = vadd.f32 %v3085, %v3373
    %v3375 = vpop.f32.mrb[0].mxu0
    %v3376 = vpop.f32.mrb[0].mxu0
    %v3377 = vadd.f32 %v3088, %v3376
    %v3378 = vpop.f32.mrb[0].mxu0
    %3379 = vmatprep.mubr.bf16.mxu0 %v2549
    %3380 = vmatmul.mubr.bf16.gmra.mrb[0].mxu0 %v2548
    %v3381 = vpop.f32.mrb[0].mxu0
    %v3382 = vadd.f32 %v3093, %v3381
    %v3383 = vpop.f32.mrb[0].mxu0
    %v3384 = vpop.f32.mrb[0].mxu0
    %v3385 = vadd.f32 %v3096, %v3384
    %v3386 = vpop.f32.mrb[0].mxu0
    %3387 = vmatprep.mubr.bf16.mxu0 %v2557
    %3388 = vmatmul.mubr.bf16.gmra.mrb[0].mxu0 %v2556
    %v3389 = vpop.f32.mrb[0].mxu0
    %v3390 = vadd.f32 %v3101, %v3389
    %v3391 = vpop.f32.mrb[0].mxu0
    %v3392 = vpop.f32.mrb[0].mxu0
    %v3393 = vadd.f32 %v3104, %v3392
    %v3394 = vpop.f32.mrb[0].mxu0
    %3395 = vmatprep.mubr.bf16.mxu0 %v2565
    %3396 = vmatmul.mubr.bf16.gmra.mrb[0].mxu0 %v2564
    %v3397 = vpop.f32.mrb[0].mxu0
    %v3398 = vadd.f32 %v3109, %v3397
    %v3399 = vpop.f32.mrb[0].mxu0
    %v3400 = vpop.f32.mrb[0].mxu0
    %v3401 = vadd.f32 %v3112, %v3400
    %v3402 = vpop.f32.mrb[0].mxu0
    %3403 = vmatprep.mubr.bf16.mxu0 %v2573
    %3404 = vmatmul.mubr.bf16.gmra.mrb[0].mxu0 %v2572
    %v3405 = vpop.f32.mrb[0].mxu0
    %v3406 = vadd.f32 %v3117, %v3405
    %v3407 = vpop.f32.mrb[0].mxu0
    %v3408 = vpop.f32.mrb[0].mxu0
    %v3409 = vadd.f32 %v3120, %v3408
    %v3410 = vpop.f32.mrb[0].mxu0
    %3411 = vmatprep.mubr.bf16.mxu0 %v2581
    %3412 = vmatmul.mubr.bf16.gmra.mrb[0].mxu0 %v2580
    %v3413 = vpop.f32.mrb[0].mxu0
    %v3414 = vadd.f32 %v3125, %v3413
    %v3415 = vpop.f32.mrb[0].mxu0
    %v3416 = vpop.f32.mrb[0].mxu0
    %v3417 = vadd.f32 %v3128, %v3416
    %v3418 = vpop.f32.mrb[0].mxu0
    %3419 = vmatprep.mubr.bf16.mxu0 %v2589
    %3420 = vmatmul.mubr.bf16.gmra.mrb[0].mxu0 %v2588
    %v3421 = vpop.f32.mrb[0].mxu0
    %v3422 = vadd.f32 %v3133, %v3421
    %v3423 = vpop.f32.mrb[0].mxu0
    %v3424 = vpop.f32.mrb[0].mxu0
    %v3425 = vadd.f32 %v3136, %v3424
    %v3426 = vpop.f32.mrb[0].mxu0
    %3427 = vmatprep.mubr.bf16.mxu0 %v2597
    %3428 = vmatmul.mubr.bf16.gmra.mrb[0].mxu0 %v2596
    %v3429 = vpop.f32.mrb[0].mxu0
    %v3430 = vadd.f32 %v3141, %v3429
    %v3431 = vpop.f32.mrb[0].mxu0
    %v3432 = vpop.f32.mrb[0].mxu0
    %v3433 = vadd.f32 %v3144, %v3432
    %v3434 = vpop.f32.mrb[0].mxu0
    %3435 = vmatprep.mubr.bf16.mxu0 %v2605
    %3436 = vmatmul.mubr.bf16.gmra.mrb[0].mxu0 %v2604
    %v3437 = vpop.f32.mrb[0].mxu0
    %v3438 = vadd.f32 %v3149, %v3437
    %v3439 = vpop.f32.mrb[0].mxu0
    %v3440 = vpop.f32.mrb[0].mxu0
    %v3441 = vadd.f32 %v3152, %v3440
    %v3442 = vpop.f32.mrb[0].mxu0
    %3443 = vmatprep.mubr.bf16.mxu0 %v2613
    %3444 = vmatmul.mubr.bf16.gmra.mrb[0].mxu0 %v2612
    %v3445 = vpop.f32.mrb[0].mxu0
    %v3446 = vadd.f32 %v3157, %v3445
    %v3447 = vpop.f32.mrb[0].mxu0
    %v3448 = vpop.f32.mrb[0].mxu0
    %v3449 = vadd.f32 %v3160, %v3448
    %v3450 = vpop.f32.mrb[0].mxu0
    %3451 = vmatprep.mubr.bf16.mxu0 %v2621
    %3452 = vmatmul.mubr.bf16.gmra.mrb[0].mxu0 %v2620
    %v3453 = vpop.f32.mrb[0].mxu0
    %v3454 = vadd.f32 %v3165, %v3453
    %v3455 = vpop.f32.mrb[0].mxu0
    %v3456 = vpop.f32.mrb[0].mxu0
    %v3457 = vadd.f32 %v3168, %v3456
    %v3458 = vpop.f32.mrb[0].mxu0
    %3459 = vmatprep.mubr.bf16.mxu0 %v2629
    %3460 = vmatmul.mubr.bf16.gmra.mrb[0].mxu0 %v2628
    %v3461 = vpop.f32.mrb[0].mxu0
    %v3462 = vadd.f32 %v3173, %v3461
    %v3463 = vpop.f32.mrb[0].mxu0
    %v3464 = vpop.f32.mrb[0].mxu0
    %v3465 = vadd.f32 %v3176, %v3464
    %v3466 = vpop.f32.mrb[0].mxu0
    %3467 = vmatprep.mubr.bf16.mxu0 %v2637
    %3468 = vmatmul.mubr.bf16.gmra.mrb[0].mxu0 %v2636
    %v3469 = vpop.f32.mrb[0].mxu0
    %v3470 = vadd.f32 %v3181, %v3469
    %v3471 = vpop.f32.mrb[0].mxu0
    %v3472 = vpop.f32.mrb[0].mxu0
    %v3473 = vadd.f32 %v3184, %v3472
    %v3474 = vpop.f32.mrb[0].mxu0
    %3475 = vmatprep.mubr.bf16.mxu0 %v2645
    %3476 = vmatmul.mubr.bf16.gmra.mrb[0].mxu0 %v2644
    %v3477 = vpop.f32.mrb[0].mxu0
    %v3478 = vadd.f32 %v3189, %v3477
    %v3479 = vpop.f32.mrb[0].mxu0
    %v3480 = vpop.f32.mrb[0].mxu0
    %v3481 = vadd.f32 %v3192, %v3480
    %v3482 = vpop.f32.mrb[0].mxu0
    %3483 = vmatprep.mubr.bf16.mxu0 %v2653
    %3484 = vmatmul.mubr.bf16.gmra.mrb[0].mxu0 %v2652
    %v3485 = vpop.f32.mrb[0].mxu0
    %v3486 = vadd.f32 %v3197, %v3485
    %v3487 = vpop.f32.mrb[0].mxu0
    %v3488 = vpop.f32.mrb[0].mxu0
    %v3489 = vadd.f32 %v3200, %v3488
    %v3490 = vpop.f32.mrb[0].mxu0
    %3491 = vmatprep.mubr.bf16.mxu0 %v2661
    %3492 = vmatmul.mubr.bf16.gmra.mrb[0].mxu0 %v2660
    %v3493 = vpop.f32.mrb[0].mxu0
    %v3494 = vadd.f32 %v3205, %v3493
    %v3495 = vpop.f32.mrb[0].mxu0
    %v3496 = vpop.f32.mrb[0].mxu0
    %v3497 = vadd.f32 %v3208, %v3496
    %v3498 = vpop.f32.mrb[0].mxu0
    %3499 = vmatprep.mubr.bf16.mxu0 %v2669
    %3500 = vmatmul.mubr.bf16.gmra.mrb[0].mxu0 %v2668
    %v3501 = vpop.f32.mrb[0].mxu0
    %v3502 = vadd.f32 %v3213, %v3501
    %v3503 = vpop.f32.mrb[0].mxu0
    %v3504 = vpop.f32.mrb[0].mxu0
    %v3505 = vadd.f32 %v3216, %v3504
    %v3506 = vpop.f32.mrb[0].mxu0
    %3507 = vmatprep.mubr.bf16.mxu0 %v2677
    %3508 = vmatmul.mubr.bf16.gmra.mrb[0].mxu0 %v2676
    %v3509 = vpop.f32.mrb[0].mxu0
    %v3510 = vadd.f32 %v3221, %v3509
    %v3511 = vpop.f32.mrb[0].mxu0
    %v3512 = vpop.f32.mrb[0].mxu0
    %v3513 = vadd.f32 %v3224, %v3512
    %v3514 = vpop.f32.mrb[0].mxu0
    %3515 = vmatprep.mubr.bf16.mxu0 %v2685
    %3516 = vmatmul.mubr.bf16.gmra.mrb[0].mxu0 %v2684
    %v3517 = vpop.f32.mrb[0].mxu0
    %v3518 = vadd.f32 %v3229, %v3517
    %v3519 = vpop.f32.mrb[0].mxu0
    %v3520 = vpop.f32.mrb[0].mxu0
    %v3521 = vadd.f32 %v3232, %v3520
    %v3522 = vpop.f32.mrb[0].mxu0
    %3523 = vmatprep.mubr.bf16.mxu0 %v2693
    %3524 = vmatmul.mubr.bf16.gmra.mrb[0].mxu0 %v2692
    %v3525 = vpop.f32.mrb[0].mxu0
    %v3526 = vadd.f32 %v3237, %v3525
    %v3527 = vpop.f32.mrb[0].mxu0
    %v3528 = vpop.f32.mrb[0].mxu0
    %v3529 = vadd.f32 %v3240, %v3528
    %v3530 = vpop.f32.mrb[0].mxu0
    %3531 = vmatprep.mubr.bf16.mxu0 %v2701
    %3532 = vmatmul.mubr.bf16.gmra.mrb[0].mxu0 %v2700
    %v3533 = vpop.f32.mrb[0].mxu0
    %v3534 = vadd.f32 %v3245, %v3533
    %v3535 = vpop.f32.mrb[0].mxu0
    %v3536 = vpop.f32.mrb[0].mxu0
    %v3537 = vadd.f32 %v3248, %v3536
    %v3538 = vpop.f32.mrb[0].mxu0
    %3539 = vdwg.mxu0
    %3540 = vmatprep.subr.bf16.mxu0 0
    %3541 = vmatpush1.bf16.msra.mxu0 %v1650
    %3542 = vmatprep.subr.bf16.mxu0 0
    %3543 = vmatpush1.bf16.msra.mxu0 %v1651
    %3544 = vmatprep.subr.bf16.mxu0 0
    %3545 = vmatpush1.bf16.msra.mxu0 %v1652
    %3546 = vmatprep.subr.bf16.mxu0 0
    %3547 = vmatpush1.bf16.msra.mxu0 %v1653
    %3548 = vmatprep.subr.bf16.mxu0 0
    %3549 = vmatpush1.bf16.msra.mxu0 %v1654
    %3550 = vmatprep.subr.bf16.mxu0 0
    %3551 = vmatpush1.bf16.msra.mxu0 %v1655
    %3552 = vmatprep.subr.bf16.mxu0 0
    %3553 = vmatpush1.bf16.msra.mxu0 %v1656
    %3554 = vmatprep.subr.bf16.mxu0 0
    %3555 = vmatpush1.bf16.msra.mxu0 %v1657
    %3556 = vmatprep.subr.bf16.mxu0 0
    %3557 = vmatpush1.bf16.msra.mxu0 %v1658
    %3558 = vmatprep.subr.bf16.mxu0 0
    %3559 = vmatpush1.bf16.msra.mxu0 %v1659
    %3560 = vmatprep.subr.bf16.mxu0 0
    %3561 = vmatpush1.bf16.msra.mxu0 %v1660
    %3562 = vmatprep.subr.bf16.mxu0 0
    %3563 = vmatpush1.bf16.msra.mxu0 %v1661
    %3564 = vmatprep.subr.bf16.mxu0 0
    %3565 = vmatpush1.bf16.msra.mxu0 %v1662
    %3566 = vmatprep.subr.bf16.mxu0 0
    %3567 = vmatpush1.bf16.msra.mxu0 %v1663
    %3568 = vmatprep.subr.bf16.mxu0 0
    %3569 = vmatpush1.bf16.msra.mxu0 %v1664
    %3570 = vmatprep.subr.bf16.mxu0 0
    %3571 = vmatpush1.bf16.msra.mxu0 %v1665
    %3572 = vmatprep.mubr.bf16.mxu0 %v2455
    %3573 = vmatmul.mubr.bf16.gmra.mrb[0].mxu0 %v2454
    %v3574 = vpop.f32.mrb[0].mxu0
    %v3575 = vadd.f32 %v3286, %v3574
    %v3576 = vpop.f32.mrb[0].mxu0
    %v3577 = vpop.f32.mrb[0].mxu0
    %v3578 = vadd.f32 %v3289, %v3577
    %v3579 = vpop.f32.mrb[0].mxu0
    %3580 = vmatprep.mubr.bf16.mxu0 %v2463
    %3581 = vmatmul.mubr.bf16.gmra.mrb[0].mxu0 %v2462
    %v3582 = vpop.f32.mrb[0].mxu0
    %v3583 = vadd.f32 %v3294, %v3582
    %v3584 = vpop.f32.mrb[0].mxu0
    %v3585 = vpop.f32.mrb[0].mxu0
    %v3586 = vadd.f32 %v3297, %v3585
    %v3587 = vpop.f32.mrb[0].mxu0
    %3588 = vmatprep.mubr.bf16.mxu0 %v2471
    %3589 = vmatmul.mubr.bf16.gmra.mrb[0].mxu0 %v2470
    %v3590 = vpop.f32.mrb[0].mxu0
    %v3591 = vadd.f32 %v3302, %v3590
    %v3592 = vpop.f32.mrb[0].mxu0
    %v3593 = vpop.f32.mrb[0].mxu0
    %v3594 = vadd.f32 %v3305, %v3593
    %v3595 = vpop.f32.mrb[0].mxu0
    %3596 = vmatprep.mubr.bf16.mxu0 %v2479
    %3597 = vmatmul.mubr.bf16.gmra.mrb[0].mxu0 %v2478
    %v3598 = vpop.f32.mrb[0].mxu0
    %v3599 = vadd.f32 %v3310, %v3598
    %v3600 = vpop.f32.mrb[0].mxu0
    %v3601 = vpop.f32.mrb[0].mxu0
    %v3602 = vadd.f32 %v3313, %v3601
    %v3603 = vpop.f32.mrb[0].mxu0
    %3604 = vmatprep.mubr.bf16.mxu0 %v2487
    %3605 = vmatmul.mubr.bf16.gmra.mrb[0].mxu0 %v2486
    %v3606 = vpop.f32.mrb[0].mxu0
    %v3607 = vadd.f32 %v3318, %v3606
    %v3608 = vpop.f32.mrb[0].mxu0
    %v3609 = vpop.f32.mrb[0].mxu0
    %v3610 = vadd.f32 %v3321, %v3609
    %v3611 = vpop.f32.mrb[0].mxu0
    %3612 = vmatprep.mubr.bf16.mxu0 %v2495
    %3613 = vmatmul.mubr.bf16.gmra.mrb[0].mxu0 %v2494
    %v3614 = vpop.f32.mrb[0].mxu0
    %v3615 = vadd.f32 %v3326, %v3614
    %v3616 = vpop.f32.mrb[0].mxu0
    %v3617 = vpop.f32.mrb[0].mxu0
    %v3618 = vadd.f32 %v3329, %v3617
    %v3619 = vpop.f32.mrb[0].mxu0
    %3620 = vmatprep.mubr.bf16.mxu0 %v2503
    %3621 = vmatmul.mubr.bf16.gmra.mrb[0].mxu0 %v2502
    %v3622 = vpop.f32.mrb[0].mxu0
    %v3623 = vadd.f32 %v3334, %v3622
    %v3624 = vpop.f32.mrb[0].mxu0
    %v3625 = vpop.f32.mrb[0].mxu0
    %v3626 = vadd.f32 %v3337, %v3625
    %v3627 = vpop.f32.mrb[0].mxu0
    %3628 = vmatprep.mubr.bf16.mxu0 %v2511
    %3629 = vmatmul.mubr.bf16.gmra.mrb[0].mxu0 %v2510
    %v3630 = vpop.f32.mrb[0].mxu0
    %v3631 = vadd.f32 %v3342, %v3630
    %v3632 = vpop.f32.mrb[0].mxu0
    %v3633 = vpop.f32.mrb[0].mxu0
    %v3634 = vadd.f32 %v3345, %v3633
    %v3635 = vpop.f32.mrb[0].mxu0
    %3636 = vmatprep.mubr.bf16.mxu0 %v2519
    %3637 = vmatmul.mubr.bf16.gmra.mrb[0].mxu0 %v2518
    %v3638 = vpop.f32.mrb[0].mxu0
    %v3639 = vadd.f32 %v3350, %v3638
    %v3640 = vpop.f32.mrb[0].mxu0
    %v3641 = vpop.f32.mrb[0].mxu0
    %v3642 = vadd.f32 %v3353, %v3641
    %v3643 = vpop.f32.mrb[0].mxu0
    %3644 = vmatprep.mubr.bf16.mxu0 %v2527
    %3645 = vmatmul.mubr.bf16.gmra.mrb[0].mxu0 %v2526
    %v3646 = vpop.f32.mrb[0].mxu0
    %v3647 = vadd.f32 %v3358, %v3646
    %v3648 = vpop.f32.mrb[0].mxu0
    %v3649 = vpop.f32.mrb[0].mxu0
    %v3650 = vadd.f32 %v3361, %v3649
    %v3651 = vpop.f32.mrb[0].mxu0
    %3652 = vmatprep.mubr.bf16.mxu0 %v2535
    %3653 = vmatmul.mubr.bf16.gmra.mrb[0].mxu0 %v2534
    %v3654 = vpop.f32.mrb[0].mxu0
    %v3655 = vadd.f32 %v3366, %v3654
    %v3656 = vpop.f32.mrb[0].mxu0
    %v3657 = vpop.f32.mrb[0].mxu0
    %v3658 = vadd.f32 %v3369, %v3657
    %v3659 = vpop.f32.mrb[0].mxu0
    %3660 = vmatprep.mubr.bf16.mxu0 %v2543
    %3661 = vmatmul.mubr.bf16.gmra.mrb[0].mxu0 %v2542
    %v3662 = vpop.f32.mrb[0].mxu0
    %v3663 = vadd.f32 %v3374, %v3662
    %v3664 = vpop.f32.mrb[0].mxu0
    %v3665 = vpop.f32.mrb[0].mxu0
    %v3666 = vadd.f32 %v3377, %v3665
    %v3667 = vpop.f32.mrb[0].mxu0
    %3668 = vmatprep.mubr.bf16.mxu0 %v2551
    %3669 = vmatmul.mubr.bf16.gmra.mrb[0].mxu0 %v2550
    %v3670 = vpop.f32.mrb[0].mxu0
    %v3671 = vadd.f32 %v3382, %v3670
    %v3672 = vpop.f32.mrb[0].mxu0
    %v3673 = vpop.f32.mrb[0].mxu0
    %v3674 = vadd.f32 %v3385, %v3673
    %v3675 = vpop.f32.mrb[0].mxu0
    %3676 = vmatprep.mubr.bf16.mxu0 %v2559
    %3677 = vmatmul.mubr.bf16.gmra.mrb[0].mxu0 %v2558
    %v3678 = vpop.f32.mrb[0].mxu0
    %v3679 = vadd.f32 %v3390, %v3678
    %v3680 = vpop.f32.mrb[0].mxu0
    %v3681 = vpop.f32.mrb[0].mxu0
    %v3682 = vadd.f32 %v3393, %v3681
    %v3683 = vpop.f32.mrb[0].mxu0
    %3684 = vmatprep.mubr.bf16.mxu0 %v2567
    %3685 = vmatmul.mubr.bf16.gmra.mrb[0].mxu0 %v2566
    %v3686 = vpop.f32.mrb[0].mxu0
    %v3687 = vadd.f32 %v3398, %v3686
    %v3688 = vpop.f32.mrb[0].mxu0
    %v3689 = vpop.f32.mrb[0].mxu0
    %v3690 = vadd.f32 %v3401, %v3689
    %v3691 = vpop.f32.mrb[0].mxu0
    %3692 = vmatprep.mubr.bf16.mxu0 %v2575
    %3693 = vmatmul.mubr.bf16.gmra.mrb[0].mxu0 %v2574
    %v3694 = vpop.f32.mrb[0].mxu0
    %v3695 = vadd.f32 %v3406, %v3694
    %v3696 = vpop.f32.mrb[0].mxu0
    %v3697 = vpop.f32.mrb[0].mxu0
    %v3698 = vadd.f32 %v3409, %v3697
    %v3699 = vpop.f32.mrb[0].mxu0
    %3700 = vmatprep.mubr.bf16.mxu0 %v2583
    %3701 = vmatmul.mubr.bf16.gmra.mrb[0].mxu0 %v2582
    %v3702 = vpop.f32.mrb[0].mxu0
    %v3703 = vadd.f32 %v3414, %v3702
    %v3704 = vpop.f32.mrb[0].mxu0
    %v3705 = vpop.f32.mrb[0].mxu0
    %v3706 = vadd.f32 %v3417, %v3705
    %v3707 = vpop.f32.mrb[0].mxu0
    %3708 = vmatprep.mubr.bf16.mxu0 %v2591
    %3709 = vmatmul.mubr.bf16.gmra.mrb[0].mxu0 %v2590
    %v3710 = vpop.f32.mrb[0].mxu0
    %v3711 = vadd.f32 %v3422, %v3710
    %v3712 = vpop.f32.mrb[0].mxu0
    %v3713 = vpop.f32.mrb[0].mxu0
    %v3714 = vadd.f32 %v3425, %v3713
    %v3715 = vpop.f32.mrb[0].mxu0
    %3716 = vmatprep.mubr.bf16.mxu0 %v2599
    %3717 = vmatmul.mubr.bf16.gmra.mrb[0].mxu0 %v2598
    %v3718 = vpop.f32.mrb[0].mxu0
    %v3719 = vadd.f32 %v3430, %v3718
    %v3720 = vpop.f32.mrb[0].mxu0
    %v3721 = vpop.f32.mrb[0].mxu0
    %v3722 = vadd.f32 %v3433, %v3721
    %v3723 = vpop.f32.mrb[0].mxu0
    %3724 = vmatprep.mubr.bf16.mxu0 %v2607
    %3725 = vmatmul.mubr.bf16.gmra.mrb[0].mxu0 %v2606
    %v3726 = vpop.f32.mrb[0].mxu0
    %v3727 = vadd.f32 %v3438, %v3726
    %v3728 = vpop.f32.mrb[0].mxu0
    %v3729 = vpop.f32.mrb[0].mxu0
    %v3730 = vadd.f32 %v3441, %v3729
    %v3731 = vpop.f32.mrb[0].mxu0
    %3732 = vmatprep.mubr.bf16.mxu0 %v2615
    %3733 = vmatmul.mubr.bf16.gmra.mrb[0].mxu0 %v2614
    %v3734 = vpop.f32.mrb[0].mxu0
    %v3735 = vadd.f32 %v3446, %v3734
    %v3736 = vpop.f32.mrb[0].mxu0
    %v3737 = vpop.f32.mrb[0].mxu0
    %v3738 = vadd.f32 %v3449, %v3737
    %v3739 = vpop.f32.mrb[0].mxu0
    %3740 = vmatprep.mubr.bf16.mxu0 %v2623
    %3741 = vmatmul.mubr.bf16.gmra.mrb[0].mxu0 %v2622
    %v3742 = vpop.f32.mrb[0].mxu0
    %v3743 = vadd.f32 %v3454, %v3742
    %v3744 = vpop.f32.mrb[0].mxu0
    %v3745 = vpop.f32.mrb[0].mxu0
    %v3746 = vadd.f32 %v3457, %v3745
    %v3747 = vpop.f32.mrb[0].mxu0
    %3748 = vmatprep.mubr.bf16.mxu0 %v2631
    %3749 = vmatmul.mubr.bf16.gmra.mrb[0].mxu0 %v2630
    %v3750 = vpop.f32.mrb[0].mxu0
    %v3751 = vadd.f32 %v3462, %v3750
    %v3752 = vpop.f32.mrb[0].mxu0
    %v3753 = vpop.f32.mrb[0].mxu0
    %v3754 = vadd.f32 %v3465, %v3753
    %v3755 = vpop.f32.mrb[0].mxu0
    %3756 = vmatprep.mubr.bf16.mxu0 %v2639
    %3757 = vmatmul.mubr.bf16.gmra.mrb[0].mxu0 %v2638
    %v3758 = vpop.f32.mrb[0].mxu0
    %v3759 = vadd.f32 %v3470, %v3758
    %v3760 = vpop.f32.mrb[0].mxu0
    %v3761 = vpop.f32.mrb[0].mxu0
    %v3762 = vadd.f32 %v3473, %v3761
    %v3763 = vpop.f32.mrb[0].mxu0
    %3764 = vmatprep.mubr.bf16.mxu0 %v2647
    %3765 = vmatmul.mubr.bf16.gmra.mrb[0].mxu0 %v2646
    %v3766 = vpop.f32.mrb[0].mxu0
    %v3767 = vadd.f32 %v3478, %v3766
    %v3768 = vpop.f32.mrb[0].mxu0
    %v3769 = vpop.f32.mrb[0].mxu0
    %v3770 = vadd.f32 %v3481, %v3769
    %v3771 = vpop.f32.mrb[0].mxu0
    %3772 = vmatprep.mubr.bf16.mxu0 %v2655
    %3773 = vmatmul.mubr.bf16.gmra.mrb[0].mxu0 %v2654
    %v3774 = vpop.f32.mrb[0].mxu0
    %v3775 = vadd.f32 %v3486, %v3774
    %v3776 = vpop.f32.mrb[0].mxu0
    %v3777 = vpop.f32.mrb[0].mxu0
    %v3778 = vadd.f32 %v3489, %v3777
    %v3779 = vpop.f32.mrb[0].mxu0
    %3780 = vmatprep.mubr.bf16.mxu0 %v2663
    %3781 = vmatmul.mubr.bf16.gmra.mrb[0].mxu0 %v2662
    %v3782 = vpop.f32.mrb[0].mxu0
    %v3783 = vadd.f32 %v3494, %v3782
    %v3784 = vpop.f32.mrb[0].mxu0
    %v3785 = vpop.f32.mrb[0].mxu0
    %v3786 = vadd.f32 %v3497, %v3785
    %v3787 = vpop.f32.mrb[0].mxu0
    %3788 = vmatprep.mubr.bf16.mxu0 %v2671
    %3789 = vmatmul.mubr.bf16.gmra.mrb[0].mxu0 %v2670
    %v3790 = vpop.f32.mrb[0].mxu0
    %v3791 = vadd.f32 %v3502, %v3790
    %v3792 = vpop.f32.mrb[0].mxu0
    %v3793 = vpop.f32.mrb[0].mxu0
    %v3794 = vadd.f32 %v3505, %v3793
    %v3795 = vpop.f32.mrb[0].mxu0
    %3796 = vmatprep.mubr.bf16.mxu0 %v2679
    %3797 = vmatmul.mubr.bf16.gmra.mrb[0].mxu0 %v2678
    %v3798 = vpop.f32.mrb[0].mxu0
    %v3799 = vadd.f32 %v3510, %v3798
    %v3800 = vpop.f32.mrb[0].mxu0
    %v3801 = vpop.f32.mrb[0].mxu0
    %v3802 = vadd.f32 %v3513, %v3801
    %v3803 = vpop.f32.mrb[0].mxu0
    %3804 = vmatprep.mubr.bf16.mxu0 %v2687
    %3805 = vmatmul.mubr.bf16.gmra.mrb[0].mxu0 %v2686
    %v3806 = vpop.f32.mrb[0].mxu0
    %v3807 = vadd.f32 %v3518, %v3806
    %v3808 = vpop.f32.mrb[0].mxu0
    %v3809 = vpop.f32.mrb[0].mxu0
    %v3810 = vadd.f32 %v3521, %v3809
    %v3811 = vpop.f32.mrb[0].mxu0
    %3812 = vmatprep.mubr.bf16.mxu0 %v2695
    %3813 = vmatmul.mubr.bf16.gmra.mrb[0].mxu0 %v2694
    %v3814 = vpop.f32.mrb[0].mxu0
    %v3815 = vadd.f32 %v3526, %v3814
    %v3816 = vpop.f32.mrb[0].mxu0
    %v3817 = vpop.f32.mrb[0].mxu0
    %v3818 = vadd.f32 %v3529, %v3817
    %v3819 = vpop.f32.mrb[0].mxu0
    %3820 = vmatprep.mubr.bf16.mxu0 %v2703
    %3821 = vmatmul.mubr.bf16.gmra.mrb[0].mxu0 %v2702
    %v3822 = vpop.f32.mrb[0].mxu0
    %v3823 = vadd.f32 %v3534, %v3822
    %v3824 = vpop.f32.mrb[0].mxu0
    %v3825 = vpop.f32.mrb[0].mxu0
    %v3826 = vadd.f32 %v3537, %v3825
    %v3827 = vpop.f32.mrb[0].mxu0
    %3828 = vdwg.mxu0
    %3829 = vmatprep.subr.bf16.mxu0 0
    %3830 = vmatpush1.bf16.msra.mxu0 %v1666
    %3831 = vmatprep.subr.bf16.mxu0 0
    %3832 = vmatpush1.bf16.msra.mxu0 %v1667
    %3833 = vmatprep.subr.bf16.mxu0 0
    %3834 = vmatpush1.bf16.msra.mxu0 %v1668
    %3835 = vmatprep.subr.bf16.mxu0 0
    %3836 = vmatpush1.bf16.msra.mxu0 %v1669
    %3837 = vmatprep.subr.bf16.mxu0 0
    %3838 = vmatpush1.bf16.msra.mxu0 %v1670
    %3839 = vmatprep.subr.bf16.mxu0 0
    %3840 = vmatpush1.bf16.msra.mxu0 %v1671
    %3841 = vmatprep.subr.bf16.mxu0 0
    %3842 = vmatpush1.bf16.msra.mxu0 %v1672
    %3843 = vmatprep.subr.bf16.mxu0 0
    %3844 = vmatpush1.bf16.msra.mxu0 %v1673
    %3845 = vmatprep.subr.bf16.mxu0 0
    %3846 = vmatpush1.bf16.msra.mxu0 %v1674
    %3847 = vmatprep.subr.bf16.mxu0 0
    %3848 = vmatpush1.bf16.msra.mxu0 %v1675
    %3849 = vmatprep.subr.bf16.mxu0 0
    %3850 = vmatpush1.bf16.msra.mxu0 %v1676
    %3851 = vmatprep.subr.bf16.mxu0 0
    %3852 = vmatpush1.bf16.msra.mxu0 %v1677
    %3853 = vmatprep.subr.bf16.mxu0 0
    %3854 = vmatpush1.bf16.msra.mxu0 %v1678
    %3855 = vmatprep.subr.bf16.mxu0 0
    %3856 = vmatpush1.bf16.msra.mxu0 %v1679
    %3857 = vmatprep.subr.bf16.mxu0 0
    %3858 = vmatpush1.bf16.msra.mxu0 %v1680
    %3859 = vmatprep.subr.bf16.mxu0 0
    %3860 = vmatpush1.bf16.msra.mxu0 %v1681
    %3861 = vmatprep.mubr.bf16.mxu0 %v2457
    %3862 = vmatmul.mubr.bf16.gmra.mrb[0].mxu0 %v2456
    %v3863 = vpop.f32.mrb[0].mxu0
    %v3864 = vadd.f32 %v3575, %v3863
    %v3865 = vpop.f32.mrb[0].mxu0
    %v3866 = vpop.f32.mrb[0].mxu0
    %v3867 = vadd.f32 %v3578, %v3866
    %v3868 = vpop.f32.mrb[0].mxu0
    %3869 = vmatprep.mubr.bf16.mxu0 %v2465
    %3870 = vmatmul.mubr.bf16.gmra.mrb[0].mxu0 %v2464
    %v3871 = vpop.f32.mrb[0].mxu0
    %v3872 = vadd.f32 %v3583, %v3871
    %v3873 = vpop.f32.mrb[0].mxu0
    %v3874 = vpop.f32.mrb[0].mxu0
    %v3875 = vadd.f32 %v3586, %v3874
    %v3876 = vpop.f32.mrb[0].mxu0
    %3877 = vmatprep.mubr.bf16.mxu0 %v2473
    %3878 = vmatmul.mubr.bf16.gmra.mrb[0].mxu0 %v2472
    %v3879 = vpop.f32.mrb[0].mxu0
    %v3880 = vadd.f32 %v3591, %v3879
    %v3881 = vpop.f32.mrb[0].mxu0
    %v3882 = vpop.f32.mrb[0].mxu0
    %v3883 = vadd.f32 %v3594, %v3882
    %v3884 = vpop.f32.mrb[0].mxu0
    %3885 = vmatprep.mubr.bf16.mxu0 %v2481
    %3886 = vmatmul.mubr.bf16.gmra.mrb[0].mxu0 %v2480
    %v3887 = vpop.f32.mrb[0].mxu0
    %v3888 = vadd.f32 %v3599, %v3887
    %v3889 = vpop.f32.mrb[0].mxu0
    %v3890 = vpop.f32.mrb[0].mxu0
    %v3891 = vadd.f32 %v3602, %v3890
    %v3892 = vpop.f32.mrb[0].mxu0
    %3893 = vmatprep.mubr.bf16.mxu0 %v2489
    %3894 = vmatmul.mubr.bf16.gmra.mrb[0].mxu0 %v2488
    %v3895 = vpop.f32.mrb[0].mxu0
    %v3896 = vadd.f32 %v3607, %v3895
    %v3897 = vpop.f32.mrb[0].mxu0
    %v3898 = vpop.f32.mrb[0].mxu0
    %v3899 = vadd.f32 %v3610, %v3898
    %v3900 = vpop.f32.mrb[0].mxu0
    %3901 = vmatprep.mubr.bf16.mxu0 %v2497
    %3902 = vmatmul.mubr.bf16.gmra.mrb[0].mxu0 %v2496
    %v3903 = vpop.f32.mrb[0].mxu0
    %v3904 = vadd.f32 %v3615, %v3903
    %v3905 = vpop.f32.mrb[0].mxu0
    %v3906 = vpop.f32.mrb[0].mxu0
    %v3907 = vadd.f32 %v3618, %v3906
    %v3908 = vpop.f32.mrb[0].mxu0
    %3909 = vmatprep.mubr.bf16.mxu0 %v2505
    %3910 = vmatmul.mubr.bf16.gmra.mrb[0].mxu0 %v2504
    %v3911 = vpop.f32.mrb[0].mxu0
    %v3912 = vadd.f32 %v3623, %v3911
    %v3913 = vpop.f32.mrb[0].mxu0
    %v3914 = vpop.f32.mrb[0].mxu0
    %v3915 = vadd.f32 %v3626, %v3914
    %v3916 = vpop.f32.mrb[0].mxu0
    %3917 = vmatprep.mubr.bf16.mxu0 %v2513
    %3918 = vmatmul.mubr.bf16.gmra.mrb[0].mxu0 %v2512
    %v3919 = vpop.f32.mrb[0].mxu0
    %v3920 = vadd.f32 %v3631, %v3919
    %v3921 = vpop.f32.mrb[0].mxu0
    %v3922 = vpop.f32.mrb[0].mxu0
    %v3923 = vadd.f32 %v3634, %v3922
    %v3924 = vpop.f32.mrb[0].mxu0
    %3925 = vmatprep.mubr.bf16.mxu0 %v2521
    %3926 = vmatmul.mubr.bf16.gmra.mrb[0].mxu0 %v2520
    %v3927 = vpop.f32.mrb[0].mxu0
    %v3928 = vadd.f32 %v3639, %v3927
    %v3929 = vpop.f32.mrb[0].mxu0
    %v3930 = vpop.f32.mrb[0].mxu0
    %v3931 = vadd.f32 %v3642, %v3930
    %v3932 = vpop.f32.mrb[0].mxu0
    %3933 = vmatprep.mubr.bf16.mxu0 %v2529
    %3934 = vmatmul.mubr.bf16.gmra.mrb[0].mxu0 %v2528
    %v3935 = vpop.f32.mrb[0].mxu0
    %v3936 = vadd.f32 %v3647, %v3935
    %v3937 = vpop.f32.mrb[0].mxu0
    %v3938 = vpop.f32.mrb[0].mxu0
    %v3939 = vadd.f32 %v3650, %v3938
    %v3940 = vpop.f32.mrb[0].mxu0
    %3941 = vmatprep.mubr.bf16.mxu0 %v2537
    %3942 = vmatmul.mubr.bf16.gmra.mrb[0].mxu0 %v2536
    %v3943 = vpop.f32.mrb[0].mxu0
    %v3944 = vadd.f32 %v3655, %v3943
    %v3945 = vpop.f32.mrb[0].mxu0
    %v3946 = vpop.f32.mrb[0].mxu0
    %v3947 = vadd.f32 %v3658, %v3946
    %v3948 = vpop.f32.mrb[0].mxu0
    %3949 = vmatprep.mubr.bf16.mxu0 %v2545
    %3950 = vmatmul.mubr.bf16.gmra.mrb[0].mxu0 %v2544
    %v3951 = vpop.f32.mrb[0].mxu0
    %v3952 = vadd.f32 %v3663, %v3951
    %v3953 = vpop.f32.mrb[0].mxu0
    %v3954 = vpop.f32.mrb[0].mxu0
    %v3955 = vadd.f32 %v3666, %v3954
    %v3956 = vpop.f32.mrb[0].mxu0
    %3957 = vmatprep.mubr.bf16.mxu0 %v2553
    %3958 = vmatmul.mubr.bf16.gmra.mrb[0].mxu0 %v2552
    %v3959 = vpop.f32.mrb[0].mxu0
    %v3960 = vadd.f32 %v3671, %v3959
    %v3961 = vpop.f32.mrb[0].mxu0
    %v3962 = vpop.f32.mrb[0].mxu0
    %v3963 = vadd.f32 %v3674, %v3962
    %v3964 = vpop.f32.mrb[0].mxu0
    %3965 = vmatprep.mubr.bf16.mxu0 %v2561
    %3966 = vmatmul.mubr.bf16.gmra.mrb[0].mxu0 %v2560
    %v3967 = vpop.f32.mrb[0].mxu0
    %v3968 = vadd.f32 %v3679, %v3967
    %v3969 = vpop.f32.mrb[0].mxu0
    %v3970 = vpop.f32.mrb[0].mxu0
    %v3971 = vadd.f32 %v3682, %v3970
    %v3972 = vpop.f32.mrb[0].mxu0
    %3973 = vmatprep.mubr.bf16.mxu0 %v2569
    %3974 = vmatmul.mubr.bf16.gmra.mrb[0].mxu0 %v2568
    %v3975 = vpop.f32.mrb[0].mxu0
    %v3976 = vadd.f32 %v3687, %v3975
    %v3977 = vpop.f32.mrb[0].mxu0
    %v3978 = vpop.f32.mrb[0].mxu0
    %v3979 = vadd.f32 %v3690, %v3978
    %v3980 = vpop.f32.mrb[0].mxu0
    %3981 = vmatprep.mubr.bf16.mxu0 %v2577
    %3982 = vmatmul.mubr.bf16.gmra.mrb[0].mxu0 %v2576
    %v3983 = vpop.f32.mrb[0].mxu0
    %v3984 = vadd.f32 %v3695, %v3983
    %v3985 = vpop.f32.mrb[0].mxu0
    %v3986 = vpop.f32.mrb[0].mxu0
    %v3987 = vadd.f32 %v3698, %v3986
    %v3988 = vpop.f32.mrb[0].mxu0
    %3989 = vmatprep.mubr.bf16.mxu0 %v2585
    %3990 = vmatmul.mubr.bf16.gmra.mrb[0].mxu0 %v2584
    %v3991 = vpop.f32.mrb[0].mxu0
    %v3992 = vadd.f32 %v3703, %v3991
    %v3993 = vpop.f32.mrb[0].mxu0
    %v3994 = vpop.f32.mrb[0].mxu0
    %v3995 = vadd.f32 %v3706, %v3994
    %v3996 = vpop.f32.mrb[0].mxu0
    %3997 = vmatprep.mubr.bf16.mxu0 %v2593
    %3998 = vmatmul.mubr.bf16.gmra.mrb[0].mxu0 %v2592
    %v3999 = vpop.f32.mrb[0].mxu0
    %v4000 = vadd.f32 %v3711, %v3999
    %v4001 = vpop.f32.mrb[0].mxu0
    %v4002 = vpop.f32.mrb[0].mxu0
    %v4003 = vadd.f32 %v3714, %v4002
    %v4004 = vpop.f32.mrb[0].mxu0
    %4005 = vmatprep.mubr.bf16.mxu0 %v2601
    %4006 = vmatmul.mubr.bf16.gmra.mrb[0].mxu0 %v2600
    %v4007 = vpop.f32.mrb[0].mxu0
    %v4008 = vadd.f32 %v3719, %v4007
    %v4009 = vpop.f32.mrb[0].mxu0
    %v4010 = vpop.f32.mrb[0].mxu0
    %v4011 = vadd.f32 %v3722, %v4010
    %v4012 = vpop.f32.mrb[0].mxu0
    %4013 = vmatprep.mubr.bf16.mxu0 %v2609
    %4014 = vmatmul.mubr.bf16.gmra.mrb[0].mxu0 %v2608
    %v4015 = vpop.f32.mrb[0].mxu0
    %v4016 = vadd.f32 %v3727, %v4015
    %v4017 = vpop.f32.mrb[0].mxu0
    %v4018 = vpop.f32.mrb[0].mxu0
    %v4019 = vadd.f32 %v3730, %v4018
    %v4020 = vpop.f32.mrb[0].mxu0
    %4021 = vmatprep.mubr.bf16.mxu0 %v2617
    %4022 = vmatmul.mubr.bf16.gmra.mrb[0].mxu0 %v2616
    %v4023 = vpop.f32.mrb[0].mxu0
    %v4024 = vadd.f32 %v3735, %v4023
    %v4025 = vpop.f32.mrb[0].mxu0
    %v4026 = vpop.f32.mrb[0].mxu0
    %v4027 = vadd.f32 %v3738, %v4026
    %v4028 = vpop.f32.mrb[0].mxu0
    %4029 = vmatprep.mubr.bf16.mxu0 %v2625
    %4030 = vmatmul.mubr.bf16.gmra.mrb[0].mxu0 %v2624
    %v4031 = vpop.f32.mrb[0].mxu0
    %v4032 = vadd.f32 %v3743, %v4031
    %v4033 = vpop.f32.mrb[0].mxu0
    %v4034 = vpop.f32.mrb[0].mxu0
    %v4035 = vadd.f32 %v3746, %v4034
    %v4036 = vpop.f32.mrb[0].mxu0
    %4037 = vmatprep.mubr.bf16.mxu0 %v2633
    %4038 = vmatmul.mubr.bf16.gmra.mrb[0].mxu0 %v2632
    %v4039 = vpop.f32.mrb[0].mxu0
    %v4040 = vadd.f32 %v3751, %v4039
    %v4041 = vpop.f32.mrb[0].mxu0
    %v4042 = vpop.f32.mrb[0].mxu0
    %v4043 = vadd.f32 %v3754, %v4042
    %v4044 = vpop.f32.mrb[0].mxu0
    %4045 = vmatprep.mubr.bf16.mxu0 %v2641
    %4046 = vmatmul.mubr.bf16.gmra.mrb[0].mxu0 %v2640
    %v4047 = vpop.f32.mrb[0].mxu0
    %v4048 = vadd.f32 %v3759, %v4047
    %v4049 = vpop.f32.mrb[0].mxu0
    %v4050 = vpop.f32.mrb[0].mxu0
    %v4051 = vadd.f32 %v3762, %v4050
    %v4052 = vpop.f32.mrb[0].mxu0
    %4053 = vmatprep.mubr.bf16.mxu0 %v2649
    %4054 = vmatmul.mubr.bf16.gmra.mrb[0].mxu0 %v2648
    %v4055 = vpop.f32.mrb[0].mxu0
    %v4056 = vadd.f32 %v3767, %v4055
    %v4057 = vpop.f32.mrb[0].mxu0
    %v4058 = vpop.f32.mrb[0].mxu0
    %v4059 = vadd.f32 %v3770, %v4058
    %v4060 = vpop.f32.mrb[0].mxu0
    %4061 = vmatprep.mubr.bf16.mxu0 %v2657
    %4062 = vmatmul.mubr.bf16.gmra.mrb[0].mxu0 %v2656
    %v4063 = vpop.f32.mrb[0].mxu0
    %v4064 = vadd.f32 %v3775, %v4063
    %v4065 = vpop.f32.mrb[0].mxu0
    %v4066 = vpop.f32.mrb[0].mxu0
    %v4067 = vadd.f32 %v3778, %v4066
    %v4068 = vpop.f32.mrb[0].mxu0
    %4069 = vmatprep.mubr.bf16.mxu0 %v2665
    %4070 = vmatmul.mubr.bf16.gmra.mrb[0].mxu0 %v2664
    %v4071 = vpop.f32.mrb[0].mxu0
    %v4072 = vadd.f32 %v3783, %v4071
    %v4073 = vpop.f32.mrb[0].mxu0
    %v4074 = vpop.f32.mrb[0].mxu0
    %v4075 = vadd.f32 %v3786, %v4074
    %v4076 = vpop.f32.mrb[0].mxu0
    %4077 = vmatprep.mubr.bf16.mxu0 %v2673
    %4078 = vmatmul.mubr.bf16.gmra.mrb[0].mxu0 %v2672
    %v4079 = vpop.f32.mrb[0].mxu0
    %v4080 = vadd.f32 %v3791, %v4079
    %v4081 = vpop.f32.mrb[0].mxu0
    %v4082 = vpop.f32.mrb[0].mxu0
    %v4083 = vadd.f32 %v3794, %v4082
    %v4084 = vpop.f32.mrb[0].mxu0
    %4085 = vmatprep.mubr.bf16.mxu0 %v2681
    %4086 = vmatmul.mubr.bf16.gmra.mrb[0].mxu0 %v2680
    %v4087 = vpop.f32.mrb[0].mxu0
    %v4088 = vadd.f32 %v3799, %v4087
    %v4089 = vpop.f32.mrb[0].mxu0
    %v4090 = vpop.f32.mrb[0].mxu0
    %v4091 = vadd.f32 %v3802, %v4090
    %v4092 = vpop.f32.mrb[0].mxu0
    %4093 = vmatprep.mubr.bf16.mxu0 %v2689
    %4094 = vmatmul.mubr.bf16.gmra.mrb[0].mxu0 %v2688
    %v4095 = vpop.f32.mrb[0].mxu0
    %v4096 = vadd.f32 %v3807, %v4095
    %v4097 = vpop.f32.mrb[0].mxu0
    %v4098 = vpop.f32.mrb[0].mxu0
    %v4099 = vadd.f32 %v3810, %v4098
    %v4100 = vpop.f32.mrb[0].mxu0
    %4101 = vmatprep.mubr.bf16.mxu0 %v2697
    %4102 = vmatmul.mubr.bf16.gmra.mrb[0].mxu0 %v2696
    %v4103 = vpop.f32.mrb[0].mxu0
    %v4104 = vadd.f32 %v3815, %v4103
    %v4105 = vpop.f32.mrb[0].mxu0
    %v4106 = vpop.f32.mrb[0].mxu0
    %v4107 = vadd.f32 %v3818, %v4106
    %v4108 = vpop.f32.mrb[0].mxu0
    %4109 = vmatprep.mubr.bf16.mxu0 %v2705
    %4110 = vmatmul.mubr.bf16.gmra.mrb[0].mxu0 %v2704
    %v4111 = vpop.f32.mrb[0].mxu0
    %v4112 = vadd.f32 %v3823, %v4111
    %v4113 = vpop.f32.mrb[0].mxu0
    %v4114 = vpop.f32.mrb[0].mxu0
    %v4115 = vadd.f32 %v3826, %v4114
    %v4116 = vpop.f32.mrb[0].mxu0
    %4117 = vdwg.mxu0
    %v4118 = vmax.f32 %v3864, 0.0
    %v4119 = vmax.f32 %v3867, 0.0
    %v4120 = vmax.f32 %v3872, 0.0
    %v4121 = vmax.f32 %v3875, 0.0
    %v4122 = vmax.f32 %v3880, 0.0
    %v4123 = vmax.f32 %v3883, 0.0
    %v4124 = vmax.f32 %v3888, 0.0
    %v4125 = vmax.f32 %v3891, 0.0
    %v4126 = vmax.f32 %v3896, 0.0
    %v4127 = vmax.f32 %v3899, 0.0
    %v4128 = vmax.f32 %v3904, 0.0
    %v4129 = vmax.f32 %v3907, 0.0
    %v4130 = vmax.f32 %v3912, 0.0
    %v4131 = vmax.f32 %v3915, 0.0
    %v4132 = vmax.f32 %v3920, 0.0
    %v4133 = vmax.f32 %v3923, 0.0
    %v4134 = vmax.f32 %v3928, 0.0
    %v4135 = vmax.f32 %v3931, 0.0
    %v4136 = vmax.f32 %v3936, 0.0
    %v4137 = vmax.f32 %v3939, 0.0
    %v4138 = vmax.f32 %v3944, 0.0
    %v4139 = vmax.f32 %v3947, 0.0
    %v4140 = vmax.f32 %v3952, 0.0
    %v4141 = vmax.f32 %v3955, 0.0
    %v4142 = vmax.f32 %v3960, 0.0
    %v4143 = vmax.f32 %v3963, 0.0
    %v4144 = vmax.f32 %v3968, 0.0
    %v4145 = vmax.f32 %v3971, 0.0
    %v4146 = vmax.f32 %v3976, 0.0
    %v4147 = vmax.f32 %v3979, 0.0
    %v4148 = vmax.f32 %v3984, 0.0
    %v4149 = vmax.f32 %v3987, 0.0
    %v4150 = vmax.f32 %v3992, 0.0
    %v4151 = vmax.f32 %v3995, 0.0
    %v4152 = vmax.f32 %v4000, 0.0
    %v4153 = vmax.f32 %v4003, 0.0
    %v4154 = vmax.f32 %v4008, 0.0
    %v4155 = vmax.f32 %v4011, 0.0
    %v4156 = vmax.f32 %v4016, 0.0
    %v4157 = vmax.f32 %v4019, 0.0
    %v4158 = vmax.f32 %v4024, 0.0
    %v4159 = vmax.f32 %v4027, 0.0
    %v4160 = vmax.f32 %v4032, 0.0
    %v4161 = vmax.f32 %v4035, 0.0
    %v4162 = vmax.f32 %v4040, 0.0
    %v4163 = vmax.f32 %v4043, 0.0
    %v4164 = vmax.f32 %v4048, 0.0
    %v4165 = vmax.f32 %v4051, 0.0
    %v4166 = vmax.f32 %v4056, 0.0
    %v4167 = vmax.f32 %v4059, 0.0
    %v4168 = vmax.f32 %v4064, 0.0
    %v4169 = vmax.f32 %v4067, 0.0
    %v4170 = vmax.f32 %v4072, 0.0
    %v4171 = vmax.f32 %v4075, 0.0
    %v4172 = vmax.f32 %v4080, 0.0
    %v4173 = vmax.f32 %v4083, 0.0
    %v4174 = vmax.f32 %v4088, 0.0
    %v4175 = vmax.f32 %v4091, 0.0
    %v4176 = vmax.f32 %v4096, 0.0
    %v4177 = vmax.f32 %v4099, 0.0
    %v4178 = vmax.f32 %v4104, 0.0
    %v4179 = vmax.f32 %v4107, 0.0
    %v4180 = vmax.f32 %v4112, 0.0
    %v4181 = vmax.f32 %v4115, 0.0
    %v4182 = vld [vmem:[%s3] sm:$0xff]
    %v4183 = vld [vmem:[%s3 + $0x8] sm:$0xff]
    %v4184 = vld [vmem:[%s3 + $0x10] sm:$0xff]
    %v4185 = vld [vmem:[%s3 + $0x18] sm:$0xff]
    %v4186 = vld [vmem:[%s3 + $0x20] sm:$0xff]
    %v4187 = vld [vmem:[%s3 + $0x28] sm:$0xff]
    %v4188 = vld [vmem:[%s3 + $0x30] sm:$0xff]
    %v4189 = vld [vmem:[%s3 + $0x38] sm:$0xff]
    %v4190 = vpack.c.bf16 %v4119, %v4118
    %v4191 = vpack.c.bf16 %v4121, %v4120
    %v4192 = vpack.c.bf16 %v4123, %v4122
    %v4193 = vpack.c.bf16 %v4125, %v4124
    %v4194 = vpack.c.bf16 %v4127, %v4126
    %v4195 = vpack.c.bf16 %v4129, %v4128
    %v4196 = vpack.c.bf16 %v4131, %v4130
    %v4197 = vpack.c.bf16 %v4133, %v4132
    %v4198 = vpack.c.bf16 %v4135, %v4134
    %v4199 = vpack.c.bf16 %v4137, %v4136
    %v4200 = vpack.c.bf16 %v4139, %v4138
    %v4201 = vpack.c.bf16 %v4141, %v4140
    %v4202 = vpack.c.bf16 %v4143, %v4142
    %v4203 = vpack.c.bf16 %v4145, %v4144
    %v4204 = vpack.c.bf16 %v4147, %v4146
    %v4205 = vpack.c.bf16 %v4149, %v4148
    %v4206 = vpack.c.bf16 %v4151, %v4150
    %v4207 = vpack.c.bf16 %v4153, %v4152
    %v4208 = vpack.c.bf16 %v4155, %v4154
    %v4209 = vpack.c.bf16 %v4157, %v4156
    %v4210 = vpack.c.bf16 %v4159, %v4158
    %v4211 = vpack.c.bf16 %v4161, %v4160
    %v4212 = vpack.c.bf16 %v4163, %v4162
    %v4213 = vpack.c.bf16 %v4165, %v4164
    %v4214 = vpack.c.bf16 %v4167, %v4166
    %v4215 = vpack.c.bf16 %v4169, %v4168
    %v4216 = vpack.c.bf16 %v4171, %v4170
    %v4217 = vpack.c.bf16 %v4173, %v4172
    %v4218 = vpack.c.bf16 %v4175, %v4174
    %v4219 = vpack.c.bf16 %v4177, %v4176
    %v4220 = vpack.c.bf16 %v4179, %v4178
    %v4221 = vpack.c.bf16 %v4181, %v4180
    %v4230 = vunpack.c.l.b16 %v4182
    %v4231 = vunpack.c.h.b16 %v4182
    %v4232 = vunpack.c.l.b16 %v4183
    %v4233 = vunpack.c.h.b16 %v4183
    %v4234 = vunpack.c.l.b16 %v4184
    %v4235 = vunpack.c.h.b16 %v4184
    %v4236 = vunpack.c.l.b16 %v4185
    %v4237 = vunpack.c.h.b16 %v4185
    %v4238 = vunpack.c.l.b16 %v4186
    %v4239 = vunpack.c.h.b16 %v4186
    %v4240 = vunpack.c.l.b16 %v4187
    %v4241 = vunpack.c.h.b16 %v4187
    %v4242 = vunpack.c.l.b16 %v4188
    %v4243 = vunpack.c.h.b16 %v4188
    %v4244 = vunpack.c.l.b16 %v4189
    %v4245 = vunpack.c.h.b16 %v4189
    %v4246 = vpack.c.b16 %v4234, %v4230
    %v4247 = vpack.c.b16 %v4235, %v4231
    %v4248 = vpack.c.b16 %v4236, %v4232
    %v4249 = vpack.c.b16 %v4237, %v4233
    %v4250 = vpack.c.b16 %v4242, %v4238
    %v4251 = vpack.c.b16 %v4243, %v4239
    %v4252 = vpack.c.b16 %v4244, %v4240
    %v4253 = vpack.c.b16 %v4245, %v4241
    %4262 = vmatprep.subr.bf16.mxu0 0
    %4263 = vmatpush1.bf16.msra.mxu0 %v4190
    %4264 = vmatprep.subr.bf16.mxu0 0
    %4265 = vmatpush1.bf16.msra.mxu0 %v4191
    %4266 = vmatprep.subr.bf16.mxu0 0
    %4267 = vmatpush1.bf16.msra.mxu0 %v4192
    %4268 = vmatprep.subr.bf16.mxu0 0
    %4269 = vmatpush1.bf16.msra.mxu0 %v4193
    %4270 = vmatprep.subr.bf16.mxu0 0
    %4271 = vmatpush1.bf16.msra.mxu0 %v4194
    %4272 = vmatprep.subr.bf16.mxu0 0
    %4273 = vmatpush1.bf16.msra.mxu0 %v4195
    %4274 = vmatprep.subr.bf16.mxu0 0
    %4275 = vmatpush1.bf16.msra.mxu0 %v4196
    %4276 = vmatprep.subr.bf16.mxu0 0
    %4277 = vmatpush1.bf16.msra.mxu0 %v4197
    %4278 = vmatprep.subr.bf16.mxu0 0
    %4279 = vmatpush1.bf16.msra.mxu0 %v4198
    %4280 = vmatprep.subr.bf16.mxu0 0
    %4281 = vmatpush1.bf16.msra.mxu0 %v4199
    %4282 = vmatprep.subr.bf16.mxu0 0
    %4283 = vmatpush1.bf16.msra.mxu0 %v4200
    %4284 = vmatprep.subr.bf16.mxu0 0
    %4285 = vmatpush1.bf16.msra.mxu0 %v4201
    %4286 = vmatprep.subr.bf16.mxu0 0
    %4287 = vmatpush1.bf16.msra.mxu0 %v4202
    %4288 = vmatprep.subr.bf16.mxu0 0
    %4289 = vmatpush1.bf16.msra.mxu0 %v4203
    %4290 = vmatprep.subr.bf16.mxu0 0
    %4291 = vmatpush1.bf16.msra.mxu0 %v4204
    %4292 = vmatprep.subr.bf16.mxu0 0
    %4293 = vmatpush1.bf16.msra.mxu0 %v4205
    %4294 = vmatprep.mubr.bf16.mxu0 %v4247
    %4295 = vmatmul.mubr.bf16.gmra.mrb[0].mxu0 %v4246
    %v4296 = vpop.f32.mrb[0].mxu0
    %v4297 = vadd.f32 0.0, %v4296
    %v4298 = vpop.f32.mrb[0].mxu0
    %v4299 = vpop.f32.mrb[0].mxu0
    %v4300 = vadd.f32 0.0, %v4299
    %v4301 = vpop.f32.mrb[0].mxu0
    %4302 = vmatprep.mubr.bf16.mxu0 %v4251
    %4303 = vmatmul.mubr.bf16.gmra.mrb[0].mxu0 %v4250
    %v4304 = vpop.f32.mrb[0].mxu0
    %v4305 = vadd.f32 0.0, %v4304
    %v4306 = vpop.f32.mrb[0].mxu0
    %v4307 = vpop.f32.mrb[0].mxu0
    %v4308 = vadd.f32 0.0, %v4307
    %v4309 = vpop.f32.mrb[0].mxu0
    %4310 = vdwg.mxu0
    %4311 = vmatprep.subr.bf16.mxu0 0
    %4312 = vmatpush1.bf16.msra.mxu0 %v4206
    %4313 = vmatprep.subr.bf16.mxu0 0
    %4314 = vmatpush1.bf16.msra.mxu0 %v4207
    %4315 = vmatprep.subr.bf16.mxu0 0
    %4316 = vmatpush1.bf16.msra.mxu0 %v4208
    %4317 = vmatprep.subr.bf16.mxu0 0
    %4318 = vmatpush1.bf16.msra.mxu0 %v4209
    %4319 = vmatprep.subr.bf16.mxu0 0
    %4320 = vmatpush1.bf16.msra.mxu0 %v4210
    %4321 = vmatprep.subr.bf16.mxu0 0
    %4322 = vmatpush1.bf16.msra.mxu0 %v4211
    %4323 = vmatprep.subr.bf16.mxu0 0
    %4324 = vmatpush1.bf16.msra.mxu0 %v4212
    %4325 = vmatprep.subr.bf16.mxu0 0
    %4326 = vmatpush1.bf16.msra.mxu0 %v4213
    %4327 = vmatprep.subr.bf16.mxu0 0
    %4328 = vmatpush1.bf16.msra.mxu0 %v4214
    %4329 = vmatprep.subr.bf16.mxu0 0
    %4330 = vmatpush1.bf16.msra.mxu0 %v4215
    %4331 = vmatprep.subr.bf16.mxu0 0
    %4332 = vmatpush1.bf16.msra.mxu0 %v4216
    %4333 = vmatprep.subr.bf16.mxu0 0
    %4334 = vmatpush1.bf16.msra.mxu0 %v4217
    %4335 = vmatprep.subr.bf16.mxu0 0
    %4336 = vmatpush1.bf16.msra.mxu0 %v4218
    %4337 = vmatprep.subr.bf16.mxu0 0
    %4338 = vmatpush1.bf16.msra.mxu0 %v4219
    %4339 = vmatprep.subr.bf16.mxu0 0
    %4340 = vmatpush1.bf16.msra.mxu0 %v4220
    %4341 = vmatprep.subr.bf16.mxu0 0
    %4342 = vmatpush1.bf16.msra.mxu0 %v4221
    %4343 = vmatprep.mubr.bf16.mxu0 %v4249
    %4344 = vmatmul.mubr.bf16.gmra.mrb[0].mxu0 %v4248
    %v4345 = vpop.f32.mrb[0].mxu0
    %v4346 = vadd.f32 %v4297, %v4345
    %v4347 = vpop.f32.mrb[0].mxu0
    %v4348 = vpop.f32.mrb[0].mxu0
    %v4349 = vadd.f32 %v4300, %v4348
    %v4350 = vpop.f32.mrb[0].mxu0
    %4351 = vmatprep.mubr.bf16.mxu0 %v4253
    %4352 = vmatmul.mubr.bf16.gmra.mrb[0].mxu0 %v4252
    %v4353 = vpop.f32.mrb[0].mxu0
    %v4354 = vadd.f32 %v4305, %v4353
    %v4355 = vpop.f32.mrb[0].mxu0
    %v4356 = vpop.f32.mrb[0].mxu0
    %v4357 = vadd.f32 %v4308, %v4356
    %v4358 = vpop.f32.mrb[0].mxu0
    %4359 = vdwg.mxu0
    %v4360 = vmax.f32 %v4346, 0.0
    %v4361 = vmax.f32 %v4349, 0.0
    %v4362 = vmax.f32 %v4354, 0.0
    %v4363 = vmax.f32 %v4357, 0.0
    %v4364 = vld [vmem:[%s4] sm:$0xff]
    %v4365 = vld [vmem:[%s4 + $0x8] sm:$0xff]
    %v4366 = vld [vmem:[%s4 + $0x10] sm:$0xff]
    %v4367 = vld [vmem:[%s4 + $0x18] sm:$0xff]
    %4369 = vset.pattern.permute.xlu0 0
    %4370 = vperm.xlu0 %4369, %v4364
    %v4371 = vpop.permute.xlu0 %4370
    %4374 = vset.pattern.permute.xlu0 0
    %4375 = vperm.xlu0 %4374, %v4365
    %v4376 = vpop.permute.xlu0 %4375
    %4379 = vset.pattern.permute.xlu0 0
    %4380 = vperm.xlu0 %4379, %v4366
    %v4381 = vpop.permute.xlu0 %4380
    %4384 = vset.pattern.permute.xlu0 0
    %4385 = vperm.xlu0 %4384, %v4367
    %v4386 = vpop.permute.xlu0 %4385
    %v4388 = vmul.f32 %v4360, %v4371
    %v4389 = vmul.f32 %v4361, %v4376
    %v4390 = vmul.f32 %v4362, %v4381
    %v4391 = vmul.f32 %v4363, %v4386
    %v4392 = vadd.f32 %v4388, %v4389
    %v4393 = vadd.f32 %v4392, %v4390
    %v4394 = vadd.f32 %v4393, %v4391
    %v4395 = vrot.slane %v4394, 4
    %v4396 = vadd.f32 %v4394, %v4395
    %v4397 = vrot.slane %v4396, 2
    %v4398 = vadd.f32 %v4396, %v4397
    %v4399 = vrot.slane %v4398, 1
    %v4400 = vadd.f32 %v4398, %v4399
    %4401 = vst [vmem:[#allocation5] sm:$0x1] %v4400
    // Predicated region
    $region26: #{tpu_custom_call.1} parent=1 // pred_check
      _
    $region27: #{tpu_custom_call.1} parent=1 // pred_check_branch
      %4403 = sbr.rel (0) target = $region29
    $region28: #{tpu_custom_call.1} parent=1 // pred_region
      %s4405 = ssub.s32 16, 16
      %4406 = vsyncadd [#allocation4], %s4405
      %s4408 = sshll.u32 [#allocation5], 4
      %s4409 = int_to_ptr.vmem [resolvable:$true] %s4408
      %4411 = dma.vmem_to_hbm [thread:$0]  %s4409, 16, %s5, [#allocation4]
    $region29: #{tpu_custom_call.1} parent=1 // pred_fallthru
      _
    // Predicated region
    $region30: #{tpu_custom_call.1} parent=1 // pred_check
      _
    $region31: #{tpu_custom_call.1} parent=1 // pred_check_branch
      %4413 = sbr.rel (0) target = $region33
    $region32: #{tpu_custom_call.1} parent=1 // pred_region
      %4414 = dma.done [#allocation4], 16
    $region33: #{tpu_custom_call.1} parent=1 // pred_fallthru
      _
    %4415 = vsyncpa [#allocation3], 1
    %4416 = vsyncpa [#allocation4], 1

</llo_original>
